<compile_context>
chip_gen: v7x
topology: tpu7x:2x2x1
jax: 0.10.0
libtpu: 0.0.40
codegen_flags: <defaults>
</compile_context>

<pallas_src>
import numpy as np
import jax
import jax.numpy as jnp
from jax.experimental import pallas as pl
from jax.experimental.pallas import tpu as pltpu


# --------------------------- static shape helpers ----------------------------

def make_cfg(shape_out, kernel_sizes, strides, conv_channels, linear_channels):
    n_conv = len(conv_channels) - 1
    ks = kernel_sizes if isinstance(kernel_sizes, list) else [kernel_sizes] * n_conv
    st = strides if isinstance(strides, list) else [strides] * n_conv
    fm = [list(shape_out)]
    for l in range(n_conv - 1, -1, -1):
        h, w = fm[0]
        fm = [[(h - ks[l]) // st[l] + 1, (w - ks[l]) // st[l] + 1]] + fm
    n_conv_in = int(np.prod(fm[0])) * conv_channels[0]
    lin_ch = None if linear_channels is None else list(linear_channels) + [n_conv_in]
    return dict(conv_channels=list(conv_channels), kernel_sizes=ks, strides=st,
                fm0=fm[0], n_conv_in=n_conv_in, lin_channels=lin_ch,
                shape_out=tuple(shape_out))


def _conv_layer_dims(cfg):
    """Static per-layer geometry for the gather / im2col formulation."""
    cc, ks, st = cfg["conv_channels"], cfg["kernel_sizes"], cfg["strides"]
    H, W = cfg["fm0"]
    dims = []
    for l in range(len(cc) - 1):
        K, s = ks[l], st[l]
        p = K - 1
        OH, OW = (H - 1) * s + K, (W - 1) * s + K               # ConvT, padding=0
        Hp, Wp = (H - 1) * s + 1 + 2 * p, (W - 1) * s + 1 + 2 * p  # dilated+padded
        L = (OH - 1) * Wp + OW                                  # wide-row acc width
        dims.append(dict(Cin=cc[l], Cout=cc[l + 1], K=K, s=s, H=H, W=W,
                         OH=OH, OW=OW, Hp=Hp, Wp=Wp, L=L, KKC=K * K * cc[l]))
        H, W = OH, OW
    return dims


# --------------------------- parameter init ----------------------------------

def init_params(key, cfg):
    params = {"lin": [], "conv": []}
    lin_ch, cc = cfg["lin_channels"], cfg["conv_channels"]
    n_lin = 0 if lin_ch is None else len(lin_ch) - 1
    n_conv = len(cc) - 1
    keys = jax.random.split(key, 2 * (n_lin + n_conv))
    i = 0
    for l in range(n_lin):
        w = jax.random.normal(keys[i], (lin_ch[l], lin_ch[l + 1]),
                              jnp.float32) / np.sqrt(lin_ch[l])
        b = jax.random.normal(keys[i + 1], (lin_ch[l + 1],), jnp.float32) * 0.1
        params["lin"].append((w, b))
        i += 2
    for l in range(n_conv):
        K = cfg["kernel_sizes"][l]
        w = jax.random.normal(keys[i], (cc[l], cc[l + 1], K, K),
                              jnp.float32) / np.sqrt(cc[l] * K * K)
        b = jax.random.normal(keys[i + 1], (cc[l + 1],), jnp.float32) * 0.1
        params["conv"].append((w, b))
        i += 2
    return params


# --------------------------- fused Pallas kernel ------------------------------

def _make_fused_kernel(n_lin, conv_dims):
    n_conv = len(conv_dims)

    def kernel(*refs):
        it = iter(refs)
        x_ref = next(it)
        lin = [(next(it), next(it)) for _ in range(n_lin)]
        conv = [(next(it), next(it)) for _ in range(n_conv)]
        o_ref = next(it)
        xp_ref = next(it)     # (Cin_max, max Hp*Wp)  padded/dilated input, flat rows
        pat_ref = next(it)    # (KKC_max, L_max)      im2col patch matrix

        # ---------------- linear readout (ReLU after every linear layer) ------
        cur = x_ref[0]                                    # (1, Din)
        for (w_ref, b_ref) in lin:
            cur = jnp.dot(cur, w_ref[...], preferred_element_type=jnp.float32)
            cur = jnp.maximum(cur + b_ref[...], 0.0)
        # `cur` is now the NCHW-flattened conv input of this sample: (1, C0*H0*W0)

        # ---------------- transposed-conv stack --------------------------------
        src, src_wp = cur, None       # src_wp=None -> src is densely-packed flat
        for l, d in enumerate(conv_dims):
            Cin, K, s, p = d["Cin"], d["K"], d["s"], d["K"] - 1
            H, W = d["H"], d["W"]
            Wp, L, KKC = d["Wp"], d["L"], d["KKC"]
            w_ref, b_ref = conv[l]

            # zero-dilate + zero-pad the layer input into VMEM (flat rows, width Wp)
            xp_ref[...] = jnp.zeros_like(xp_ref)
            for i in range(H):
                base = (p + i * s) * Wp + p
                if src_wp is None:
                    # src: (1, Cin*H*W), NCHW flattening -> one channel at a time
                    for c in range(Cin):
                        seg = src[:, c * H * W + i * W: c * H * W + i * W + W]
                        if s == 1:
                            xp_ref[c:c + 1, base:base + W] = seg
                        else:
                            # TODO(synk): stride>1 zero-dilation uses element-wise
                            # stores (correct but slow path).
                            for j in range(W):
                                xp_ref[c:c + 1, base + j * s:base + j * s + 1] = \
                                    seg[:, j:j + 1]
                else:
                    # src: (Cin, L_prev) wide rows of stride src_wp, valid width W
                    seg = src[:, i * src_wp: i * src_wp + W]
                    if s == 1:
                        xp_ref[:Cin, base:base + W] = seg
                    else:
                        for j in range(W):
                            xp_ref[:Cin, base + j * s:base + j * s + 1] = \
                                seg[:, j:j + 1]

            # im2col: every (kh, kw) tap is a *contiguous* lane-slice of the flat
            # padded input (rows wrap, but wrapped columns are never read back).
            for kh in range(K):
                for kw in range(K):
                    t = kh * K + kw
                    s0 = kh * Wp + kw
                    pat_ref[t * Cin:(t + 1) * Cin, :L] = xp_ref[:Cin, s0:s0 + L]

            # one MXU matmul per layer: (Cout, K*K*Cin) @ (K*K*Cin, L)
            acc = jnp.dot(w_ref[...], pat_ref[:KKC, :L],
                          preferred_element_type=jnp.float32)
            acc = acc + b_ref[...]                        # (Cout, 1) bias, lane bcast
            if l != n_conv - 1:
                acc = jnp.maximum(acc, 0.0)               # ReLU on all but last layer
            src, src_wp = acc, Wp

        # ---------------- emit NCHW-flattened, lane-dense output ---------------
        d = conv_dims[-1]
        OH, OW, Wp = d["OH"], d["OW"], d["Wp"]
        for oh in range(OH):
            o_ref[0, :, oh * OW:(oh + 1) * OW] = (
                src[:, oh * Wp: oh * Wp + OW].astype(o_ref.dtype))

    return kernel


def transposed_cnn_forward_pallas(x, params, cfg):
    """Full TransposedCNN forward in one pallas_call. Returns NCHW output."""
    dims = _conv_layer_dims(cfg)
    n_lin = len(params["lin"])
    B = x.shape[0]

    # latent (or NCHW feature map) -> (B, 1, flat); NCHW row-major flattening is
    # exactly the channel-major layout the kernel expects.
    x_flat = x.reshape(B, 1, -1).astype(jnp.float32)
    inputs = [x_flat]
    in_specs = [pl.BlockSpec((1, 1, x_flat.shape[-1]), lambda n: (n, 0, 0))]

    for (w, b) in params["lin"]:
        Din, Dout = w.shape
        inputs += [w, b.reshape(1, Dout)]
        in_specs += [pl.BlockSpec((Din, Dout), lambda n: (0, 0)),
                     pl.BlockSpec((1, Dout), lambda n: (0, 0))]

    for l, (w, b) in enumerate(params["conv"]):
        d = dims[l]
        K, Cin, Cout = d["K"], d["Cin"], d["Cout"]
        # torch ConvTranspose2d weight (Cin, Cout, K, K) ->
        #   Wmat[co, (kh*K + kw)*Cin + ci] = W[ci, co, K-1-kh, K-1-kw]
        w_f = jnp.transpose(jnp.flip(w, axis=(2, 3)), (2, 3, 0, 1))   # (K,K,Cin,Cout)
        w_mat = w_f.reshape(K * K * Cin, Cout).T                      # (Cout, K*K*Cin)
        inputs += [w_mat, b.reshape(Cout, 1)]
        in_specs += [pl.BlockSpec((Cout, K * K * Cin), lambda n: (0, 0)),
                     pl.BlockSpec((Cout, 1), lambda n: (0, 0))]

    d_last = dims[-1]
    c_last, s_out = d_last["Cout"], d_last["OH"] * d_last["OW"]

    cin_max = max(d["Cin"] for d in dims)
    hpwp_max = max(d["Hp"] * d["Wp"] for d in dims)
    kkc_max = max(d["KKC"] for d in dims)
    l_max = max(d["L"] for d in dims)

    out = pl.pallas_call(
        _make_fused_kernel(n_lin, dims),
        out_shape=jax.ShapeDtypeStruct((B, c_last, s_out), jnp.float32),
        grid=(B,),
        in_specs=in_specs,
        out_specs=pl.BlockSpec((1, c_last, s_out), lambda n: (n, 0, 0)),
        scratch_shapes=[pltpu.VMEM((cin_max, hpwp_max), jnp.float32),
                        pltpu.VMEM((kkc_max, l_max), jnp.float32)],
        compiler_params=pltpu.CompilerParams(
            dimension_semantics=("parallel",)),
    )(*inputs)
    return out.reshape(B, c_last, d_last["OH"], d_last["OW"])


# --------------------------- pure-JAX reference -------------------------------

def _ref_conv_transpose2d(x, w, b, s):
    # scatter formulation, identical to torch.nn.ConvTranspose2d (padding=0)
    N, Cin, H, W = x.shape
    Cout, K = w.shape[1], w.shape[2]
    OH, OW = (H - 1) * s + K, (W - 1) * s + K
    out = jnp.zeros((N, Cout, OH, OW), jnp.float32)
    for kh in range(K):
        for kw in range(K):
            y = jnp.einsum('nchw,co->nohw', x, w[:, :, kh, kw], precision='highest')
            out = out.at[:, :, kh:kh + (H - 1) * s + 1:s,
                         kw:kw + (W - 1) * s + 1:s].add(y)
    return out + b[None, :, None, None]


def ref_forward(x, params, cfg):
    out = x
    for (w, b) in params["lin"]:
        out = jnp.maximum(jnp.dot(out, w, precision='highest') + b, 0.0)
    if params["lin"]:
        out = out.reshape(-1, cfg["conv_channels"][0], *cfg["fm0"])
    n_conv = len(params["conv"])
    for l, (w, b) in enumerate(params["conv"]):
        out = _ref_conv_transpose2d(out, w, b, cfg["strides"][l])
        if l != n_conv - 1:
            out = jnp.maximum(out, 0.0)
    return out


# ------------------------------------ main ------------------------------------

if __name__ == "__main__":
    # Config 1 (module-consistent small shapes): shape_out=(16,16), k=5, stride=1,
    # conv_channels=[8,8,4,1], linear_channels=[32]
    #   -> fm0=(4,4), n_conv_in=128, x: (2, 32), output: (2, 1, 16, 16)
    cfg = make_cfg((16, 16), 5, 1, [8, 8, 4, 1], [32])
    k_x, k_p = jax.random.split(jax.random.PRNGKey(0))
    params = init_params(k_p, cfg)
    x = jax.random.normal(k_x, (2, cfg["lin_channels"][0]), jnp.float32)

    y = jax.block_until_ready(transposed_cnn_forward_pallas(x, params, cfg))
    assert y.shape == (2, 1, 16, 16), y.shape
    np.testing.assert_allclose(np.asarray(y),
                               np.asarray(ref_forward(x, params, cfg)),
                               rtol=1e-2, atol=1e-2)

    # Config 2: exercises the stride=2 (zero-dilation) path.
    #   shape_out=(11,11), k=3, stride=2, conv_channels=[4,3,2], linear=[16]
    cfg2 = make_cfg((11, 11), 3, 2, [4, 3, 2], [16])
    k_x2, k_p2 = jax.random.split(jax.random.PRNGKey(1))
    params2 = init_params(k_p2, cfg2)
    x2 = jax.random.normal(k_x2, (2, cfg2["lin_channels"][0]), jnp.float32)

    y2 = jax.block_until_ready(transposed_cnn_forward_pallas(x2, params2, cfg2))
    assert y2.shape == (2, 2, 11, 11), y2.shape
    np.testing.assert_allclose(np.asarray(y2),
                               np.asarray(ref_forward(x2, params2, cfg2)),
                               rtol=1e-2, atol=1e-2)

    print("KERNEL_OK")
</pallas_src>

<mosaic_0001>
module attributes {stable_mosaic.version = 11 : i64} {
  func.func @kernel(%arg0: i32, %arg1: memref<1x1x32xf32, #tpu.memory_space<vmem>>, %arg2: memref<32x128xf32, #tpu.memory_space<vmem>>, %arg3: memref<1x128xf32, #tpu.memory_space<vmem>>, %arg4: memref<8x200xf32, #tpu.memory_space<vmem>>, %arg5: memref<8x1xf32, #tpu.memory_space<vmem>>, %arg6: memref<4x200xf32, #tpu.memory_space<vmem>>, %arg7: memref<4x1xf32, #tpu.memory_space<vmem>>, %arg8: memref<1x100xf32, #tpu.memory_space<vmem>>, %arg9: memref<1x1xf32, #tpu.memory_space<vmem>>, %arg10: memref<1x1x256xf32, #tpu.memory_space<vmem>>, %arg11: memref<8x400xf32, #tpu.memory_space<vmem>>, %arg12: memref<200x316xf32, #tpu.memory_space<vmem>>) attributes {dimension_semantics = [#tpu.dimension_semantics<parallel>], iteration_bounds = array<i64: 2>, scalar_prefetch = 0 : i64, scratch_operands = 2 : i64, tpu.core_type = #tpu.core_type<tc>, window_params = [{transform_indices = @transform_0, window_bounds = array<i64: 1, 1, 32>}, {pipeline_mode = #tpu.pipeline_mode<synchronous>, transform_indices = @transform_1, window_bounds = array<i64: 32, 128>}, {pipeline_mode = #tpu.pipeline_mode<synchronous>, transform_indices = @transform_2, window_bounds = array<i64: 1, 128>}, {pipeline_mode = #tpu.pipeline_mode<synchronous>, transform_indices = @transform_3, window_bounds = array<i64: 8, 200>}, {pipeline_mode = #tpu.pipeline_mode<synchronous>, transform_indices = @transform_4, window_bounds = array<i64: 8, 1>}, {pipeline_mode = #tpu.pipeline_mode<synchronous>, transform_indices = @transform_5, window_bounds = array<i64: 4, 200>}, {pipeline_mode = #tpu.pipeline_mode<synchronous>, transform_indices = @transform_6, window_bounds = array<i64: 4, 1>}, {pipeline_mode = #tpu.pipeline_mode<synchronous>, transform_indices = @transform_7, window_bounds = array<i64: 1, 100>}, {pipeline_mode = #tpu.pipeline_mode<synchronous>, transform_indices = @transform_8, window_bounds = array<i64: 1, 1>}, {transform_indices = @transform_9, window_bounds = array<i64: 1, 1, 256>}]} {
    %c0 = arith.constant 0 : index
    %c0_0 = arith.constant 0 : index
    %c0_1 = arith.constant 0 : index
    %0 = vector.load %arg1[%c0, %c0_0, %c0_1] : memref<1x1x32xf32, #tpu.memory_space<vmem>>, vector<1x1x32xf32>
    %1 = vector.shape_cast %0 : vector<1x1x32xf32> to vector<1x32xf32>
    %c0_2 = arith.constant 0 : index
    %c0_3 = arith.constant 0 : index
    %2 = vector.load %arg2[%c0_2, %c0_3] : memref<32x128xf32, #tpu.memory_space<vmem>>, vector<32x128xf32>
    %cst = arith.constant dense<0.000000e+00> : vector<1x128xf32>
    %3 = tpu.matmul %1, %2, %cst {dimension_numbers = #tpu.dot_dimension_numbers<[1], [0], [0], [1], [0, 0, 1, 1], [], []>} : vector<1x32xf32>, vector<32x128xf32>, vector<1x128xf32> -> vector<1x128xf32>
    %c0_4 = arith.constant 0 : index
    %c0_5 = arith.constant 0 : index
    %4 = vector.load %arg3[%c0_4, %c0_5] : memref<1x128xf32, #tpu.memory_space<vmem>>, vector<1x128xf32>
    %5 = arith.addf %3, %4 : vector<1x128xf32>
    %cst_6 = arith.constant 0.000000e+00 : f32
    %6 = vector.broadcast %cst_6 : f32 to vector<1x128xf32>
    %7 = arith.maximumf %5, %6 : vector<1x128xf32>
    %cst_7 = arith.constant 0.000000e+00 : f32
    %8 = vector.broadcast %cst_7 : f32 to vector<8x400xf32>
    %c0_8 = arith.constant 0 : index
    %c0_9 = arith.constant 0 : index
    %9 = vector.load %arg11[%c0_8, %c0_9] : memref<8x400xf32, #tpu.memory_space<vmem>>, vector<8x400xf32>
    tpu.vector_store %arg11[%c0_8, %c0_9], %8 {strides = array<i32>} : memref<8x400xf32, #tpu.memory_space<vmem>>, vector<8x400xf32>,
    %10 = vector.extract_strided_slice %7 {offsets = [0, 0], sizes = [1, 4], strides = [1, 1]} : vector<1x128xf32> to vector<1x4xf32>
    %c0_10 = arith.constant 0 : index
    %c52 = arith.constant 52 : index
    %11 = vector.load %arg11[%c0_10, %c52] : memref<8x400xf32, #tpu.memory_space<vmem>>, vector<1x4xf32>
    tpu.vector_store %arg11[%c0_10, %c52], %10 {strides = array<i32>} : memref<8x400xf32, #tpu.memory_space<vmem>>, vector<1x4xf32>,
    %12 = vector.extract_strided_slice %7 {offsets = [0, 16], sizes = [1, 4], strides = [1, 1]} : vector<1x128xf32> to vector<1x4xf32>
    %c1 = arith.constant 1 : index
    %c52_11 = arith.constant 52 : index
    %13 = vector.load %arg11[%c1, %c52_11] : memref<8x400xf32, #tpu.memory_space<vmem>>, vector<1x4xf32>
    tpu.vector_store %arg11[%c1, %c52_11], %12 {strides = array<i32>} : memref<8x400xf32, #tpu.memory_space<vmem>>, vector<1x4xf32>,
    %14 = vector.extract_strided_slice %7 {offsets = [0, 32], sizes = [1, 4], strides = [1, 1]} : vector<1x128xf32> to vector<1x4xf32>
    %c2 = arith.constant 2 : index
    %c52_12 = arith.constant 52 : index
    %15 = vector.load %arg11[%c2, %c52_12] : memref<8x400xf32, #tpu.memory_space<vmem>>, vector<1x4xf32>
    tpu.vector_store %arg11[%c2, %c52_12], %14 {strides = array<i32>} : memref<8x400xf32, #tpu.memory_space<vmem>>, vector<1x4xf32>,
    %16 = vector.extract_strided_slice %7 {offsets = [0, 48], sizes = [1, 4], strides = [1, 1]} : vector<1x128xf32> to vector<1x4xf32>
    %c3 = arith.constant 3 : index
    %c52_13 = arith.constant 52 : index
    %17 = vector.load %arg11[%c3, %c52_13] : memref<8x400xf32, #tpu.memory_space<vmem>>, vector<1x4xf32>
    tpu.vector_store %arg11[%c3, %c52_13], %16 {strides = array<i32>} : memref<8x400xf32, #tpu.memory_space<vmem>>, vector<1x4xf32>,
    %18 = vector.extract_strided_slice %7 {offsets = [0, 64], sizes = [1, 4], strides = [1, 1]} : vector<1x128xf32> to vector<1x4xf32>
    %c4 = arith.constant 4 : index
    %c52_14 = arith.constant 52 : index
    %19 = vector.load %arg11[%c4, %c52_14] : memref<8x400xf32, #tpu.memory_space<vmem>>, vector<1x4xf32>
    tpu.vector_store %arg11[%c4, %c52_14], %18 {strides = array<i32>} : memref<8x400xf32, #tpu.memory_space<vmem>>, vector<1x4xf32>,
    %20 = vector.extract_strided_slice %7 {offsets = [0, 80], sizes = [1, 4], strides = [1, 1]} : vector<1x128xf32> to vector<1x4xf32>
    %c5 = arith.constant 5 : index
    %c52_15 = arith.constant 52 : index
    %21 = vector.load %arg11[%c5, %c52_15] : memref<8x400xf32, #tpu.memory_space<vmem>>, vector<1x4xf32>
    tpu.vector_store %arg11[%c5, %c52_15], %20 {strides = array<i32>} : memref<8x400xf32, #tpu.memory_space<vmem>>, vector<1x4xf32>,
    %22 = vector.extract_strided_slice %7 {offsets = [0, 96], sizes = [1, 4], strides = [1, 1]} : vector<1x128xf32> to vector<1x4xf32>
    %c6 = arith.constant 6 : index
    %c52_16 = arith.constant 52 : index
    %23 = vector.load %arg11[%c6, %c52_16] : memref<8x400xf32, #tpu.memory_space<vmem>>, vector<1x4xf32>
    tpu.vector_store %arg11[%c6, %c52_16], %22 {strides = array<i32>} : memref<8x400xf32, #tpu.memory_space<vmem>>, vector<1x4xf32>,
    %24 = vector.extract_strided_slice %7 {offsets = [0, 112], sizes = [1, 4], strides = [1, 1]} : vector<1x128xf32> to vector<1x4xf32>
    %c7 = arith.constant 7 : index
    %c52_17 = arith.constant 52 : index
    %25 = vector.load %arg11[%c7, %c52_17] : memref<8x400xf32, #tpu.memory_space<vmem>>, vector<1x4xf32>
    tpu.vector_store %arg11[%c7, %c52_17], %24 {strides = array<i32>} : memref<8x400xf32, #tpu.memory_space<vmem>>, vector<1x4xf32>,
    %26 = vector.extract_strided_slice %7 {offsets = [0, 4], sizes = [1, 4], strides = [1, 1]} : vector<1x128xf32> to vector<1x4xf32>
    %c0_18 = arith.constant 0 : index
    %c64 = arith.constant 64 : index
    %27 = vector.load %arg11[%c0_18, %c64] : memref<8x400xf32, #tpu.memory_space<vmem>>, vector<1x4xf32>
    tpu.vector_store %arg11[%c0_18, %c64], %26 {strides = array<i32>} : memref<8x400xf32, #tpu.memory_space<vmem>>, vector<1x4xf32>,
    %28 = vector.extract_strided_slice %7 {offsets = [0, 20], sizes = [1, 4], strides = [1, 1]} : vector<1x128xf32> to vector<1x4xf32>
    %c1_19 = arith.constant 1 : index
    %c64_20 = arith.constant 64 : index
    %29 = vector.load %arg11[%c1_19, %c64_20] : memref<8x400xf32, #tpu.memory_space<vmem>>, vector<1x4xf32>
    tpu.vector_store %arg11[%c1_19, %c64_20], %28 {strides = array<i32>} : memref<8x400xf32, #tpu.memory_space<vmem>>, vector<1x4xf32>,
    %30 = vector.extract_strided_slice %7 {offsets = [0, 36], sizes = [1, 4], strides = [1, 1]} : vector<1x128xf32> to vector<1x4xf32>
    %c2_21 = arith.constant 2 : index
    %c64_22 = arith.constant 64 : index
    %31 = vector.load %arg11[%c2_21, %c64_22] : memref<8x400xf32, #tpu.memory_space<vmem>>, vector<1x4xf32>
    tpu.vector_store %arg11[%c2_21, %c64_22], %30 {strides = array<i32>} : memref<8x400xf32, #tpu.memory_space<vmem>>, vector<1x4xf32>,
    %32 = vector.extract_strided_slice %7 {offsets = [0, 52], sizes = [1, 4], strides = [1, 1]} : vector<1x128xf32> to vector<1x4xf32>
    %c3_23 = arith.constant 3 : index
    %c64_24 = arith.constant 64 : index
    %33 = vector.load %arg11[%c3_23, %c64_24] : memref<8x400xf32, #tpu.memory_space<vmem>>, vector<1x4xf32>
    tpu.vector_store %arg11[%c3_23, %c64_24], %32 {strides = array<i32>} : memref<8x400xf32, #tpu.memory_space<vmem>>, vector<1x4xf32>,
    %34 = vector.extract_strided_slice %7 {offsets = [0, 68], sizes = [1, 4], strides = [1, 1]} : vector<1x128xf32> to vector<1x4xf32>
    %c4_25 = arith.constant 4 : index
    %c64_26 = arith.constant 64 : index
    %35 = vector.load %arg11[%c4_25, %c64_26] : memref<8x400xf32, #tpu.memory_space<vmem>>, vector<1x4xf32>
    tpu.vector_store %arg11[%c4_25, %c64_26], %34 {strides = array<i32>} : memref<8x400xf32, #tpu.memory_space<vmem>>, vector<1x4xf32>,
    %36 = vector.extract_strided_slice %7 {offsets = [0, 84], sizes = [1, 4], strides = [1, 1]} : vector<1x128xf32> to vector<1x4xf32>
    %c5_27 = arith.constant 5 : index
    %c64_28 = arith.constant 64 : index
    %37 = vector.load %arg11[%c5_27, %c64_28] : memref<8x400xf32, #tpu.memory_space<vmem>>, vector<1x4xf32>
    tpu.vector_store %arg11[%c5_27, %c64_28], %36 {strides = array<i32>} : memref<8x400xf32, #tpu.memory_space<vmem>>, vector<1x4xf32>,
    %38 = vector.extract_strided_slice %7 {offsets = [0, 100], sizes = [1, 4], strides = [1, 1]} : vector<1x128xf32> to vector<1x4xf32>
    %c6_29 = arith.constant 6 : index
    %c64_30 = arith.constant 64 : index
    %39 = vector.load %arg11[%c6_29, %c64_30] : memref<8x400xf32, #tpu.memory_space<vmem>>, vector<1x4xf32>
    tpu.vector_store %arg11[%c6_29, %c64_30], %38 {strides = array<i32>} : memref<8x400xf32, #tpu.memory_space<vmem>>, vector<1x4xf32>,
    %40 = vector.extract_strided_slice %7 {offsets = [0, 116], sizes = [1, 4], strides = [1, 1]} : vector<1x128xf32> to vector<1x4xf32>
    %c7_31 = arith.constant 7 : index
    %c64_32 = arith.constant 64 : index
    %41 = vector.load %arg11[%c7_31, %c64_32] : memref<8x400xf32, #tpu.memory_space<vmem>>, vector<1x4xf32>
    tpu.vector_store %arg11[%c7_31, %c64_32], %40 {strides = array<i32>} : memref<8x400xf32, #tpu.memory_space<vmem>>, vector<1x4xf32>,
    %42 = vector.extract_strided_slice %7 {offsets = [0, 8], sizes = [1, 4], strides = [1, 1]} : vector<1x128xf32> to vector<1x4xf32>
    %c0_33 = arith.constant 0 : index
    %c76 = arith.constant 76 : index
    %43 = vector.load %arg11[%c0_33, %c76] : memref<8x400xf32, #tpu.memory_space<vmem>>, vector<1x4xf32>
    tpu.vector_store %arg11[%c0_33, %c76], %42 {strides = array<i32>} : memref<8x400xf32, #tpu.memory_space<vmem>>, vector<1x4xf32>,
    %44 = vector.extract_strided_slice %7 {offsets = [0, 24], sizes = [1, 4], strides = [1, 1]} : vector<1x128xf32> to vector<1x4xf32>
    %c1_34 = arith.constant 1 : index
    %c76_35 = arith.constant 76 : index
    %45 = vector.load %arg11[%c1_34, %c76_35] : memref<8x400xf32, #tpu.memory_space<vmem>>, vector<1x4xf32>
    tpu.vector_store %arg11[%c1_34, %c76_35], %44 {strides = array<i32>} : memref<8x400xf32, #tpu.memory_space<vmem>>, vector<1x4xf32>,
    %46 = vector.extract_strided_slice %7 {offsets = [0, 40], sizes = [1, 4], strides = [1, 1]} : vector<1x128xf32> to vector<1x4xf32>
    %c2_36 = arith.constant 2 : index
    %c76_37 = arith.constant 76 : index
    %47 = vector.load %arg11[%c2_36, %c76_37] : memref<8x400xf32, #tpu.memory_space<vmem>>, vector<1x4xf32>
    tpu.vector_store %arg11[%c2_36, %c76_37], %46 {strides = array<i32>} : memref<8x400xf32, #tpu.memory_space<vmem>>, vector<1x4xf32>,
    %48 = vector.extract_strided_slice %7 {offsets = [0, 56], sizes = [1, 4], strides = [1, 1]} : vector<1x128xf32> to vector<1x4xf32>
    %c3_38 = arith.constant 3 : index
    %c76_39 = arith.constant 76 : index
    %49 = vector.load %arg11[%c3_38, %c76_39] : memref<8x400xf32, #tpu.memory_space<vmem>>, vector<1x4xf32>
    tpu.vector_store %arg11[%c3_38, %c76_39], %48 {strides = array<i32>} : memref<8x400xf32, #tpu.memory_space<vmem>>, vector<1x4xf32>,
    %50 = vector.extract_strided_slice %7 {offsets = [0, 72], sizes = [1, 4], strides = [1, 1]} : vector<1x128xf32> to vector<1x4xf32>
    %c4_40 = arith.constant 4 : index
    %c76_41 = arith.constant 76 : index
    %51 = vector.load %arg11[%c4_40, %c76_41] : memref<8x400xf32, #tpu.memory_space<vmem>>, vector<1x4xf32>
    tpu.vector_store %arg11[%c4_40, %c76_41], %50 {strides = array<i32>} : memref<8x400xf32, #tpu.memory_space<vmem>>, vector<1x4xf32>,
    %52 = vector.extract_strided_slice %7 {offsets = [0, 88], sizes = [1, 4], strides = [1, 1]} : vector<1x128xf32> to vector<1x4xf32>
    %c5_42 = arith.constant 5 : index
    %c76_43 = arith.constant 76 : index
    %53 = vector.load %arg11[%c5_42, %c76_43] : memref<8x400xf32, #tpu.memory_space<vmem>>, vector<1x4xf32>
    tpu.vector_store %arg11[%c5_42, %c76_43], %52 {strides = array<i32>} : memref<8x400xf32, #tpu.memory_space<vmem>>, vector<1x4xf32>,
    %54 = vector.extract_strided_slice %7 {offsets = [0, 104], sizes = [1, 4], strides = [1, 1]} : vector<1x128xf32> to vector<1x4xf32>
    %c6_44 = arith.constant 6 : index
    %c76_45 = arith.constant 76 : index
    %55 = vector.load %arg11[%c6_44, %c76_45] : memref<8x400xf32, #tpu.memory_space<vmem>>, vector<1x4xf32>
    tpu.vector_store %arg11[%c6_44, %c76_45], %54 {strides = array<i32>} : memref<8x400xf32, #tpu.memory_space<vmem>>, vector<1x4xf32>,
    %56 = vector.extract_strided_slice %7 {offsets = [0, 120], sizes = [1, 4], strides = [1, 1]} : vector<1x128xf32> to vector<1x4xf32>
    %c7_46 = arith.constant 7 : index
    %c76_47 = arith.constant 76 : index
    %57 = vector.load %arg11[%c7_46, %c76_47] : memref<8x400xf32, #tpu.memory_space<vmem>>, vector<1x4xf32>
    tpu.vector_store %arg11[%c7_46, %c76_47], %56 {strides = array<i32>} : memref<8x400xf32, #tpu.memory_space<vmem>>, vector<1x4xf32>,
    %58 = vector.extract_strided_slice %7 {offsets = [0, 12], sizes = [1, 4], strides = [1, 1]} : vector<1x128xf32> to vector<1x4xf32>
    %c0_48 = arith.constant 0 : index
    %c88 = arith.constant 88 : index
    %59 = vector.load %arg11[%c0_48, %c88] : memref<8x400xf32, #tpu.memory_space<vmem>>, vector<1x4xf32>
    tpu.vector_store %arg11[%c0_48, %c88], %58 {strides = array<i32>} : memref<8x400xf32, #tpu.memory_space<vmem>>, vector<1x4xf32>,
    %60 = vector.extract_strided_slice %7 {offsets = [0, 28], sizes = [1, 4], strides = [1, 1]} : vector<1x128xf32> to vector<1x4xf32>
    %c1_49 = arith.constant 1 : index
    %c88_50 = arith.constant 88 : index
    %61 = vector.load %arg11[%c1_49, %c88_50] : memref<8x400xf32, #tpu.memory_space<vmem>>, vector<1x4xf32>
    tpu.vector_store %arg11[%c1_49, %c88_50], %60 {strides = array<i32>} : memref<8x400xf32, #tpu.memory_space<vmem>>, vector<1x4xf32>,
    %62 = vector.extract_strided_slice %7 {offsets = [0, 44], sizes = [1, 4], strides = [1, 1]} : vector<1x128xf32> to vector<1x4xf32>
    %c2_51 = arith.constant 2 : index
    %c88_52 = arith.constant 88 : index
    %63 = vector.load %arg11[%c2_51, %c88_52] : memref<8x400xf32, #tpu.memory_space<vmem>>, vector<1x4xf32>
    tpu.vector_store %arg11[%c2_51, %c88_52], %62 {strides = array<i32>} : memref<8x400xf32, #tpu.memory_space<vmem>>, vector<1x4xf32>,
    %64 = vector.extract_strided_slice %7 {offsets = [0, 60], sizes = [1, 4], strides = [1, 1]} : vector<1x128xf32> to vector<1x4xf32>
    %c3_53 = arith.constant 3 : index
    %c88_54 = arith.constant 88 : index
    %65 = vector.load %arg11[%c3_53, %c88_54] : memref<8x400xf32, #tpu.memory_space<vmem>>, vector<1x4xf32>
    tpu.vector_store %arg11[%c3_53, %c88_54], %64 {strides = array<i32>} : memref<8x400xf32, #tpu.memory_space<vmem>>, vector<1x4xf32>,
    %66 = vector.extract_strided_slice %7 {offsets = [0, 76], sizes = [1, 4], strides = [1, 1]} : vector<1x128xf32> to vector<1x4xf32>
    %c4_55 = arith.constant 4 : index
    %c88_56 = arith.constant 88 : index
    %67 = vector.load %arg11[%c4_55, %c88_56] : memref<8x400xf32, #tpu.memory_space<vmem>>, vector<1x4xf32>
    tpu.vector_store %arg11[%c4_55, %c88_56], %66 {strides = array<i32>} : memref<8x400xf32, #tpu.memory_space<vmem>>, vector<1x4xf32>,
    %68 = vector.extract_strided_slice %7 {offsets = [0, 92], sizes = [1, 4], strides = [1, 1]} : vector<1x128xf32> to vector<1x4xf32>
    %c5_57 = arith.constant 5 : index
    %c88_58 = arith.constant 88 : index
    %69 = vector.load %arg11[%c5_57, %c88_58] : memref<8x400xf32, #tpu.memory_space<vmem>>, vector<1x4xf32>
    tpu.vector_store %arg11[%c5_57, %c88_58], %68 {strides = array<i32>} : memref<8x400xf32, #tpu.memory_space<vmem>>, vector<1x4xf32>,
    %70 = vector.extract_strided_slice %7 {offsets = [0, 108], sizes = [1, 4], strides = [1, 1]} : vector<1x128xf32> to vector<1x4xf32>
    %c6_59 = arith.constant 6 : index
    %c88_60 = arith.constant 88 : index
    %71 = vector.load %arg11[%c6_59, %c88_60] : memref<8x400xf32, #tpu.memory_space<vmem>>, vector<1x4xf32>
    tpu.vector_store %arg11[%c6_59, %c88_60], %70 {strides = array<i32>} : memref<8x400xf32, #tpu.memory_space<vmem>>, vector<1x4xf32>,
    %72 = vector.extract_strided_slice %7 {offsets = [0, 124], sizes = [1, 4], strides = [1, 1]} : vector<1x128xf32> to vector<1x4xf32>
    %c7_61 = arith.constant 7 : index
    %c88_62 = arith.constant 88 : index
    %73 = vector.load %arg11[%c7_61, %c88_62] : memref<8x400xf32, #tpu.memory_space<vmem>>, vector<1x4xf32>
    tpu.vector_store %arg11[%c7_61, %c88_62], %72 {strides = array<i32>} : memref<8x400xf32, #tpu.memory_space<vmem>>, vector<1x4xf32>,
    %c0_63 = arith.constant 0 : index
    %c0_64 = arith.constant 0 : index
    %74 = vector.load %arg11[%c0_63, %c0_64] : memref<8x400xf32, #tpu.memory_space<vmem>>, vector<8x92xf32>
    %c0_65 = arith.constant 0 : index
    %c0_66 = arith.constant 0 : index
    %75 = vector.load %arg12[%c0_65, %c0_66] : memref<200x316xf32, #tpu.memory_space<vmem>>, vector<8x92xf32>
    tpu.vector_store %arg12[%c0_65, %c0_66], %74 {strides = array<i32>} : memref<200x316xf32, #tpu.memory_space<vmem>>, vector<8x92xf32>,
    %c0_67 = arith.constant 0 : index
    %c1_68 = arith.constant 1 : index
    %76 = vector.load %arg11[%c0_67, %c1_68] : memref<8x400xf32, #tpu.memory_space<vmem>>, vector<8x92xf32>
    %c8 = arith.constant 8 : index
    %c0_69 = arith.constant 0 : index
    %77 = vector.load %arg12[%c8, %c0_69] : memref<200x316xf32, #tpu.memory_space<vmem>>, vector<8x92xf32>
    tpu.vector_store %arg12[%c8, %c0_69], %76 {strides = array<i32>} : memref<200x316xf32, #tpu.memory_space<vmem>>, vector<8x92xf32>,
    %c0_70 = arith.constant 0 : index
    %c2_71 = arith.constant 2 : index
    %78 = vector.load %arg11[%c0_70, %c2_71] : memref<8x400xf32, #tpu.memory_space<vmem>>, vector<8x92xf32>
    %c16 = arith.constant 16 : index
    %c0_72 = arith.constant 0 : index
    %79 = vector.load %arg12[%c16, %c0_72] : memref<200x316xf32, #tpu.memory_space<vmem>>, vector<8x92xf32>
    tpu.vector_store %arg12[%c16, %c0_72], %78 {strides = array<i32>} : memref<200x316xf32, #tpu.memory_space<vmem>>, vector<8x92xf32>,
    %c0_73 = arith.constant 0 : index
    %c3_74 = arith.constant 3 : index
    %80 = vector.load %arg11[%c0_73, %c3_74] : memref<8x400xf32, #tpu.memory_space<vmem>>, vector<8x92xf32>
    %c24 = arith.constant 24 : index
    %c0_75 = arith.constant 0 : index
    %81 = vector.load %arg12[%c24, %c0_75] : memref<200x316xf32, #tpu.memory_space<vmem>>, vector<8x92xf32>
    tpu.vector_store %arg12[%c24, %c0_75], %80 {strides = array<i32>} : memref<200x316xf32, #tpu.memory_space<vmem>>, vector<8x92xf32>,
    %c0_76 = arith.constant 0 : index
    %c4_77 = arith.constant 4 : index
    %82 = vector.load %arg11[%c0_76, %c4_77] : memref<8x400xf32, #tpu.memory_space<vmem>>, vector<8x92xf32>
    %c32 = arith.constant 32 : index
    %c0_78 = arith.constant 0 : index
    %83 = vector.load %arg12[%c32, %c0_78] : memref<200x316xf32, #tpu.memory_space<vmem>>, vector<8x92xf32>
    tpu.vector_store %arg12[%c32, %c0_78], %82 {strides = array<i32>} : memref<200x316xf32, #tpu.memory_space<vmem>>, vector<8x92xf32>,
    %c0_79 = arith.constant 0 : index
    %c12 = arith.constant 12 : index
    %84 = vector.load %arg11[%c0_79, %c12] : memref<8x400xf32, #tpu.memory_space<vmem>>, vector<8x92xf32>
    %c40 = arith.constant 40 : index
    %c0_80 = arith.constant 0 : index
    %85 = vector.load %arg12[%c40, %c0_80] : memref<200x316xf32, #tpu.memory_space<vmem>>, vector<8x92xf32>
    tpu.vector_store %arg12[%c40, %c0_80], %84 {strides = array<i32>} : memref<200x316xf32, #tpu.memory_space<vmem>>, vector<8x92xf32>,
    %c0_81 = arith.constant 0 : index
    %c13 = arith.constant 13 : index
    %86 = vector.load %arg11[%c0_81, %c13] : memref<8x400xf32, #tpu.memory_space<vmem>>, vector<8x92xf32>
    %c48 = arith.constant 48 : index
    %c0_82 = arith.constant 0 : index
    %87 = vector.load %arg12[%c48, %c0_82] : memref<200x316xf32, #tpu.memory_space<vmem>>, vector<8x92xf32>
    tpu.vector_store %arg12[%c48, %c0_82], %86 {strides = array<i32>} : memref<200x316xf32, #tpu.memory_space<vmem>>, vector<8x92xf32>,
    %c0_83 = arith.constant 0 : index
    %c14 = arith.constant 14 : index
    %88 = vector.load %arg11[%c0_83, %c14] : memref<8x400xf32, #tpu.memory_space<vmem>>, vector<8x92xf32>
    %c56 = arith.constant 56 : index
    %c0_84 = arith.constant 0 : index
    %89 = vector.load %arg12[%c56, %c0_84] : memref<200x316xf32, #tpu.memory_space<vmem>>, vector<8x92xf32>
    tpu.vector_store %arg12[%c56, %c0_84], %88 {strides = array<i32>} : memref<200x316xf32, #tpu.memory_space<vmem>>, vector<8x92xf32>,
    %c0_85 = arith.constant 0 : index
    %c15 = arith.constant 15 : index
    %90 = vector.load %arg11[%c0_85, %c15] : memref<8x400xf32, #tpu.memory_space<vmem>>, vector<8x92xf32>
    %c64_86 = arith.constant 64 : index
    %c0_87 = arith.constant 0 : index
    %91 = vector.load %arg12[%c64_86, %c0_87] : memref<200x316xf32, #tpu.memory_space<vmem>>, vector<8x92xf32>
    tpu.vector_store %arg12[%c64_86, %c0_87], %90 {strides = array<i32>} : memref<200x316xf32, #tpu.memory_space<vmem>>, vector<8x92xf32>,
    %c0_88 = arith.constant 0 : index
    %c16_89 = arith.constant 16 : index
    %92 = vector.load %arg11[%c0_88, %c16_89] : memref<8x400xf32, #tpu.memory_space<vmem>>, vector<8x92xf32>
    %c72 = arith.constant 72 : index
    %c0_90 = arith.constant 0 : index
    %93 = vector.load %arg12[%c72, %c0_90] : memref<200x316xf32, #tpu.memory_space<vmem>>, vector<8x92xf32>
    tpu.vector_store %arg12[%c72, %c0_90], %92 {strides = array<i32>} : memref<200x316xf32, #tpu.memory_space<vmem>>, vector<8x92xf32>,
    %c0_91 = arith.constant 0 : index
    %c24_92 = arith.constant 24 : index
    %94 = vector.load %arg11[%c0_91, %c24_92] : memref<8x400xf32, #tpu.memory_space<vmem>>, vector<8x92xf32>
    %c80 = arith.constant 80 : index
    %c0_93 = arith.constant 0 : index
    %95 = vector.load %arg12[%c80, %c0_93] : memref<200x316xf32, #tpu.memory_space<vmem>>, vector<8x92xf32>
    tpu.vector_store %arg12[%c80, %c0_93], %94 {strides = array<i32>} : memref<200x316xf32, #tpu.memory_space<vmem>>, vector<8x92xf32>,
    %c0_94 = arith.constant 0 : index
    %c25 = arith.constant 25 : index
    %96 = vector.load %arg11[%c0_94, %c25] : memref<8x400xf32, #tpu.memory_space<vmem>>, vector<8x92xf32>
    %c88_95 = arith.constant 88 : index
    %c0_96 = arith.constant 0 : index
    %97 = vector.load %arg12[%c88_95, %c0_96] : memref<200x316xf32, #tpu.memory_space<vmem>>, vector<8x92xf32>
    tpu.vector_store %arg12[%c88_95, %c0_96], %96 {strides = array<i32>} : memref<200x316xf32, #tpu.memory_space<vmem>>, vector<8x92xf32>,
    %c0_97 = arith.constant 0 : index
    %c26 = arith.constant 26 : index
    %98 = vector.load %arg11[%c0_97, %c26] : memref<8x400xf32, #tpu.memory_space<vmem>>, vector<8x92xf32>
    %c96 = arith.constant 96 : index
    %c0_98 = arith.constant 0 : index
    %99 = vector.load %arg12[%c96, %c0_98] : memref<200x316xf32, #tpu.memory_space<vmem>>, vector<8x92xf32>
    tpu.vector_store %arg12[%c96, %c0_98], %98 {strides = array<i32>} : memref<200x316xf32, #tpu.memory_space<vmem>>, vector<8x92xf32>,
    %c0_99 = arith.constant 0 : index
    %c27 = arith.constant 27 : index
    %100 = vector.load %arg11[%c0_99, %c27] : memref<8x400xf32, #tpu.memory_space<vmem>>, vector<8x92xf32>
    %c104 = arith.constant 104 : index
    %c0_100 = arith.constant 0 : index
    %101 = vector.load %arg12[%c104, %c0_100] : memref<200x316xf32, #tpu.memory_space<vmem>>, vector<8x92xf32>
    tpu.vector_store %arg12[%c104, %c0_100], %100 {strides = array<i32>} : memref<200x316xf32, #tpu.memory_space<vmem>>, vector<8x92xf32>,
    %c0_101 = arith.constant 0 : index
    %c28 = arith.constant 28 : index
    %102 = vector.load %arg11[%c0_101, %c28] : memref<8x400xf32, #tpu.memory_space<vmem>>, vector<8x92xf32>
    %c112 = arith.constant 112 : index
    %c0_102 = arith.constant 0 : index
    %103 = vector.load %arg12[%c112, %c0_102] : memref<200x316xf32, #tpu.memory_space<vmem>>, vector<8x92xf32>
    tpu.vector_store %arg12[%c112, %c0_102], %102 {strides = array<i32>} : memref<200x316xf32, #tpu.memory_space<vmem>>, vector<8x92xf32>,
    %c0_103 = arith.constant 0 : index
    %c36 = arith.constant 36 : index
    %104 = vector.load %arg11[%c0_103, %c36] : memref<8x400xf32, #tpu.memory_space<vmem>>, vector<8x92xf32>
    %c120 = arith.constant 120 : index
    %c0_104 = arith.constant 0 : index
    %105 = vector.load %arg12[%c120, %c0_104] : memref<200x316xf32, #tpu.memory_space<vmem>>, vector<8x92xf32>
    tpu.vector_store %arg12[%c120, %c0_104], %104 {strides = array<i32>} : memref<200x316xf32, #tpu.memory_space<vmem>>, vector<8x92xf32>,
    %c0_105 = arith.constant 0 : index
    %c37 = arith.constant 37 : index
    %106 = vector.load %arg11[%c0_105, %c37] : memref<8x400xf32, #tpu.memory_space<vmem>>, vector<8x92xf32>
    %c128 = arith.constant 128 : index
    %c0_106 = arith.constant 0 : index
    %107 = vector.load %arg12[%c128, %c0_106] : memref<200x316xf32, #tpu.memory_space<vmem>>, vector<8x92xf32>
    tpu.vector_store %arg12[%c128, %c0_106], %106 {strides = array<i32>} : memref<200x316xf32, #tpu.memory_space<vmem>>, vector<8x92xf32>,
    %c0_107 = arith.constant 0 : index
    %c38 = arith.constant 38 : index
    %108 = vector.load %arg11[%c0_107, %c38] : memref<8x400xf32, #tpu.memory_space<vmem>>, vector<8x92xf32>
    %c136 = arith.constant 136 : index
    %c0_108 = arith.constant 0 : index
    %109 = vector.load %arg12[%c136, %c0_108] : memref<200x316xf32, #tpu.memory_space<vmem>>, vector<8x92xf32>
    tpu.vector_store %arg12[%c136, %c0_108], %108 {strides = array<i32>} : memref<200x316xf32, #tpu.memory_space<vmem>>, vector<8x92xf32>,
    %c0_109 = arith.constant 0 : index
    %c39 = arith.constant 39 : index
    %110 = vector.load %arg11[%c0_109, %c39] : memref<8x400xf32, #tpu.memory_space<vmem>>, vector<8x92xf32>
    %c144 = arith.constant 144 : index
    %c0_110 = arith.constant 0 : index
    %111 = vector.load %arg12[%c144, %c0_110] : memref<200x316xf32, #tpu.memory_space<vmem>>, vector<8x92xf32>
    tpu.vector_store %arg12[%c144, %c0_110], %110 {strides = array<i32>} : memref<200x316xf32, #tpu.memory_space<vmem>>, vector<8x92xf32>,
    %c0_111 = arith.constant 0 : index
    %c40_112 = arith.constant 40 : index
    %112 = vector.load %arg11[%c0_111, %c40_112] : memref<8x400xf32, #tpu.memory_space<vmem>>, vector<8x92xf32>
    %c152 = arith.constant 152 : index
    %c0_113 = arith.constant 0 : index
    %113 = vector.load %arg12[%c152, %c0_113] : memref<200x316xf32, #tpu.memory_space<vmem>>, vector<8x92xf32>
    tpu.vector_store %arg12[%c152, %c0_113], %112 {strides = array<i32>} : memref<200x316xf32, #tpu.memory_space<vmem>>, vector<8x92xf32>,
    %c0_114 = arith.constant 0 : index
    %c48_115 = arith.constant 48 : index
    %114 = vector.load %arg11[%c0_114, %c48_115] : memref<8x400xf32, #tpu.memory_space<vmem>>, vector<8x92xf32>
    %c160 = arith.constant 160 : index
    %c0_116 = arith.constant 0 : index
    %115 = vector.load %arg12[%c160, %c0_116] : memref<200x316xf32, #tpu.memory_space<vmem>>, vector<8x92xf32>
    tpu.vector_store %arg12[%c160, %c0_116], %114 {strides = array<i32>} : memref<200x316xf32, #tpu.memory_space<vmem>>, vector<8x92xf32>,
    %c0_117 = arith.constant 0 : index
    %c49 = arith.constant 49 : index
    %116 = vector.load %arg11[%c0_117, %c49] : memref<8x400xf32, #tpu.memory_space<vmem>>, vector<8x92xf32>
    %c168 = arith.constant 168 : index
    %c0_118 = arith.constant 0 : index
    %117 = vector.load %arg12[%c168, %c0_118] : memref<200x316xf32, #tpu.memory_space<vmem>>, vector<8x92xf32>
    tpu.vector_store %arg12[%c168, %c0_118], %116 {strides = array<i32>} : memref<200x316xf32, #tpu.memory_space<vmem>>, vector<8x92xf32>,
    %c0_119 = arith.constant 0 : index
    %c50 = arith.constant 50 : index
    %118 = vector.load %arg11[%c0_119, %c50] : memref<8x400xf32, #tpu.memory_space<vmem>>, vector<8x92xf32>
    %c176 = arith.constant 176 : index
    %c0_120 = arith.constant 0 : index
    %119 = vector.load %arg12[%c176, %c0_120] : memref<200x316xf32, #tpu.memory_space<vmem>>, vector<8x92xf32>
    tpu.vector_store %arg12[%c176, %c0_120], %118 {strides = array<i32>} : memref<200x316xf32, #tpu.memory_space<vmem>>, vector<8x92xf32>,
    %c0_121 = arith.constant 0 : index
    %c51 = arith.constant 51 : index
    %120 = vector.load %arg11[%c0_121, %c51] : memref<8x400xf32, #tpu.memory_space<vmem>>, vector<8x92xf32>
    %c184 = arith.constant 184 : index
    %c0_122 = arith.constant 0 : index
    %121 = vector.load %arg12[%c184, %c0_122] : memref<200x316xf32, #tpu.memory_space<vmem>>, vector<8x92xf32>
    tpu.vector_store %arg12[%c184, %c0_122], %120 {strides = array<i32>} : memref<200x316xf32, #tpu.memory_space<vmem>>, vector<8x92xf32>,
    %c0_123 = arith.constant 0 : index
    %c52_124 = arith.constant 52 : index
    %122 = vector.load %arg11[%c0_123, %c52_124] : memref<8x400xf32, #tpu.memory_space<vmem>>, vector<8x92xf32>
    %c192 = arith.constant 192 : index
    %c0_125 = arith.constant 0 : index
    %123 = vector.load %arg12[%c192, %c0_125] : memref<200x316xf32, #tpu.memory_space<vmem>>, vector<8x92xf32>
    tpu.vector_store %arg12[%c192, %c0_125], %122 {strides = array<i32>} : memref<200x316xf32, #tpu.memory_space<vmem>>, vector<8x92xf32>,
    %c0_126 = arith.constant 0 : index
    %c0_127 = arith.constant 0 : index
    %124 = vector.load %arg4[%c0_126, %c0_127] : memref<8x200xf32, #tpu.memory_space<vmem>>, vector<8x200xf32>
    %c0_128 = arith.constant 0 : index
    %c0_129 = arith.constant 0 : index
    %125 = vector.load %arg12[%c0_128, %c0_129] : memref<200x316xf32, #tpu.memory_space<vmem>>, vector<200x92xf32>
    %cst_130 = arith.constant dense<0.000000e+00> : vector<8x92xf32>
    %126 = tpu.matmul %124, %125, %cst_130 {dimension_numbers = #tpu.dot_dimension_numbers<[1], [0], [0], [1], [0, 0, 1, 1], [], []>} : vector<8x200xf32>, vector<200x92xf32>, vector<8x92xf32> -> vector<8x92xf32>
    %c0_131 = arith.constant 0 : index
    %c0_132 = arith.constant 0 : index
    %127 = vector.load %arg5[%c0_131, %c0_132] : memref<8x1xf32, #tpu.memory_space<vmem>>, vector<8x1xf32>
    %128 = vector.broadcast %127 : vector<8x1xf32> to vector<8x92xf32>
    %129 = arith.addf %126, %128 : vector<8x92xf32>
    %cst_133 = arith.constant 0.000000e+00 : f32
    %130 = vector.broadcast %cst_133 : f32 to vector<8x92xf32>
    %131 = arith.maximumf %129, %130 : vector<8x92xf32>
    %cst_134 = arith.constant 0.000000e+00 : f32
    %132 = vector.broadcast %cst_134 : f32 to vector<8x400xf32>
    %c0_135 = arith.constant 0 : index
    %c0_136 = arith.constant 0 : index
    %133 = vector.load %arg11[%c0_135, %c0_136] : memref<8x400xf32, #tpu.memory_space<vmem>>, vector<8x400xf32>
    tpu.vector_store %arg11[%c0_135, %c0_136], %132 {strides = array<i32>} : memref<8x400xf32, #tpu.memory_space<vmem>>, vector<8x400xf32>,
    %134 = vector.extract_strided_slice %131 {offsets = [0, 0], sizes = [8, 8], strides = [1, 1]} : vector<8x92xf32> to vector<8x8xf32>
    %c0_137 = arith.constant 0 : index
    %c68 = arith.constant 68 : index
    %135 = vector.load %arg11[%c0_137, %c68] : memref<8x400xf32, #tpu.memory_space<vmem>>, vector<8x8xf32>
    tpu.vector_store %arg11[%c0_137, %c68], %134 {strides = array<i32>} : memref<8x400xf32, #tpu.memory_space<vmem>>, vector<8x8xf32>,
    %136 = vector.extract_strided_slice %131 {offsets = [0, 12], sizes = [8, 8], strides = [1, 1]} : vector<8x92xf32> to vector<8x8xf32>
    %c0_138 = arith.constant 0 : index
    %c84 = arith.constant 84 : index
    %137 = vector.load %arg11[%c0_138, %c84] : memref<8x400xf32, #tpu.memory_space<vmem>>, vector<8x8xf32>
    tpu.vector_store %arg11[%c0_138, %c84], %136 {strides = array<i32>} : memref<8x400xf32, #tpu.memory_space<vmem>>, vector<8x8xf32>,
    %138 = vector.extract_strided_slice %131 {offsets = [0, 24], sizes = [8, 8], strides = [1, 1]} : vector<8x92xf32> to vector<8x8xf32>
    %c0_139 = arith.constant 0 : index
    %c100 = arith.constant 100 : index
    %139 = vector.load %arg11[%c0_139, %c100] : memref<8x400xf32, #tpu.memory_space<vmem>>, vector<8x8xf32>
    tpu.vector_store %arg11[%c0_139, %c100], %138 {strides = array<i32>} : memref<8x400xf32, #tpu.memory_space<vmem>>, vector<8x8xf32>,
    %140 = vector.extract_strided_slice %131 {offsets = [0, 36], sizes = [8, 8], strides = [1, 1]} : vector<8x92xf32> to vector<8x8xf32>
    %c0_140 = arith.constant 0 : index
    %c116 = arith.constant 116 : index
    %141 = vector.load %arg11[%c0_140, %c116] : memref<8x400xf32, #tpu.memory_space<vmem>>, vector<8x8xf32>
    tpu.vector_store %arg11[%c0_140, %c116], %140 {strides = array<i32>} : memref<8x400xf32, #tpu.memory_space<vmem>>, vector<8x8xf32>,
    %142 = vector.extract_strided_slice %131 {offsets = [0, 48], sizes = [8, 8], strides = [1, 1]} : vector<8x92xf32> to vector<8x8xf32>
    %c0_141 = arith.constant 0 : index
    %c132 = arith.constant 132 : index
    %143 = vector.load %arg11[%c0_141, %c132] : memref<8x400xf32, #tpu.memory_space<vmem>>, vector<8x8xf32>
    tpu.vector_store %arg11[%c0_141, %c132], %142 {strides = array<i32>} : memref<8x400xf32, #tpu.memory_space<vmem>>, vector<8x8xf32>,
    %144 = vector.extract_strided_slice %131 {offsets = [0, 60], sizes = [8, 8], strides = [1, 1]} : vector<8x92xf32> to vector<8x8xf32>
    %c0_142 = arith.constant 0 : index
    %c148 = arith.constant 148 : index
    %145 = vector.load %arg11[%c0_142, %c148] : memref<8x400xf32, #tpu.memory_space<vmem>>, vector<8x8xf32>
    tpu.vector_store %arg11[%c0_142, %c148], %144 {strides = array<i32>} : memref<8x400xf32, #tpu.memory_space<vmem>>, vector<8x8xf32>,
    %146 = vector.extract_strided_slice %131 {offsets = [0, 72], sizes = [8, 8], strides = [1, 1]} : vector<8x92xf32> to vector<8x8xf32>
    %c0_143 = arith.constant 0 : index
    %c164 = arith.constant 164 : index
    %147 = vector.load %arg11[%c0_143, %c164] : memref<8x400xf32, #tpu.memory_space<vmem>>, vector<8x8xf32>
    tpu.vector_store %arg11[%c0_143, %c164], %146 {strides = array<i32>} : memref<8x400xf32, #tpu.memory_space<vmem>>, vector<8x8xf32>,
    %148 = vector.extract_strided_slice %131 {offsets = [0, 84], sizes = [8, 8], strides = [1, 1]} : vector<8x92xf32> to vector<8x8xf32>
    %c0_144 = arith.constant 0 : index
    %c180 = arith.constant 180 : index
    %149 = vector.load %arg11[%c0_144, %c180] : memref<8x400xf32, #tpu.memory_space<vmem>>, vector<8x8xf32>
    tpu.vector_store %arg11[%c0_144, %c180], %148 {strides = array<i32>} : memref<8x400xf32, #tpu.memory_space<vmem>>, vector<8x8xf32>,
    %c0_145 = arith.constant 0 : index
    %c0_146 = arith.constant 0 : index
    %150 = vector.load %arg11[%c0_145, %c0_146] : memref<8x400xf32, #tpu.memory_space<vmem>>, vector<8x188xf32>
    %c0_147 = arith.constant 0 : index
    %c0_148 = arith.constant 0 : index
    %151 = vector.load %arg12[%c0_147, %c0_148] : memref<200x316xf32, #tpu.memory_space<vmem>>, vector<8x188xf32>
    tpu.vector_store %arg12[%c0_147, %c0_148], %150 {strides = array<i32>} : memref<200x316xf32, #tpu.memory_space<vmem>>, vector<8x188xf32>,
    %c0_149 = arith.constant 0 : index
    %c1_150 = arith.constant 1 : index
    %152 = vector.load %arg11[%c0_149, %c1_150] : memref<8x400xf32, #tpu.memory_space<vmem>>, vector<8x188xf32>
    %c8_151 = arith.constant 8 : index
    %c0_152 = arith.constant 0 : index
    %153 = vector.load %arg12[%c8_151, %c0_152] : memref<200x316xf32, #tpu.memory_space<vmem>>, vector<8x188xf32>
    tpu.vector_store %arg12[%c8_151, %c0_152], %152 {strides = array<i32>} : memref<200x316xf32, #tpu.memory_space<vmem>>, vector<8x188xf32>,
    %c0_153 = arith.constant 0 : index
    %c2_154 = arith.constant 2 : index
    %154 = vector.load %arg11[%c0_153, %c2_154] : memref<8x400xf32, #tpu.memory_space<vmem>>, vector<8x188xf32>
    %c16_155 = arith.constant 16 : index
    %c0_156 = arith.constant 0 : index
    %155 = vector.load %arg12[%c16_155, %c0_156] : memref<200x316xf32, #tpu.memory_space<vmem>>, vector<8x188xf32>
    tpu.vector_store %arg12[%c16_155, %c0_156], %154 {strides = array<i32>} : memref<200x316xf32, #tpu.memory_space<vmem>>, vector<8x188xf32>,
    %c0_157 = arith.constant 0 : index
    %c3_158 = arith.constant 3 : index
    %156 = vector.load %arg11[%c0_157, %c3_158] : memref<8x400xf32, #tpu.memory_space<vmem>>, vector<8x188xf32>
    %c24_159 = arith.constant 24 : index
    %c0_160 = arith.constant 0 : index
    %157 = vector.load %arg12[%c24_159, %c0_160] : memref<200x316xf32, #tpu.memory_space<vmem>>, vector<8x188xf32>
    tpu.vector_store %arg12[%c24_159, %c0_160], %156 {strides = array<i32>} : memref<200x316xf32, #tpu.memory_space<vmem>>, vector<8x188xf32>,
    %c0_161 = arith.constant 0 : index
    %c4_162 = arith.constant 4 : index
    %158 = vector.load %arg11[%c0_161, %c4_162] : memref<8x400xf32, #tpu.memory_space<vmem>>, vector<8x188xf32>
    %c32_163 = arith.constant 32 : index
    %c0_164 = arith.constant 0 : index
    %159 = vector.load %arg12[%c32_163, %c0_164] : memref<200x316xf32, #tpu.memory_space<vmem>>, vector<8x188xf32>
    tpu.vector_store %arg12[%c32_163, %c0_164], %158 {strides = array<i32>} : memref<200x316xf32, #tpu.memory_space<vmem>>, vector<8x188xf32>,
    %c0_165 = arith.constant 0 : index
    %c16_166 = arith.constant 16 : index
    %160 = vector.load %arg11[%c0_165, %c16_166] : memref<8x400xf32, #tpu.memory_space<vmem>>, vector<8x188xf32>
    %c40_167 = arith.constant 40 : index
    %c0_168 = arith.constant 0 : index
    %161 = vector.load %arg12[%c40_167, %c0_168] : memref<200x316xf32, #tpu.memory_space<vmem>>, vector<8x188xf32>
    tpu.vector_store %arg12[%c40_167, %c0_168], %160 {strides = array<i32>} : memref<200x316xf32, #tpu.memory_space<vmem>>, vector<8x188xf32>,
    %c0_169 = arith.constant 0 : index
    %c17 = arith.constant 17 : index
    %162 = vector.load %arg11[%c0_169, %c17] : memref<8x400xf32, #tpu.memory_space<vmem>>, vector<8x188xf32>
    %c48_170 = arith.constant 48 : index
    %c0_171 = arith.constant 0 : index
    %163 = vector.load %arg12[%c48_170, %c0_171] : memref<200x316xf32, #tpu.memory_space<vmem>>, vector<8x188xf32>
    tpu.vector_store %arg12[%c48_170, %c0_171], %162 {strides = array<i32>} : memref<200x316xf32, #tpu.memory_space<vmem>>, vector<8x188xf32>,
    %c0_172 = arith.constant 0 : index
    %c18 = arith.constant 18 : index
    %164 = vector.load %arg11[%c0_172, %c18] : memref<8x400xf32, #tpu.memory_space<vmem>>, vector<8x188xf32>
    %c56_173 = arith.constant 56 : index
    %c0_174 = arith.constant 0 : index
    %165 = vector.load %arg12[%c56_173, %c0_174] : memref<200x316xf32, #tpu.memory_space<vmem>>, vector<8x188xf32>
    tpu.vector_store %arg12[%c56_173, %c0_174], %164 {strides = array<i32>} : memref<200x316xf32, #tpu.memory_space<vmem>>, vector<8x188xf32>,
    %c0_175 = arith.constant 0 : index
    %c19 = arith.constant 19 : index
    %166 = vector.load %arg11[%c0_175, %c19] : memref<8x400xf32, #tpu.memory_space<vmem>>, vector<8x188xf32>
    %c64_176 = arith.constant 64 : index
    %c0_177 = arith.constant 0 : index
    %167 = vector.load %arg12[%c64_176, %c0_177] : memref<200x316xf32, #tpu.memory_space<vmem>>, vector<8x188xf32>
    tpu.vector_store %arg12[%c64_176, %c0_177], %166 {strides = array<i32>} : memref<200x316xf32, #tpu.memory_space<vmem>>, vector<8x188xf32>,
    %c0_178 = arith.constant 0 : index
    %c20 = arith.constant 20 : index
    %168 = vector.load %arg11[%c0_178, %c20] : memref<8x400xf32, #tpu.memory_space<vmem>>, vector<8x188xf32>
    %c72_179 = arith.constant 72 : index
    %c0_180 = arith.constant 0 : index
    %169 = vector.load %arg12[%c72_179, %c0_180] : memref<200x316xf32, #tpu.memory_space<vmem>>, vector<8x188xf32>
    tpu.vector_store %arg12[%c72_179, %c0_180], %168 {strides = array<i32>} : memref<200x316xf32, #tpu.memory_space<vmem>>, vector<8x188xf32>,
    %c0_181 = arith.constant 0 : index
    %c32_182 = arith.constant 32 : index
    %170 = vector.load %arg11[%c0_181, %c32_182] : memref<8x400xf32, #tpu.memory_space<vmem>>, vector<8x188xf32>
    %c80_183 = arith.constant 80 : index
    %c0_184 = arith.constant 0 : index
    %171 = vector.load %arg12[%c80_183, %c0_184] : memref<200x316xf32, #tpu.memory_space<vmem>>, vector<8x188xf32>
    tpu.vector_store %arg12[%c80_183, %c0_184], %170 {strides = array<i32>} : memref<200x316xf32, #tpu.memory_space<vmem>>, vector<8x188xf32>,
    %c0_185 = arith.constant 0 : index
    %c33 = arith.constant 33 : index
    %172 = vector.load %arg11[%c0_185, %c33] : memref<8x400xf32, #tpu.memory_space<vmem>>, vector<8x188xf32>
    %c88_186 = arith.constant 88 : index
    %c0_187 = arith.constant 0 : index
    %173 = vector.load %arg12[%c88_186, %c0_187] : memref<200x316xf32, #tpu.memory_space<vmem>>, vector<8x188xf32>
    tpu.vector_store %arg12[%c88_186, %c0_187], %172 {strides = array<i32>} : memref<200x316xf32, #tpu.memory_space<vmem>>, vector<8x188xf32>,
    %c0_188 = arith.constant 0 : index
    %c34 = arith.constant 34 : index
    %174 = vector.load %arg11[%c0_188, %c34] : memref<8x400xf32, #tpu.memory_space<vmem>>, vector<8x188xf32>
    %c96_189 = arith.constant 96 : index
    %c0_190 = arith.constant 0 : index
    %175 = vector.load %arg12[%c96_189, %c0_190] : memref<200x316xf32, #tpu.memory_space<vmem>>, vector<8x188xf32>
    tpu.vector_store %arg12[%c96_189, %c0_190], %174 {strides = array<i32>} : memref<200x316xf32, #tpu.memory_space<vmem>>, vector<8x188xf32>,
    %c0_191 = arith.constant 0 : index
    %c35 = arith.constant 35 : index
    %176 = vector.load %arg11[%c0_191, %c35] : memref<8x400xf32, #tpu.memory_space<vmem>>, vector<8x188xf32>
    %c104_192 = arith.constant 104 : index
    %c0_193 = arith.constant 0 : index
    %177 = vector.load %arg12[%c104_192, %c0_193] : memref<200x316xf32, #tpu.memory_space<vmem>>, vector<8x188xf32>
    tpu.vector_store %arg12[%c104_192, %c0_193], %176 {strides = array<i32>} : memref<200x316xf32, #tpu.memory_space<vmem>>, vector<8x188xf32>,
    %c0_194 = arith.constant 0 : index
    %c36_195 = arith.constant 36 : index
    %178 = vector.load %arg11[%c0_194, %c36_195] : memref<8x400xf32, #tpu.memory_space<vmem>>, vector<8x188xf32>
    %c112_196 = arith.constant 112 : index
    %c0_197 = arith.constant 0 : index
    %179 = vector.load %arg12[%c112_196, %c0_197] : memref<200x316xf32, #tpu.memory_space<vmem>>, vector<8x188xf32>
    tpu.vector_store %arg12[%c112_196, %c0_197], %178 {strides = array<i32>} : memref<200x316xf32, #tpu.memory_space<vmem>>, vector<8x188xf32>,
    %c0_198 = arith.constant 0 : index
    %c48_199 = arith.constant 48 : index
    %180 = vector.load %arg11[%c0_198, %c48_199] : memref<8x400xf32, #tpu.memory_space<vmem>>, vector<8x188xf32>
    %c120_200 = arith.constant 120 : index
    %c0_201 = arith.constant 0 : index
    %181 = vector.load %arg12[%c120_200, %c0_201] : memref<200x316xf32, #tpu.memory_space<vmem>>, vector<8x188xf32>
    tpu.vector_store %arg12[%c120_200, %c0_201], %180 {strides = array<i32>} : memref<200x316xf32, #tpu.memory_space<vmem>>, vector<8x188xf32>,
    %c0_202 = arith.constant 0 : index
    %c49_203 = arith.constant 49 : index
    %182 = vector.load %arg11[%c0_202, %c49_203] : memref<8x400xf32, #tpu.memory_space<vmem>>, vector<8x188xf32>
    %c128_204 = arith.constant 128 : index
    %c0_205 = arith.constant 0 : index
    %183 = vector.load %arg12[%c128_204, %c0_205] : memref<200x316xf32, #tpu.memory_space<vmem>>, vector<8x188xf32>
    tpu.vector_store %arg12[%c128_204, %c0_205], %182 {strides = array<i32>} : memref<200x316xf32, #tpu.memory_space<vmem>>, vector<8x188xf32>,
    %c0_206 = arith.constant 0 : index
    %c50_207 = arith.constant 50 : index
    %184 = vector.load %arg11[%c0_206, %c50_207] : memref<8x400xf32, #tpu.memory_space<vmem>>, vector<8x188xf32>
    %c136_208 = arith.constant 136 : index
    %c0_209 = arith.constant 0 : index
    %185 = vector.load %arg12[%c136_208, %c0_209] : memref<200x316xf32, #tpu.memory_space<vmem>>, vector<8x188xf32>
    tpu.vector_store %arg12[%c136_208, %c0_209], %184 {strides = array<i32>} : memref<200x316xf32, #tpu.memory_space<vmem>>, vector<8x188xf32>,
    %c0_210 = arith.constant 0 : index
    %c51_211 = arith.constant 51 : index
    %186 = vector.load %arg11[%c0_210, %c51_211] : memref<8x400xf32, #tpu.memory_space<vmem>>, vector<8x188xf32>
    %c144_212 = arith.constant 144 : index
    %c0_213 = arith.constant 0 : index
    %187 = vector.load %arg12[%c144_212, %c0_213] : memref<200x316xf32, #tpu.memory_space<vmem>>, vector<8x188xf32>
    tpu.vector_store %arg12[%c144_212, %c0_213], %186 {strides = array<i32>} : memref<200x316xf32, #tpu.memory_space<vmem>>, vector<8x188xf32>,
    %c0_214 = arith.constant 0 : index
    %c52_215 = arith.constant 52 : index
    %188 = vector.load %arg11[%c0_214, %c52_215] : memref<8x400xf32, #tpu.memory_space<vmem>>, vector<8x188xf32>
    %c152_216 = arith.constant 152 : index
    %c0_217 = arith.constant 0 : index
    %189 = vector.load %arg12[%c152_216, %c0_217] : memref<200x316xf32, #tpu.memory_space<vmem>>, vector<8x188xf32>
    tpu.vector_store %arg12[%c152_216, %c0_217], %188 {strides = array<i32>} : memref<200x316xf32, #tpu.memory_space<vmem>>, vector<8x188xf32>,
    %c0_218 = arith.constant 0 : index
    %c64_219 = arith.constant 64 : index
    %190 = vector.load %arg11[%c0_218, %c64_219] : memref<8x400xf32, #tpu.memory_space<vmem>>, vector<8x188xf32>
    %c160_220 = arith.constant 160 : index
    %c0_221 = arith.constant 0 : index
    %191 = vector.load %arg12[%c160_220, %c0_221] : memref<200x316xf32, #tpu.memory_space<vmem>>, vector<8x188xf32>
    tpu.vector_store %arg12[%c160_220, %c0_221], %190 {strides = array<i32>} : memref<200x316xf32, #tpu.memory_space<vmem>>, vector<8x188xf32>,
    %c0_222 = arith.constant 0 : index
    %c65 = arith.constant 65 : index
    %192 = vector.load %arg11[%c0_222, %c65] : memref<8x400xf32, #tpu.memory_space<vmem>>, vector<8x188xf32>
    %c168_223 = arith.constant 168 : index
    %c0_224 = arith.constant 0 : index
    %193 = vector.load %arg12[%c168_223, %c0_224] : memref<200x316xf32, #tpu.memory_space<vmem>>, vector<8x188xf32>
    tpu.vector_store %arg12[%c168_223, %c0_224], %192 {strides = array<i32>} : memref<200x316xf32, #tpu.memory_space<vmem>>, vector<8x188xf32>,
    %c0_225 = arith.constant 0 : index
    %c66 = arith.constant 66 : index
    %194 = vector.load %arg11[%c0_225, %c66] : memref<8x400xf32, #tpu.memory_space<vmem>>, vector<8x188xf32>
    %c176_226 = arith.constant 176 : index
    %c0_227 = arith.constant 0 : index
    %195 = vector.load %arg12[%c176_226, %c0_227] : memref<200x316xf32, #tpu.memory_space<vmem>>, vector<8x188xf32>
    tpu.vector_store %arg12[%c176_226, %c0_227], %194 {strides = array<i32>} : memref<200x316xf32, #tpu.memory_space<vmem>>, vector<8x188xf32>,
    %c0_228 = arith.constant 0 : index
    %c67 = arith.constant 67 : index
    %196 = vector.load %arg11[%c0_228, %c67] : memref<8x400xf32, #tpu.memory_space<vmem>>, vector<8x188xf32>
    %c184_229 = arith.constant 184 : index
    %c0_230 = arith.constant 0 : index
    %197 = vector.load %arg12[%c184_229, %c0_230] : memref<200x316xf32, #tpu.memory_space<vmem>>, vector<8x188xf32>
    tpu.vector_store %arg12[%c184_229, %c0_230], %196 {strides = array<i32>} : memref<200x316xf32, #tpu.memory_space<vmem>>, vector<8x188xf32>,
    %c0_231 = arith.constant 0 : index
    %c68_232 = arith.constant 68 : index
    %198 = vector.load %arg11[%c0_231, %c68_232] : memref<8x400xf32, #tpu.memory_space<vmem>>, vector<8x188xf32>
    %c192_233 = arith.constant 192 : index
    %c0_234 = arith.constant 0 : index
    %199 = vector.load %arg12[%c192_233, %c0_234] : memref<200x316xf32, #tpu.memory_space<vmem>>, vector<8x188xf32>
    tpu.vector_store %arg12[%c192_233, %c0_234], %198 {strides = array<i32>} : memref<200x316xf32, #tpu.memory_space<vmem>>, vector<8x188xf32>,
    %c0_235 = arith.constant 0 : index
    %c0_236 = arith.constant 0 : index
    %200 = vector.load %arg6[%c0_235, %c0_236] : memref<4x200xf32, #tpu.memory_space<vmem>>, vector<4x200xf32>
    %c0_237 = arith.constant 0 : index
    %c0_238 = arith.constant 0 : index
    %201 = vector.load %arg12[%c0_237, %c0_238] : memref<200x316xf32, #tpu.memory_space<vmem>>, vector<200x188xf32>
    %cst_239 = arith.constant dense<0.000000e+00> : vector<4x188xf32>
    %202 = tpu.matmul %200, %201, %cst_239 {dimension_numbers = #tpu.dot_dimension_numbers<[1], [0], [0], [1], [0, 0, 1, 1], [], []>} : vector<4x200xf32>, vector<200x188xf32>, vector<4x188xf32> -> vector<4x188xf32>
    %c0_240 = arith.constant 0 : index
    %c0_241 = arith.constant 0 : index
    %203 = vector.load %arg7[%c0_240, %c0_241] : memref<4x1xf32, #tpu.memory_space<vmem>>, vector<4x1xf32>
    %204 = vector.broadcast %203 : vector<4x1xf32> to vector<4x188xf32>
    %205 = arith.addf %202, %204 : vector<4x188xf32>
    %cst_242 = arith.constant 0.000000e+00 : f32
    %206 = vector.broadcast %cst_242 : f32 to vector<4x188xf32>
    %207 = arith.maximumf %205, %206 : vector<4x188xf32>
    %cst_243 = arith.constant 0.000000e+00 : f32
    %208 = vector.broadcast %cst_243 : f32 to vector<8x400xf32>
    %c0_244 = arith.constant 0 : index
    %c0_245 = arith.constant 0 : index
    %209 = vector.load %arg11[%c0_244, %c0_245] : memref<8x400xf32, #tpu.memory_space<vmem>>, vector<8x400xf32>
    tpu.vector_store %arg11[%c0_244, %c0_245], %208 {strides = array<i32>} : memref<8x400xf32, #tpu.memory_space<vmem>>, vector<8x400xf32>,
    %210 = vector.extract_strided_slice %207 {offsets = [0, 0], sizes = [4, 12], strides = [1, 1]} : vector<4x188xf32> to vector<4x12xf32>
    %c0_246 = arith.constant 0 : index
    %c84_247 = arith.constant 84 : index
    %211 = vector.load %arg11[%c0_246, %c84_247] : memref<8x400xf32, #tpu.memory_space<vmem>>, vector<4x12xf32>
    tpu.vector_store %arg11[%c0_246, %c84_247], %210 {strides = array<i32>} : memref<8x400xf32, #tpu.memory_space<vmem>>, vector<4x12xf32>,
    %212 = vector.extract_strided_slice %207 {offsets = [0, 16], sizes = [4, 12], strides = [1, 1]} : vector<4x188xf32> to vector<4x12xf32>
    %c0_248 = arith.constant 0 : index
    %c104_249 = arith.constant 104 : index
    %213 = vector.load %arg11[%c0_248, %c104_249] : memref<8x400xf32, #tpu.memory_space<vmem>>, vector<4x12xf32>
    tpu.vector_store %arg11[%c0_248, %c104_249], %212 {strides = array<i32>} : memref<8x400xf32, #tpu.memory_space<vmem>>, vector<4x12xf32>,
    %214 = vector.extract_strided_slice %207 {offsets = [0, 32], sizes = [4, 12], strides = [1, 1]} : vector<4x188xf32> to vector<4x12xf32>
    %c0_250 = arith.constant 0 : index
    %c124 = arith.constant 124 : index
    %215 = vector.load %arg11[%c0_250, %c124] : memref<8x400xf32, #tpu.memory_space<vmem>>, vector<4x12xf32>
    tpu.vector_store %arg11[%c0_250, %c124], %214 {strides = array<i32>} : memref<8x400xf32, #tpu.memory_space<vmem>>, vector<4x12xf32>,
    %216 = vector.extract_strided_slice %207 {offsets = [0, 48], sizes = [4, 12], strides = [1, 1]} : vector<4x188xf32> to vector<4x12xf32>
    %c0_251 = arith.constant 0 : index
    %c144_252 = arith.constant 144 : index
    %217 = vector.load %arg11[%c0_251, %c144_252] : memref<8x400xf32, #tpu.memory_space<vmem>>, vector<4x12xf32>
    tpu.vector_store %arg11[%c0_251, %c144_252], %216 {strides = array<i32>} : memref<8x400xf32, #tpu.memory_space<vmem>>, vector<4x12xf32>,
    %218 = vector.extract_strided_slice %207 {offsets = [0, 64], sizes = [4, 12], strides = [1, 1]} : vector<4x188xf32> to vector<4x12xf32>
    %c0_253 = arith.constant 0 : index
    %c164_254 = arith.constant 164 : index
    %219 = vector.load %arg11[%c0_253, %c164_254] : memref<8x400xf32, #tpu.memory_space<vmem>>, vector<4x12xf32>
    tpu.vector_store %arg11[%c0_253, %c164_254], %218 {strides = array<i32>} : memref<8x400xf32, #tpu.memory_space<vmem>>, vector<4x12xf32>,
    %220 = vector.extract_strided_slice %207 {offsets = [0, 80], sizes = [4, 12], strides = [1, 1]} : vector<4x188xf32> to vector<4x12xf32>
    %c0_255 = arith.constant 0 : index
    %c184_256 = arith.constant 184 : index
    %221 = vector.load %arg11[%c0_255, %c184_256] : memref<8x400xf32, #tpu.memory_space<vmem>>, vector<4x12xf32>
    tpu.vector_store %arg11[%c0_255, %c184_256], %220 {strides = array<i32>} : memref<8x400xf32, #tpu.memory_space<vmem>>, vector<4x12xf32>,
    %222 = vector.extract_strided_slice %207 {offsets = [0, 96], sizes = [4, 12], strides = [1, 1]} : vector<4x188xf32> to vector<4x12xf32>
    %c0_257 = arith.constant 0 : index
    %c204 = arith.constant 204 : index
    %223 = vector.load %arg11[%c0_257, %c204] : memref<8x400xf32, #tpu.memory_space<vmem>>, vector<4x12xf32>
    tpu.vector_store %arg11[%c0_257, %c204], %222 {strides = array<i32>} : memref<8x400xf32, #tpu.memory_space<vmem>>, vector<4x12xf32>,
    %224 = vector.extract_strided_slice %207 {offsets = [0, 112], sizes = [4, 12], strides = [1, 1]} : vector<4x188xf32> to vector<4x12xf32>
    %c0_258 = arith.constant 0 : index
    %c224 = arith.constant 224 : index
    %225 = vector.load %arg11[%c0_258, %c224] : memref<8x400xf32, #tpu.memory_space<vmem>>, vector<4x12xf32>
    tpu.vector_store %arg11[%c0_258, %c224], %224 {strides = array<i32>} : memref<8x400xf32, #tpu.memory_space<vmem>>, vector<4x12xf32>,
    %226 = vector.extract_strided_slice %207 {offsets = [0, 128], sizes = [4, 12], strides = [1, 1]} : vector<4x188xf32> to vector<4x12xf32>
    %c0_259 = arith.constant 0 : index
    %c244 = arith.constant 244 : index
    %227 = vector.load %arg11[%c0_259, %c244] : memref<8x400xf32, #tpu.memory_space<vmem>>, vector<4x12xf32>
    tpu.vector_store %arg11[%c0_259, %c244], %226 {strides = array<i32>} : memref<8x400xf32, #tpu.memory_space<vmem>>, vector<4x12xf32>,
    %228 = vector.extract_strided_slice %207 {offsets = [0, 144], sizes = [4, 12], strides = [1, 1]} : vector<4x188xf32> to vector<4x12xf32>
    %c0_260 = arith.constant 0 : index
    %c264 = arith.constant 264 : index
    %229 = vector.load %arg11[%c0_260, %c264] : memref<8x400xf32, #tpu.memory_space<vmem>>, vector<4x12xf32>
    tpu.vector_store %arg11[%c0_260, %c264], %228 {strides = array<i32>} : memref<8x400xf32, #tpu.memory_space<vmem>>, vector<4x12xf32>,
    %230 = vector.extract_strided_slice %207 {offsets = [0, 160], sizes = [4, 12], strides = [1, 1]} : vector<4x188xf32> to vector<4x12xf32>
    %c0_261 = arith.constant 0 : index
    %c284 = arith.constant 284 : index
    %231 = vector.load %arg11[%c0_261, %c284] : memref<8x400xf32, #tpu.memory_space<vmem>>, vector<4x12xf32>
    tpu.vector_store %arg11[%c0_261, %c284], %230 {strides = array<i32>} : memref<8x400xf32, #tpu.memory_space<vmem>>, vector<4x12xf32>,
    %232 = vector.extract_strided_slice %207 {offsets = [0, 176], sizes = [4, 12], strides = [1, 1]} : vector<4x188xf32> to vector<4x12xf32>
    %c0_262 = arith.constant 0 : index
    %c304 = arith.constant 304 : index
    %233 = vector.load %arg11[%c0_262, %c304] : memref<8x400xf32, #tpu.memory_space<vmem>>, vector<4x12xf32>
    tpu.vector_store %arg11[%c0_262, %c304], %232 {strides = array<i32>} : memref<8x400xf32, #tpu.memory_space<vmem>>, vector<4x12xf32>,
    %c0_263 = arith.constant 0 : index
    %c0_264 = arith.constant 0 : index
    %234 = vector.load %arg11[%c0_263, %c0_264] : memref<8x400xf32, #tpu.memory_space<vmem>>, vector<4x316xf32>
    %c0_265 = arith.constant 0 : index
    %c0_266 = arith.constant 0 : index
    %235 = vector.load %arg12[%c0_265, %c0_266] : memref<200x316xf32, #tpu.memory_space<vmem>>, vector<4x316xf32>
    tpu.vector_store %arg12[%c0_265, %c0_266], %234 {strides = array<i32>} : memref<200x316xf32, #tpu.memory_space<vmem>>, vector<4x316xf32>,
    %c0_267 = arith.constant 0 : index
    %c1_268 = arith.constant 1 : index
    %236 = vector.load %arg11[%c0_267, %c1_268] : memref<8x400xf32, #tpu.memory_space<vmem>>, vector<4x316xf32>
    %c4_269 = arith.constant 4 : index
    %c0_270 = arith.constant 0 : index
    %237 = vector.load %arg12[%c4_269, %c0_270] : memref<200x316xf32, #tpu.memory_space<vmem>>, vector<4x316xf32>
    tpu.vector_store %arg12[%c4_269, %c0_270], %236 {strides = array<i32>} : memref<200x316xf32, #tpu.memory_space<vmem>>, vector<4x316xf32>,
    %c0_271 = arith.constant 0 : index
    %c2_272 = arith.constant 2 : index
    %238 = vector.load %arg11[%c0_271, %c2_272] : memref<8x400xf32, #tpu.memory_space<vmem>>, vector<4x316xf32>
    %c8_273 = arith.constant 8 : index
    %c0_274 = arith.constant 0 : index
    %239 = vector.load %arg12[%c8_273, %c0_274] : memref<200x316xf32, #tpu.memory_space<vmem>>, vector<4x316xf32>
    tpu.vector_store %arg12[%c8_273, %c0_274], %238 {strides = array<i32>} : memref<200x316xf32, #tpu.memory_space<vmem>>, vector<4x316xf32>,
    %c0_275 = arith.constant 0 : index
    %c3_276 = arith.constant 3 : index
    %240 = vector.load %arg11[%c0_275, %c3_276] : memref<8x400xf32, #tpu.memory_space<vmem>>, vector<4x316xf32>
    %c12_277 = arith.constant 12 : index
    %c0_278 = arith.constant 0 : index
    %241 = vector.load %arg12[%c12_277, %c0_278] : memref<200x316xf32, #tpu.memory_space<vmem>>, vector<4x316xf32>
    tpu.vector_store %arg12[%c12_277, %c0_278], %240 {strides = array<i32>} : memref<200x316xf32, #tpu.memory_space<vmem>>, vector<4x316xf32>,
    %c0_279 = arith.constant 0 : index
    %c4_280 = arith.constant 4 : index
    %242 = vector.load %arg11[%c0_279, %c4_280] : memref<8x400xf32, #tpu.memory_space<vmem>>, vector<4x316xf32>
    %c16_281 = arith.constant 16 : index
    %c0_282 = arith.constant 0 : index
    %243 = vector.load %arg12[%c16_281, %c0_282] : memref<200x316xf32, #tpu.memory_space<vmem>>, vector<4x316xf32>
    tpu.vector_store %arg12[%c16_281, %c0_282], %242 {strides = array<i32>} : memref<200x316xf32, #tpu.memory_space<vmem>>, vector<4x316xf32>,
    %c0_283 = arith.constant 0 : index
    %c20_284 = arith.constant 20 : index
    %244 = vector.load %arg11[%c0_283, %c20_284] : memref<8x400xf32, #tpu.memory_space<vmem>>, vector<4x316xf32>
    %c20_285 = arith.constant 20 : index
    %c0_286 = arith.constant 0 : index
    %245 = vector.load %arg12[%c20_285, %c0_286] : memref<200x316xf32, #tpu.memory_space<vmem>>, vector<4x316xf32>
    tpu.vector_store %arg12[%c20_285, %c0_286], %244 {strides = array<i32>} : memref<200x316xf32, #tpu.memory_space<vmem>>, vector<4x316xf32>,
    %c0_287 = arith.constant 0 : index
    %c21 = arith.constant 21 : index
    %246 = vector.load %arg11[%c0_287, %c21] : memref<8x400xf32, #tpu.memory_space<vmem>>, vector<4x316xf32>
    %c24_288 = arith.constant 24 : index
    %c0_289 = arith.constant 0 : index
    %247 = vector.load %arg12[%c24_288, %c0_289] : memref<200x316xf32, #tpu.memory_space<vmem>>, vector<4x316xf32>
    tpu.vector_store %arg12[%c24_288, %c0_289], %246 {strides = array<i32>} : memref<200x316xf32, #tpu.memory_space<vmem>>, vector<4x316xf32>,
    %c0_290 = arith.constant 0 : index
    %c22 = arith.constant 22 : index
    %248 = vector.load %arg11[%c0_290, %c22] : memref<8x400xf32, #tpu.memory_space<vmem>>, vector<4x316xf32>
    %c28_291 = arith.constant 28 : index
    %c0_292 = arith.constant 0 : index
    %249 = vector.load %arg12[%c28_291, %c0_292] : memref<200x316xf32, #tpu.memory_space<vmem>>, vector<4x316xf32>
    tpu.vector_store %arg12[%c28_291, %c0_292], %248 {strides = array<i32>} : memref<200x316xf32, #tpu.memory_space<vmem>>, vector<4x316xf32>,
    %c0_293 = arith.constant 0 : index
    %c23 = arith.constant 23 : index
    %250 = vector.load %arg11[%c0_293, %c23] : memref<8x400xf32, #tpu.memory_space<vmem>>, vector<4x316xf32>
    %c32_294 = arith.constant 32 : index
    %c0_295 = arith.constant 0 : index
    %251 = vector.load %arg12[%c32_294, %c0_295] : memref<200x316xf32, #tpu.memory_space<vmem>>, vector<4x316xf32>
    tpu.vector_store %arg12[%c32_294, %c0_295], %250 {strides = array<i32>} : memref<200x316xf32, #tpu.memory_space<vmem>>, vector<4x316xf32>,
    %c0_296 = arith.constant 0 : index
    %c24_297 = arith.constant 24 : index
    %252 = vector.load %arg11[%c0_296, %c24_297] : memref<8x400xf32, #tpu.memory_space<vmem>>, vector<4x316xf32>
    %c36_298 = arith.constant 36 : index
    %c0_299 = arith.constant 0 : index
    %253 = vector.load %arg12[%c36_298, %c0_299] : memref<200x316xf32, #tpu.memory_space<vmem>>, vector<4x316xf32>
    tpu.vector_store %arg12[%c36_298, %c0_299], %252 {strides = array<i32>} : memref<200x316xf32, #tpu.memory_space<vmem>>, vector<4x316xf32>,
    %c0_300 = arith.constant 0 : index
    %c40_301 = arith.constant 40 : index
    %254 = vector.load %arg11[%c0_300, %c40_301] : memref<8x400xf32, #tpu.memory_space<vmem>>, vector<4x316xf32>
    %c40_302 = arith.constant 40 : index
    %c0_303 = arith.constant 0 : index
    %255 = vector.load %arg12[%c40_302, %c0_303] : memref<200x316xf32, #tpu.memory_space<vmem>>, vector<4x316xf32>
    tpu.vector_store %arg12[%c40_302, %c0_303], %254 {strides = array<i32>} : memref<200x316xf32, #tpu.memory_space<vmem>>, vector<4x316xf32>,
    %c0_304 = arith.constant 0 : index
    %c41 = arith.constant 41 : index
    %256 = vector.load %arg11[%c0_304, %c41] : memref<8x400xf32, #tpu.memory_space<vmem>>, vector<4x316xf32>
    %c44 = arith.constant 44 : index
    %c0_305 = arith.constant 0 : index
    %257 = vector.load %arg12[%c44, %c0_305] : memref<200x316xf32, #tpu.memory_space<vmem>>, vector<4x316xf32>
    tpu.vector_store %arg12[%c44, %c0_305], %256 {strides = array<i32>} : memref<200x316xf32, #tpu.memory_space<vmem>>, vector<4x316xf32>,
    %c0_306 = arith.constant 0 : index
    %c42 = arith.constant 42 : index
    %258 = vector.load %arg11[%c0_306, %c42] : memref<8x400xf32, #tpu.memory_space<vmem>>, vector<4x316xf32>
    %c48_307 = arith.constant 48 : index
    %c0_308 = arith.constant 0 : index
    %259 = vector.load %arg12[%c48_307, %c0_308] : memref<200x316xf32, #tpu.memory_space<vmem>>, vector<4x316xf32>
    tpu.vector_store %arg12[%c48_307, %c0_308], %258 {strides = array<i32>} : memref<200x316xf32, #tpu.memory_space<vmem>>, vector<4x316xf32>,
    %c0_309 = arith.constant 0 : index
    %c43 = arith.constant 43 : index
    %260 = vector.load %arg11[%c0_309, %c43] : memref<8x400xf32, #tpu.memory_space<vmem>>, vector<4x316xf32>
    %c52_310 = arith.constant 52 : index
    %c0_311 = arith.constant 0 : index
    %261 = vector.load %arg12[%c52_310, %c0_311] : memref<200x316xf32, #tpu.memory_space<vmem>>, vector<4x316xf32>
    tpu.vector_store %arg12[%c52_310, %c0_311], %260 {strides = array<i32>} : memref<200x316xf32, #tpu.memory_space<vmem>>, vector<4x316xf32>,
    %c0_312 = arith.constant 0 : index
    %c44_313 = arith.constant 44 : index
    %262 = vector.load %arg11[%c0_312, %c44_313] : memref<8x400xf32, #tpu.memory_space<vmem>>, vector<4x316xf32>
    %c56_314 = arith.constant 56 : index
    %c0_315 = arith.constant 0 : index
    %263 = vector.load %arg12[%c56_314, %c0_315] : memref<200x316xf32, #tpu.memory_space<vmem>>, vector<4x316xf32>
    tpu.vector_store %arg12[%c56_314, %c0_315], %262 {strides = array<i32>} : memref<200x316xf32, #tpu.memory_space<vmem>>, vector<4x316xf32>,
    %c0_316 = arith.constant 0 : index
    %c60 = arith.constant 60 : index
    %264 = vector.load %arg11[%c0_316, %c60] : memref<8x400xf32, #tpu.memory_space<vmem>>, vector<4x316xf32>
    %c60_317 = arith.constant 60 : index
    %c0_318 = arith.constant 0 : index
    %265 = vector.load %arg12[%c60_317, %c0_318] : memref<200x316xf32, #tpu.memory_space<vmem>>, vector<4x316xf32>
    tpu.vector_store %arg12[%c60_317, %c0_318], %264 {strides = array<i32>} : memref<200x316xf32, #tpu.memory_space<vmem>>, vector<4x316xf32>,
    %c0_319 = arith.constant 0 : index
    %c61 = arith.constant 61 : index
    %266 = vector.load %arg11[%c0_319, %c61] : memref<8x400xf32, #tpu.memory_space<vmem>>, vector<4x316xf32>
    %c64_320 = arith.constant 64 : index
    %c0_321 = arith.constant 0 : index
    %267 = vector.load %arg12[%c64_320, %c0_321] : memref<200x316xf32, #tpu.memory_space<vmem>>, vector<4x316xf32>
    tpu.vector_store %arg12[%c64_320, %c0_321], %266 {strides = array<i32>} : memref<200x316xf32, #tpu.memory_space<vmem>>, vector<4x316xf32>,
    %c0_322 = arith.constant 0 : index
    %c62 = arith.constant 62 : index
    %268 = vector.load %arg11[%c0_322, %c62] : memref<8x400xf32, #tpu.memory_space<vmem>>, vector<4x316xf32>
    %c68_323 = arith.constant 68 : index
    %c0_324 = arith.constant 0 : index
    %269 = vector.load %arg12[%c68_323, %c0_324] : memref<200x316xf32, #tpu.memory_space<vmem>>, vector<4x316xf32>
    tpu.vector_store %arg12[%c68_323, %c0_324], %268 {strides = array<i32>} : memref<200x316xf32, #tpu.memory_space<vmem>>, vector<4x316xf32>,
    %c0_325 = arith.constant 0 : index
    %c63 = arith.constant 63 : index
    %270 = vector.load %arg11[%c0_325, %c63] : memref<8x400xf32, #tpu.memory_space<vmem>>, vector<4x316xf32>
    %c72_326 = arith.constant 72 : index
    %c0_327 = arith.constant 0 : index
    %271 = vector.load %arg12[%c72_326, %c0_327] : memref<200x316xf32, #tpu.memory_space<vmem>>, vector<4x316xf32>
    tpu.vector_store %arg12[%c72_326, %c0_327], %270 {strides = array<i32>} : memref<200x316xf32, #tpu.memory_space<vmem>>, vector<4x316xf32>,
    %c0_328 = arith.constant 0 : index
    %c64_329 = arith.constant 64 : index
    %272 = vector.load %arg11[%c0_328, %c64_329] : memref<8x400xf32, #tpu.memory_space<vmem>>, vector<4x316xf32>
    %c76_330 = arith.constant 76 : index
    %c0_331 = arith.constant 0 : index
    %273 = vector.load %arg12[%c76_330, %c0_331] : memref<200x316xf32, #tpu.memory_space<vmem>>, vector<4x316xf32>
    tpu.vector_store %arg12[%c76_330, %c0_331], %272 {strides = array<i32>} : memref<200x316xf32, #tpu.memory_space<vmem>>, vector<4x316xf32>,
    %c0_332 = arith.constant 0 : index
    %c80_333 = arith.constant 80 : index
    %274 = vector.load %arg11[%c0_332, %c80_333] : memref<8x400xf32, #tpu.memory_space<vmem>>, vector<4x316xf32>
    %c80_334 = arith.constant 80 : index
    %c0_335 = arith.constant 0 : index
    %275 = vector.load %arg12[%c80_334, %c0_335] : memref<200x316xf32, #tpu.memory_space<vmem>>, vector<4x316xf32>
    tpu.vector_store %arg12[%c80_334, %c0_335], %274 {strides = array<i32>} : memref<200x316xf32, #tpu.memory_space<vmem>>, vector<4x316xf32>,
    %c0_336 = arith.constant 0 : index
    %c81 = arith.constant 81 : index
    %276 = vector.load %arg11[%c0_336, %c81] : memref<8x400xf32, #tpu.memory_space<vmem>>, vector<4x316xf32>
    %c84_337 = arith.constant 84 : index
    %c0_338 = arith.constant 0 : index
    %277 = vector.load %arg12[%c84_337, %c0_338] : memref<200x316xf32, #tpu.memory_space<vmem>>, vector<4x316xf32>
    tpu.vector_store %arg12[%c84_337, %c0_338], %276 {strides = array<i32>} : memref<200x316xf32, #tpu.memory_space<vmem>>, vector<4x316xf32>,
    %c0_339 = arith.constant 0 : index
    %c82 = arith.constant 82 : index
    %278 = vector.load %arg11[%c0_339, %c82] : memref<8x400xf32, #tpu.memory_space<vmem>>, vector<4x316xf32>
    %c88_340 = arith.constant 88 : index
    %c0_341 = arith.constant 0 : index
    %279 = vector.load %arg12[%c88_340, %c0_341] : memref<200x316xf32, #tpu.memory_space<vmem>>, vector<4x316xf32>
    tpu.vector_store %arg12[%c88_340, %c0_341], %278 {strides = array<i32>} : memref<200x316xf32, #tpu.memory_space<vmem>>, vector<4x316xf32>,
    %c0_342 = arith.constant 0 : index
    %c83 = arith.constant 83 : index
    %280 = vector.load %arg11[%c0_342, %c83] : memref<8x400xf32, #tpu.memory_space<vmem>>, vector<4x316xf32>
    %c92 = arith.constant 92 : index
    %c0_343 = arith.constant 0 : index
    %281 = vector.load %arg12[%c92, %c0_343] : memref<200x316xf32, #tpu.memory_space<vmem>>, vector<4x316xf32>
    tpu.vector_store %arg12[%c92, %c0_343], %280 {strides = array<i32>} : memref<200x316xf32, #tpu.memory_space<vmem>>, vector<4x316xf32>,
    %c0_344 = arith.constant 0 : index
    %c84_345 = arith.constant 84 : index
    %282 = vector.load %arg11[%c0_344, %c84_345] : memref<8x400xf32, #tpu.memory_space<vmem>>, vector<4x316xf32>
    %c96_346 = arith.constant 96 : index
    %c0_347 = arith.constant 0 : index
    %283 = vector.load %arg12[%c96_346, %c0_347] : memref<200x316xf32, #tpu.memory_space<vmem>>, vector<4x316xf32>
    tpu.vector_store %arg12[%c96_346, %c0_347], %282 {strides = array<i32>} : memref<200x316xf32, #tpu.memory_space<vmem>>, vector<4x316xf32>,
    %c0_348 = arith.constant 0 : index
    %c0_349 = arith.constant 0 : index
    %284 = vector.load %arg8[%c0_348, %c0_349] : memref<1x100xf32, #tpu.memory_space<vmem>>, vector<1x100xf32>
    %c0_350 = arith.constant 0 : index
    %c0_351 = arith.constant 0 : index
    %285 = vector.load %arg12[%c0_350, %c0_351] : memref<200x316xf32, #tpu.memory_space<vmem>>, vector<100x316xf32>
    %cst_352 = arith.constant dense<0.000000e+00> : vector<1x316xf32>
    %286 = tpu.matmul %284, %285, %cst_352 {dimension_numbers = #tpu.dot_dimension_numbers<[1], [0], [0], [1], [0, 0, 1, 1], [], []>} : vector<1x100xf32>, vector<100x316xf32>, vector<1x316xf32> -> vector<1x316xf32>
    %c0_353 = arith.constant 0 : index
    %c0_354 = arith.constant 0 : index
    %287 = vector.load %arg9[%c0_353, %c0_354] : memref<1x1xf32, #tpu.memory_space<vmem>>, vector<1x1xf32>
    %288 = vector.broadcast %287 : vector<1x1xf32> to vector<1x316xf32>
    %289 = arith.addf %286, %288 : vector<1x316xf32>
    %290 = vector.extract_strided_slice %289 {offsets = [0, 0], sizes = [1, 16], strides = [1, 1]} : vector<1x316xf32> to vector<1x16xf32>
    %c0_355 = arith.constant 0 : index
    %c0_356 = arith.constant 0 : index
    %c0_357 = arith.constant 0 : index
    %291 = vector.load %arg10[%c0_355, %c0_356, %c0_357] : memref<1x1x256xf32, #tpu.memory_space<vmem>>, vector<1x1x16xf32>
    %292 = vector.shape_cast %291 : vector<1x1x16xf32> to vector<1x16xf32>
    %293 = vector.shape_cast %290 : vector<1x16xf32> to vector<1x1x16xf32>
    tpu.vector_store %arg10[%c0_355, %c0_356, %c0_357], %293 {strides = array<i32>} : memref<1x1x256xf32, #tpu.memory_space<vmem>>, vector<1x1x16xf32>,
    %294 = vector.extract_strided_slice %289 {offsets = [0, 20], sizes = [1, 16], strides = [1, 1]} : vector<1x316xf32> to vector<1x16xf32>
    %c0_358 = arith.constant 0 : index
    %c0_359 = arith.constant 0 : index
    %c16_360 = arith.constant 16 : index
    %295 = vector.load %arg10[%c0_358, %c0_359, %c16_360] : memref<1x1x256xf32, #tpu.memory_space<vmem>>, vector<1x1x16xf32>
    %296 = vector.shape_cast %295 : vector<1x1x16xf32> to vector<1x16xf32>
    %297 = vector.shape_cast %294 : vector<1x16xf32> to vector<1x1x16xf32>
    tpu.vector_store %arg10[%c0_358, %c0_359, %c16_360], %297 {strides = array<i32>} : memref<1x1x256xf32, #tpu.memory_space<vmem>>, vector<1x1x16xf32>,
    %298 = vector.extract_strided_slice %289 {offsets = [0, 40], sizes = [1, 16], strides = [1, 1]} : vector<1x316xf32> to vector<1x16xf32>
    %c0_361 = arith.constant 0 : index
    %c0_362 = arith.constant 0 : index
    %c32_363 = arith.constant 32 : index
    %299 = vector.load %arg10[%c0_361, %c0_362, %c32_363] : memref<1x1x256xf32, #tpu.memory_space<vmem>>, vector<1x1x16xf32>
    %300 = vector.shape_cast %299 : vector<1x1x16xf32> to vector<1x16xf32>
    %301 = vector.shape_cast %298 : vector<1x16xf32> to vector<1x1x16xf32>
    tpu.vector_store %arg10[%c0_361, %c0_362, %c32_363], %301 {strides = array<i32>} : memref<1x1x256xf32, #tpu.memory_space<vmem>>, vector<1x1x16xf32>,
    %302 = vector.extract_strided_slice %289 {offsets = [0, 60], sizes = [1, 16], strides = [1, 1]} : vector<1x316xf32> to vector<1x16xf32>
    %c0_364 = arith.constant 0 : index
    %c0_365 = arith.constant 0 : index
    %c48_366 = arith.constant 48 : index
    %303 = vector.load %arg10[%c0_364, %c0_365, %c48_366] : memref<1x1x256xf32, #tpu.memory_space<vmem>>, vector<1x1x16xf32>
    %304 = vector.shape_cast %303 : vector<1x1x16xf32> to vector<1x16xf32>
    %305 = vector.shape_cast %302 : vector<1x16xf32> to vector<1x1x16xf32>
    tpu.vector_store %arg10[%c0_364, %c0_365, %c48_366], %305 {strides = array<i32>} : memref<1x1x256xf32, #tpu.memory_space<vmem>>, vector<1x1x16xf32>,
    %306 = vector.extract_strided_slice %289 {offsets = [0, 80], sizes = [1, 16], strides = [1, 1]} : vector<1x316xf32> to vector<1x16xf32>
    %c0_367 = arith.constant 0 : index
    %c0_368 = arith.constant 0 : index
    %c64_369 = arith.constant 64 : index
    %307 = vector.load %arg10[%c0_367, %c0_368, %c64_369] : memref<1x1x256xf32, #tpu.memory_space<vmem>>, vector<1x1x16xf32>
    %308 = vector.shape_cast %307 : vector<1x1x16xf32> to vector<1x16xf32>
    %309 = vector.shape_cast %306 : vector<1x16xf32> to vector<1x1x16xf32>
    tpu.vector_store %arg10[%c0_367, %c0_368, %c64_369], %309 {strides = array<i32>} : memref<1x1x256xf32, #tpu.memory_space<vmem>>, vector<1x1x16xf32>,
    %310 = vector.extract_strided_slice %289 {offsets = [0, 100], sizes = [1, 16], strides = [1, 1]} : vector<1x316xf32> to vector<1x16xf32>
    %c0_370 = arith.constant 0 : index
    %c0_371 = arith.constant 0 : index
    %c80_372 = arith.constant 80 : index
    %311 = vector.load %arg10[%c0_370, %c0_371, %c80_372] : memref<1x1x256xf32, #tpu.memory_space<vmem>>, vector<1x1x16xf32>
    %312 = vector.shape_cast %311 : vector<1x1x16xf32> to vector<1x16xf32>
    %313 = vector.shape_cast %310 : vector<1x16xf32> to vector<1x1x16xf32>
    tpu.vector_store %arg10[%c0_370, %c0_371, %c80_372], %313 {strides = array<i32>} : memref<1x1x256xf32, #tpu.memory_space<vmem>>, vector<1x1x16xf32>,
    %314 = vector.extract_strided_slice %289 {offsets = [0, 120], sizes = [1, 16], strides = [1, 1]} : vector<1x316xf32> to vector<1x16xf32>
    %c0_373 = arith.constant 0 : index
    %c0_374 = arith.constant 0 : index
    %c96_375 = arith.constant 96 : index
    %315 = vector.load %arg10[%c0_373, %c0_374, %c96_375] : memref<1x1x256xf32, #tpu.memory_space<vmem>>, vector<1x1x16xf32>
    %316 = vector.shape_cast %315 : vector<1x1x16xf32> to vector<1x16xf32>
    %317 = vector.shape_cast %314 : vector<1x16xf32> to vector<1x1x16xf32>
    tpu.vector_store %arg10[%c0_373, %c0_374, %c96_375], %317 {strides = array<i32>} : memref<1x1x256xf32, #tpu.memory_space<vmem>>, vector<1x1x16xf32>,
    %318 = vector.extract_strided_slice %289 {offsets = [0, 140], sizes = [1, 16], strides = [1, 1]} : vector<1x316xf32> to vector<1x16xf32>
    %c0_376 = arith.constant 0 : index
    %c0_377 = arith.constant 0 : index
    %c112_378 = arith.constant 112 : index
    %319 = vector.load %arg10[%c0_376, %c0_377, %c112_378] : memref<1x1x256xf32, #tpu.memory_space<vmem>>, vector<1x1x16xf32>
    %320 = vector.shape_cast %319 : vector<1x1x16xf32> to vector<1x16xf32>
    %321 = vector.shape_cast %318 : vector<1x16xf32> to vector<1x1x16xf32>
    tpu.vector_store %arg10[%c0_376, %c0_377, %c112_378], %321 {strides = array<i32>} : memref<1x1x256xf32, #tpu.memory_space<vmem>>, vector<1x1x16xf32>,
    %322 = vector.extract_strided_slice %289 {offsets = [0, 160], sizes = [1, 16], strides = [1, 1]} : vector<1x316xf32> to vector<1x16xf32>
    %c0_379 = arith.constant 0 : index
    %c0_380 = arith.constant 0 : index
    %c128_381 = arith.constant 128 : index
    %323 = vector.load %arg10[%c0_379, %c0_380, %c128_381] : memref<1x1x256xf32, #tpu.memory_space<vmem>>, vector<1x1x16xf32>
    %324 = vector.shape_cast %323 : vector<1x1x16xf32> to vector<1x16xf32>
    %325 = vector.shape_cast %322 : vector<1x16xf32> to vector<1x1x16xf32>
    tpu.vector_store %arg10[%c0_379, %c0_380, %c128_381], %325 {strides = array<i32>} : memref<1x1x256xf32, #tpu.memory_space<vmem>>, vector<1x1x16xf32>,
    %326 = vector.extract_strided_slice %289 {offsets = [0, 180], sizes = [1, 16], strides = [1, 1]} : vector<1x316xf32> to vector<1x16xf32>
    %c0_382 = arith.constant 0 : index
    %c0_383 = arith.constant 0 : index
    %c144_384 = arith.constant 144 : index
    %327 = vector.load %arg10[%c0_382, %c0_383, %c144_384] : memref<1x1x256xf32, #tpu.memory_space<vmem>>, vector<1x1x16xf32>
    %328 = vector.shape_cast %327 : vector<1x1x16xf32> to vector<1x16xf32>
    %329 = vector.shape_cast %326 : vector<1x16xf32> to vector<1x1x16xf32>
    tpu.vector_store %arg10[%c0_382, %c0_383, %c144_384], %329 {strides = array<i32>} : memref<1x1x256xf32, #tpu.memory_space<vmem>>, vector<1x1x16xf32>,
    %330 = vector.extract_strided_slice %289 {offsets = [0, 200], sizes = [1, 16], strides = [1, 1]} : vector<1x316xf32> to vector<1x16xf32>
    %c0_385 = arith.constant 0 : index
    %c0_386 = arith.constant 0 : index
    %c160_387 = arith.constant 160 : index
    %331 = vector.load %arg10[%c0_385, %c0_386, %c160_387] : memref<1x1x256xf32, #tpu.memory_space<vmem>>, vector<1x1x16xf32>
    %332 = vector.shape_cast %331 : vector<1x1x16xf32> to vector<1x16xf32>
    %333 = vector.shape_cast %330 : vector<1x16xf32> to vector<1x1x16xf32>
    tpu.vector_store %arg10[%c0_385, %c0_386, %c160_387], %333 {strides = array<i32>} : memref<1x1x256xf32, #tpu.memory_space<vmem>>, vector<1x1x16xf32>,
    %334 = vector.extract_strided_slice %289 {offsets = [0, 220], sizes = [1, 16], strides = [1, 1]} : vector<1x316xf32> to vector<1x16xf32>
    %c0_388 = arith.constant 0 : index
    %c0_389 = arith.constant 0 : index
    %c176_390 = arith.constant 176 : index
    %335 = vector.load %arg10[%c0_388, %c0_389, %c176_390] : memref<1x1x256xf32, #tpu.memory_space<vmem>>, vector<1x1x16xf32>
    %336 = vector.shape_cast %335 : vector<1x1x16xf32> to vector<1x16xf32>
    %337 = vector.shape_cast %334 : vector<1x16xf32> to vector<1x1x16xf32>
    tpu.vector_store %arg10[%c0_388, %c0_389, %c176_390], %337 {strides = array<i32>} : memref<1x1x256xf32, #tpu.memory_space<vmem>>, vector<1x1x16xf32>,
    %338 = vector.extract_strided_slice %289 {offsets = [0, 240], sizes = [1, 16], strides = [1, 1]} : vector<1x316xf32> to vector<1x16xf32>
    %c0_391 = arith.constant 0 : index
    %c0_392 = arith.constant 0 : index
    %c192_393 = arith.constant 192 : index
    %339 = vector.load %arg10[%c0_391, %c0_392, %c192_393] : memref<1x1x256xf32, #tpu.memory_space<vmem>>, vector<1x1x16xf32>
    %340 = vector.shape_cast %339 : vector<1x1x16xf32> to vector<1x16xf32>
    %341 = vector.shape_cast %338 : vector<1x16xf32> to vector<1x1x16xf32>
    tpu.vector_store %arg10[%c0_391, %c0_392, %c192_393], %341 {strides = array<i32>} : memref<1x1x256xf32, #tpu.memory_space<vmem>>, vector<1x1x16xf32>,
    %342 = vector.extract_strided_slice %289 {offsets = [0, 260], sizes = [1, 16], strides = [1, 1]} : vector<1x316xf32> to vector<1x16xf32>
    %c0_394 = arith.constant 0 : index
    %c0_395 = arith.constant 0 : index
    %c208 = arith.constant 208 : index
    %343 = vector.load %arg10[%c0_394, %c0_395, %c208] : memref<1x1x256xf32, #tpu.memory_space<vmem>>, vector<1x1x16xf32>
    %344 = vector.shape_cast %343 : vector<1x1x16xf32> to vector<1x16xf32>
    %345 = vector.shape_cast %342 : vector<1x16xf32> to vector<1x1x16xf32>
    tpu.vector_store %arg10[%c0_394, %c0_395, %c208], %345 {strides = array<i32>} : memref<1x1x256xf32, #tpu.memory_space<vmem>>, vector<1x1x16xf32>,
    %346 = vector.extract_strided_slice %289 {offsets = [0, 280], sizes = [1, 16], strides = [1, 1]} : vector<1x316xf32> to vector<1x16xf32>
    %c0_396 = arith.constant 0 : index
    %c0_397 = arith.constant 0 : index
    %c224_398 = arith.constant 224 : index
    %347 = vector.load %arg10[%c0_396, %c0_397, %c224_398] : memref<1x1x256xf32, #tpu.memory_space<vmem>>, vector<1x1x16xf32>
    %348 = vector.shape_cast %347 : vector<1x1x16xf32> to vector<1x16xf32>
    %349 = vector.shape_cast %346 : vector<1x16xf32> to vector<1x1x16xf32>
    tpu.vector_store %arg10[%c0_396, %c0_397, %c224_398], %349 {strides = array<i32>} : memref<1x1x256xf32, #tpu.memory_space<vmem>>, vector<1x1x16xf32>,
    %350 = vector.extract_strided_slice %289 {offsets = [0, 300], sizes = [1, 16], strides = [1, 1]} : vector<1x316xf32> to vector<1x16xf32>
    %c0_399 = arith.constant 0 : index
    %c0_400 = arith.constant 0 : index
    %c240 = arith.constant 240 : index
    %351 = vector.load %arg10[%c0_399, %c0_400, %c240] : memref<1x1x256xf32, #tpu.memory_space<vmem>>, vector<1x1x16xf32>
    %352 = vector.shape_cast %351 : vector<1x1x16xf32> to vector<1x16xf32>
    %353 = vector.shape_cast %350 : vector<1x16xf32> to vector<1x1x16xf32>
    tpu.vector_store %arg10[%c0_399, %c0_400, %c240], %353 {strides = array<i32>} : memref<1x1x256xf32, #tpu.memory_space<vmem>>, vector<1x1x16xf32>,
    return
  }
  func.func @transform_0(%arg0: i32) -> (i32, i32, i32) {
    %c0_i32 = arith.constant 0 : i32
    %c0_i32_0 = arith.constant 0 : i32
    %c0_i32_1 = arith.constant 0 : i32
    return %arg0, %c0_i32, %c0_i32_0 : i32, i32, i32
  }
  func.func @transform_1(%arg0: i32) -> (i32, i32) {
    %c0_i32 = arith.constant 0 : i32
    %c0_i32_0 = arith.constant 0 : i32
    %c0_i32_1 = arith.constant 0 : i32
    return %c0_i32, %c0_i32_0 : i32, i32
  }
  func.func @transform_2(%arg0: i32) -> (i32, i32) {
    %c0_i32 = arith.constant 0 : i32
    %c0_i32_0 = arith.constant 0 : i32
    %c0_i32_1 = arith.constant 0 : i32
    return %c0_i32, %c0_i32_0 : i32, i32
  }
  func.func @transform_3(%arg0: i32) -> (i32, i32) {
    %c0_i32 = arith.constant 0 : i32
    %c0_i32_0 = arith.constant 0 : i32
    %c0_i32_1 = arith.constant 0 : i32
    return %c0_i32, %c0_i32_0 : i32, i32
  }
  func.func @transform_4(%arg0: i32) -> (i32, i32) {
    %c0_i32 = arith.constant 0 : i32
    %c0_i32_0 = arith.constant 0 : i32
    %c0_i32_1 = arith.constant 0 : i32
    return %c0_i32, %c0_i32_0 : i32, i32
  }
  func.func @transform_5(%arg0: i32) -> (i32, i32) {
    %c0_i32 = arith.constant 0 : i32
    %c0_i32_0 = arith.constant 0 : i32
    %c0_i32_1 = arith.constant 0 : i32
    return %c0_i32, %c0_i32_0 : i32, i32
  }
  func.func @transform_6(%arg0: i32) -> (i32, i32) {
    %c0_i32 = arith.constant 0 : i32
    %c0_i32_0 = arith.constant 0 : i32
    %c0_i32_1 = arith.constant 0 : i32
    return %c0_i32, %c0_i32_0 : i32, i32
  }
  func.func @transform_7(%arg0: i32) -> (i32, i32) {
    %c0_i32 = arith.constant 0 : i32
    %c0_i32_0 = arith.constant 0 : i32
    %c0_i32_1 = arith.constant 0 : i32
    return %c0_i32, %c0_i32_0 : i32, i32
  }
  func.func @transform_8(%arg0: i32) -> (i32, i32) {
    %c0_i32 = arith.constant 0 : i32
    %c0_i32_0 = arith.constant 0 : i32
    %c0_i32_1 = arith.constant 0 : i32
    return %c0_i32, %c0_i32_0 : i32, i32
  }
  func.func @transform_9(%arg0: i32) -> (i32, i32, i32) {
    %c0_i32 = arith.constant 0 : i32
    %c0_i32_0 = arith.constant 0 : i32
    %c0_i32_1 = arith.constant 0 : i32
    return %arg0, %c0_i32, %c0_i32_0 : i32, i32, i32
  }
}

</mosaic_0001>

<llo_original>
// kernel: tpu_custom_call.1
$region0: #{tpu_custom_call.1}
  #allocation0 [shape = 'u32[]', space=smem, size = 0x4, offset = 0x4, fixed_abs, tag = 'smem constant byte address 0x4 - core index']
  #allocation1 [shape = 'u32[144,128]{1,0:T(1,128)}', space=vmem, size = 0x12000, scoped, tag = 'internal scratch']
  #allocation2 [shape = 'f32[8,400]{1,0:T(8,128)}', space=vmem, size = 0x4000, scoped, tag = 'scratch operand']
  #allocation3 [shape = 'f32[200,316]{1,0:T(8,128)}', space=vmem, size = 0x4b000, scoped, tag = 'scratch operand']
  #allocation4 [shape = 'f32[1,1]{1,0:T(1,128)S(1)}', space=vmem, size = 0x200, scoped, tag = 'scoped memory for tpu_custom_call.1']
  %s0 = inlined_call_operand.vmem [shape: f32[2,1,32], index: 0, kind: input, shape index: {}]
  %s1 = inlined_call_operand.hbm [shape: f32[32,128], index: 1, kind: input, shape index: {}]
  %s2 = inlined_call_operand.vmem [shape: f32[1,128], index: 2, kind: input, shape index: {}]
  %s3 = inlined_call_operand.vmem [shape: f32[8,200], index: 3, kind: input, shape index: {}]
  %s4 = inlined_call_operand.vmem [shape: f32[8,1], index: 4, kind: input, shape index: {}]
  %s5 = inlined_call_operand.vmem [shape: f32[4,200], index: 5, kind: input, shape index: {}]
  %s6 = inlined_call_operand.vmem [shape: f32[4,1], index: 6, kind: input, shape index: {}]
  %s7 = inlined_call_operand.vmem [shape: f32[1,100], index: 7, kind: input, shape index: {}]
  %s8 = inlined_call_operand.<no memory space> [shape: f32[1,1], index: 8, kind: input, shape index: {}]
  %s9 = inlined_call_operand.hbm [shape: f32[2,1,256], index: 9, kind: output, shape index: {}]
  %s10 = sld [smem:[#allocation0]]
  $region73: #{tpu_custom_call.1} parent=0
    _
  %s12 = ssub.s32 1, %s10
  %s13 = scalar_select 0, %s12, %s10
  %v14 = vstv %s8
  %15 = vst [vmem:[#allocation4] sm:$0x1] %v14
  $region1: #{tpu_custom_call.1} parent=0
    #allocation5 [shape = 'u8[16384]{0}', space=vmem, size = 0x4000, scoped, tag = 'input window, operand 1, single buffered']
    #allocation6 [shape = 's32[2]{0}', space=sflag, size = 0x8, scoped, tag = 'scoped memory for tpu_custom_call.1']
    #allocation7 [shape = 's32[2]{0}', space=sflag, size = 0x8, scoped, tag = 'scoped memory for tpu_custom_call.1']
    #allocation8 [shape = 'u8[2048]{0}', space=vmem, size = 0x800, scoped, tag = 'output window, operand 0']
    %16 = vsyncpa [#allocation6], 0
    %17 = vsyncpa [#allocation7], 0
    %s18 = scalar_lea.sflag [#allocation7], 1
    %19 = vsyncpa %s18, 0
    loop: start=0, step=1, limit=4
    $region2: #{tpu_custom_call.1} parent=1 // loop_pre_header
      _
    $region3: #{tpu_custom_call.1} parent=1 // loop_header
      %s21 = sphi 0, %s25
      %p22 = scmp.ge.s32.totalorder %s21, 4
      %s31 = sphi 0, %s33
      %s34 = sphi 0, %s31
      %s35 = sphi 0, %s34
      %s51 = sphi 0, %s35
      %s55 = sphi 0, %s55
      %s57 = sphi 0, %s55
      %s58 = sphi 0, %s57
      %s72 = sphi 0, %s58
      %s76 = sphi 0, %s76
      %s78 = sphi 0, %s76
      %s79 = sphi 0, %s78
      %s93 = sphi 0, %s79
      %s97 = sphi 0, %s97
      %s99 = sphi 0, %s97
      %s100 = sphi 0, %s99
      %s114 = sphi 0, %s100
      %s118 = sphi 0, %s118
      %s120 = sphi 0, %s118
      %s121 = sphi 0, %s120
      %s135 = sphi 0, %s121
      %s139 = sphi 0, %s139
      %s141 = sphi 0, %s139
      %s142 = sphi 0, %s141
      %s156 = sphi 0, %s142
      %s160 = sphi 0, %s160
      %s162 = sphi 0, %s160
      %s163 = sphi 0, %s162
      %s177 = sphi 0, %s163
      %s181 = sphi 0, %s181
      %s183 = sphi 0, %s181
      %s184 = sphi 0, %s183
      %s198 = sphi 0, %s184
      %s202 = sphi 0, %s202
      %s204 = sphi 0, %s202
      %s205 = sphi 0, %s204
      %s219 = sphi 0, %s205
      %s225 = sphi 0, %s227
      %s228 = sphi 0, %s225
      %s229 = sphi 0, %s228
      %s245 = sphi 0, %s229
    $region4: #{tpu_custom_call.1} parent=1 // loop_header_branch
      %24 = sbr.rel (%p22) target = $region8
    $region5: #{tpu_custom_call.1} parent=1 // loop_body
      %s26 = ssub.s32 %s21, 1
      %s27 = ssub.s32 %s21, 2
      %s28 = sadd.s32 %s21, 1
      %s29 = ssub.s32 %s21, %s28
      %p30 = scmp.eq.s32.totalorder %s29, 0
      %s32 = sadd.s32 %s31, 1
      %s33 = scalar_select %p30, %s31, %s32
      %p36 = pneg %p30
      %p37 = scmp.eq.s32.totalorder %s21, 1
      %p38 = por %p36, %p37
      %p39 = scmp.ne.s32.totalorder %s31, %s34
      %p40 = scmp.eq.s32.totalorder %s21, 0
      %p41 = por %p39, %p40
      %p42 = scmp.ne.s32.totalorder %s31, %s34
      %p43 = scmp.eq.s32.totalorder %s26, 1
      %p44 = por %p42, %p43
      %p45 = scmp.ne.s32.totalorder %s34, %s35
      %p46 = scmp.eq.s32.totalorder %s26, 0
      %p47 = por %p45, %p46
      %p48 = scmp.ne.s32.totalorder %s34, %s35
      %p49 = scmp.eq.s32.totalorder %s27, 1
      %p50 = por %p48, %p49
      %p52 = scmp.ne.s32.totalorder %s35, %s51
      %p53 = scmp.eq.s32.totalorder %s27, 0
      %p54 = por %p52, %p53
      %s56 = sadd.s32 %s55, 1
      %p59 = scmp.eq.s32.totalorder %s21, 1
      %p60 = scmp.ne.s32.totalorder %s55, %s57
      %p61 = scmp.eq.s32.totalorder %s21, 0
      %p62 = por %p60, %p61
      %p63 = scmp.ne.s32.totalorder %s55, %s57
      %p64 = scmp.eq.s32.totalorder %s26, 1
      %p65 = por %p63, %p64
      %p66 = scmp.ne.s32.totalorder %s57, %s58
      %p67 = scmp.eq.s32.totalorder %s26, 0
      %p68 = por %p66, %p67
      %p69 = scmp.ne.s32.totalorder %s57, %s58
      %p70 = scmp.eq.s32.totalorder %s27, 1
      %p71 = por %p69, %p70
      %p73 = scmp.ne.s32.totalorder %s58, %s72
      %p74 = scmp.eq.s32.totalorder %s27, 0
      %p75 = por %p73, %p74
      %s77 = sadd.s32 %s76, 1
      %p80 = scmp.eq.s32.totalorder %s21, 1
      %p81 = scmp.ne.s32.totalorder %s76, %s78
      %p82 = scmp.eq.s32.totalorder %s21, 0
      %p83 = por %p81, %p82
      %p84 = scmp.ne.s32.totalorder %s76, %s78
      %p85 = scmp.eq.s32.totalorder %s26, 1
      %p86 = por %p84, %p85
      %p87 = scmp.ne.s32.totalorder %s78, %s79
      %p88 = scmp.eq.s32.totalorder %s26, 0
      %p89 = por %p87, %p88
      %p90 = scmp.ne.s32.totalorder %s78, %s79
      %p91 = scmp.eq.s32.totalorder %s27, 1
      %p92 = por %p90, %p91
      %p94 = scmp.ne.s32.totalorder %s79, %s93
      %p95 = scmp.eq.s32.totalorder %s27, 0
      %p96 = por %p94, %p95
      %s98 = sadd.s32 %s97, 1
      %p101 = scmp.eq.s32.totalorder %s21, 1
      %p102 = scmp.ne.s32.totalorder %s97, %s99
      %p103 = scmp.eq.s32.totalorder %s21, 0
      %p104 = por %p102, %p103
      %p105 = scmp.ne.s32.totalorder %s97, %s99
      %p106 = scmp.eq.s32.totalorder %s26, 1
      %p107 = por %p105, %p106
      %p108 = scmp.ne.s32.totalorder %s99, %s100
      %p109 = scmp.eq.s32.totalorder %s26, 0
      %p110 = por %p108, %p109
      %p111 = scmp.ne.s32.totalorder %s99, %s100
      %p112 = scmp.eq.s32.totalorder %s27, 1
      %p113 = por %p111, %p112
      %p115 = scmp.ne.s32.totalorder %s100, %s114
      %p116 = scmp.eq.s32.totalorder %s27, 0
      %p117 = por %p115, %p116
      %s119 = sadd.s32 %s118, 1
      %p122 = scmp.eq.s32.totalorder %s21, 1
      %p123 = scmp.ne.s32.totalorder %s118, %s120
      %p124 = scmp.eq.s32.totalorder %s21, 0
      %p125 = por %p123, %p124
      %p126 = scmp.ne.s32.totalorder %s118, %s120
      %p127 = scmp.eq.s32.totalorder %s26, 1
      %p128 = por %p126, %p127
      %p129 = scmp.ne.s32.totalorder %s120, %s121
      %p130 = scmp.eq.s32.totalorder %s26, 0
      %p131 = por %p129, %p130
      %p132 = scmp.ne.s32.totalorder %s120, %s121
      %p133 = scmp.eq.s32.totalorder %s27, 1
      %p134 = por %p132, %p133
      %p136 = scmp.ne.s32.totalorder %s121, %s135
      %p137 = scmp.eq.s32.totalorder %s27, 0
      %p138 = por %p136, %p137
      %s140 = sadd.s32 %s139, 1
      %p143 = scmp.eq.s32.totalorder %s21, 1
      %p144 = scmp.ne.s32.totalorder %s139, %s141
      %p145 = scmp.eq.s32.totalorder %s21, 0
      %p146 = por %p144, %p145
      %p147 = scmp.ne.s32.totalorder %s139, %s141
      %p148 = scmp.eq.s32.totalorder %s26, 1
      %p149 = por %p147, %p148
      %p150 = scmp.ne.s32.totalorder %s141, %s142
      %p151 = scmp.eq.s32.totalorder %s26, 0
      %p152 = por %p150, %p151
      %p153 = scmp.ne.s32.totalorder %s141, %s142
      %p154 = scmp.eq.s32.totalorder %s27, 1
      %p155 = por %p153, %p154
      %p157 = scmp.ne.s32.totalorder %s142, %s156
      %p158 = scmp.eq.s32.totalorder %s27, 0
      %p159 = por %p157, %p158
      %s161 = sadd.s32 %s160, 1
      %p164 = scmp.eq.s32.totalorder %s21, 1
      %p165 = scmp.ne.s32.totalorder %s160, %s162
      %p166 = scmp.eq.s32.totalorder %s21, 0
      %p167 = por %p165, %p166
      %p168 = scmp.ne.s32.totalorder %s160, %s162
      %p169 = scmp.eq.s32.totalorder %s26, 1
      %p170 = por %p168, %p169
      %p171 = scmp.ne.s32.totalorder %s162, %s163
      %p172 = scmp.eq.s32.totalorder %s26, 0
      %p173 = por %p171, %p172
      %p174 = scmp.ne.s32.totalorder %s162, %s163
      %p175 = scmp.eq.s32.totalorder %s27, 1
      %p176 = por %p174, %p175
      %p178 = scmp.ne.s32.totalorder %s163, %s177
      %p179 = scmp.eq.s32.totalorder %s27, 0
      %p180 = por %p178, %p179
      %s182 = sadd.s32 %s181, 1
      %p185 = scmp.eq.s32.totalorder %s21, 1
      %p186 = scmp.ne.s32.totalorder %s181, %s183
      %p187 = scmp.eq.s32.totalorder %s21, 0
      %p188 = por %p186, %p187
      %p189 = scmp.ne.s32.totalorder %s181, %s183
      %p190 = scmp.eq.s32.totalorder %s26, 1
      %p191 = por %p189, %p190
      %p192 = scmp.ne.s32.totalorder %s183, %s184
      %p193 = scmp.eq.s32.totalorder %s26, 0
      %p194 = por %p192, %p193
      %p195 = scmp.ne.s32.totalorder %s183, %s184
      %p196 = scmp.eq.s32.totalorder %s27, 1
      %p197 = por %p195, %p196
      %p199 = scmp.ne.s32.totalorder %s184, %s198
      %p200 = scmp.eq.s32.totalorder %s27, 0
      %p201 = por %p199, %p200
      %s203 = sadd.s32 %s202, 1
      %p206 = scmp.eq.s32.totalorder %s21, 1
      %p207 = scmp.ne.s32.totalorder %s202, %s204
      %p208 = scmp.eq.s32.totalorder %s21, 0
      %p209 = por %p207, %p208
      %p210 = scmp.ne.s32.totalorder %s202, %s204
      %p211 = scmp.eq.s32.totalorder %s26, 1
      %p212 = por %p210, %p211
      %p213 = scmp.ne.s32.totalorder %s204, %s205
      %p214 = scmp.eq.s32.totalorder %s26, 0
      %p215 = por %p213, %p214
      %p216 = scmp.ne.s32.totalorder %s204, %s205
      %p217 = scmp.eq.s32.totalorder %s27, 1
      %p218 = por %p216, %p217
      %p220 = scmp.ne.s32.totalorder %s205, %s219
      %p221 = scmp.eq.s32.totalorder %s27, 0
      %p222 = por %p220, %p221
      %s223 = ssub.s32 %s21, %s28
      %p224 = scmp.eq.s32.totalorder %s223, 0
      %s226 = sadd.s32 %s225, 1
      %s227 = scalar_select %p224, %s225, %s226
      %p230 = pneg %p224
      %p231 = scmp.eq.s32.totalorder %s21, 1
      %p232 = por %p230, %p231
      %p233 = scmp.ne.s32.totalorder %s225, %s228
      %p234 = scmp.eq.s32.totalorder %s21, 0
      %p235 = por %p233, %p234
      %p236 = scmp.ne.s32.totalorder %s225, %s228
      %p237 = scmp.eq.s32.totalorder %s26, 1
      %p238 = por %p236, %p237
      %p239 = scmp.ne.s32.totalorder %s228, %s229
      %p240 = scmp.eq.s32.totalorder %s26, 0
      %p241 = por %p239, %p240
      %p242 = scmp.ne.s32.totalorder %s228, %s229
      %p243 = scmp.eq.s32.totalorder %s27, 1
      %p244 = por %p242, %p243
      %p246 = scmp.ne.s32.totalorder %s229, %s245
      %p247 = scmp.eq.s32.totalorder %s27, 0
      %p248 = por %p246, %p247
      %p249 = scmp.le.s32.totalorder 1, %s21
      %p250 = scmp.lt.s32.totalorder %s21, 3
      %p251 = pnand %p249, %p250
      %p252 = pneg %p251
      // Predicated region
      $region9: #{tpu_custom_call.1} parent=5 // pred_check
        _
      $region10: #{tpu_custom_call.1} parent=5 // pred_check_branch
        %254 = sbr.rel (%p251) target = $region12
      $region11: #{tpu_custom_call.1} parent=5 // pred_region
        %s255 = ssub.s32 %s21, 1
        // Predicated region
        $region13: #{tpu_custom_call.1} parent=11 // pred_check
          %p256 = pneg %p68
        $region14: #{tpu_custom_call.1} parent=11 // pred_check_branch
          %258 = sbr.rel (%p256) target = $region16
        $region15: #{tpu_custom_call.1} parent=11 // pred_region
          %s260 = ssub.s32 512, 512
          %261 = vsyncadd [#allocation6], %s260
          %s262 = sshll.u32 [#allocation5], 4
          %s263 = int_to_ptr.vmem [resolvable:$true] %s262
          %268 = dma.hbm_to_vmem [thread:$0]  %s1, 512, %s263, [#allocation6], 128, 128, 8
        $region16: #{tpu_custom_call.1} parent=11 // pred_fallthru
          _
        // Predicated region
        $region17: #{tpu_custom_call.1} parent=11 // pred_check
          %p269 = pneg %p89
        $region18: #{tpu_custom_call.1} parent=11 // pred_check_branch
          %271 = sbr.rel (%p269) target = $region20
        $region19: #{tpu_custom_call.1} parent=11 // pred_region
          _
        $region20: #{tpu_custom_call.1} parent=11 // pred_fallthru
          _
        // Predicated region
        $region21: #{tpu_custom_call.1} parent=11 // pred_check
          %p272 = pneg %p110
        $region22: #{tpu_custom_call.1} parent=11 // pred_check_branch
          %274 = sbr.rel (%p272) target = $region24
        $region23: #{tpu_custom_call.1} parent=11 // pred_region
          _
        $region24: #{tpu_custom_call.1} parent=11 // pred_fallthru
          _
        // Predicated region
        $region25: #{tpu_custom_call.1} parent=11 // pred_check
          %p275 = pneg %p131
        $region26: #{tpu_custom_call.1} parent=11 // pred_check_branch
          %277 = sbr.rel (%p275) target = $region28
        $region27: #{tpu_custom_call.1} parent=11 // pred_region
          _
        $region28: #{tpu_custom_call.1} parent=11 // pred_fallthru
          _
        // Predicated region
        $region29: #{tpu_custom_call.1} parent=11 // pred_check
          %p278 = pneg %p152
        $region30: #{tpu_custom_call.1} parent=11 // pred_check_branch
          %280 = sbr.rel (%p278) target = $region32
        $region31: #{tpu_custom_call.1} parent=11 // pred_region
          _
        $region32: #{tpu_custom_call.1} parent=11 // pred_fallthru
          _
        // Predicated region
        $region33: #{tpu_custom_call.1} parent=11 // pred_check
          %p281 = pneg %p173
        $region34: #{tpu_custom_call.1} parent=11 // pred_check_branch
          %283 = sbr.rel (%p281) target = $region36
        $region35: #{tpu_custom_call.1} parent=11 // pred_region
          _
        $region36: #{tpu_custom_call.1} parent=11 // pred_fallthru
          _
        // Predicated region
        $region37: #{tpu_custom_call.1} parent=11 // pred_check
          %p284 = pneg %p194
        $region38: #{tpu_custom_call.1} parent=11 // pred_check_branch
          %286 = sbr.rel (%p284) target = $region40
        $region39: #{tpu_custom_call.1} parent=11 // pred_region
          _
        $region40: #{tpu_custom_call.1} parent=11 // pred_fallthru
          _
        // Predicated region
        $region41: #{tpu_custom_call.1} parent=11 // pred_check
          %p287 = pneg %p215
        $region42: #{tpu_custom_call.1} parent=11 // pred_check_branch
          %289 = sbr.rel (%p287) target = $region44
        $region43: #{tpu_custom_call.1} parent=11 // pred_region
          _
        $region44: #{tpu_custom_call.1} parent=11 // pred_fallthru
          _
      $region12: #{tpu_custom_call.1} parent=5 // pred_fallthru
        _
      %p290 = scmp.lt.s32.totalorder %s21, 2
      // Predicated region
      $region45: #{tpu_custom_call.1} parent=5 // pred_check
        %p291 = pneg %p290
      $region46: #{tpu_custom_call.1} parent=5 // pred_check_branch
        %293 = sbr.rel (%p291) target = $region48
      $region47: #{tpu_custom_call.1} parent=5 // pred_region
        // Predicated region
        $region49: #{tpu_custom_call.1} parent=47 // pred_check
          %p294 = pneg %p41
        $region50: #{tpu_custom_call.1} parent=47 // pred_check_branch
          %296 = sbr.rel (%p294) target = $region52
        $region51: #{tpu_custom_call.1} parent=47 // pred_region
          %p297 = scmp.lt.s32.totalorder %s21, 1
          %s298 = scalar_select %p297, %s21, 1
          %s299 = scalar_lea.vmem %s0, %s298
        $region52: #{tpu_custom_call.1} parent=47 // pred_fallthru
          _
      $region48: #{tpu_custom_call.1} parent=5 // pred_fallthru
        _
      %p300 = scmp.le.s32.totalorder 1, %s21
      %p301 = scmp.lt.s32.totalorder %s21, 3
      %p302 = pnand %p300, %p301
      %p303 = pneg %p302
      // Predicated region
      $region53: #{tpu_custom_call.1} parent=5 // pred_check
        _
      $region54: #{tpu_custom_call.1} parent=5 // pred_check_branch
        %305 = sbr.rel (%p302) target = $region56
      $region55: #{tpu_custom_call.1} parent=5 // pred_region
        %s306 = ssub.s32 %s21, 1
        // Predicated region
        $region57: #{tpu_custom_call.1} parent=55 // pred_check
          %p307 = pneg %p68
        $region58: #{tpu_custom_call.1} parent=55 // pred_check_branch
          %309 = sbr.rel (%p307) target = $region60
        $region59: #{tpu_custom_call.1} parent=55 // pred_region
          %310 = dma.done [#allocation6], 512
        $region60: #{tpu_custom_call.1} parent=55 // pred_fallthru
          _
        %p311 = scmp.lt.s32.totalorder %s26, 1
        %s312 = scalar_select %p311, %s26, 1
        %s313 = scalar_lea.vmem %s0, %s312
        %p314 = pneg %p47
        %p315 = pneg %p44
        %p316 = pneg %p68
        %p317 = pneg %p65
        %p318 = pneg %p89
        %p319 = pneg %p86
        %p320 = pneg %p110
        %p321 = pneg %p107
        %p322 = pneg %p131
        %p323 = pneg %p128
        %p324 = pneg %p152
        %p325 = pneg %p149
        %p326 = pneg %p173
        %p327 = pneg %p170
        %p328 = pneg %p194
        %p329 = pneg %p191
        %p330 = pneg %p215
        %p331 = pneg %p212
        %p332 = pneg %p241
        %p333 = pneg %p238
        %s334 = sand.u32 %s228, 1
        %s335 = scalar_lea.sflag [#allocation7], %s334
        %s336 = sand.u32 %s228, 1
        %s337 = smul.addr %s336, 2
        %s338 = scalar_lea.vmem [#allocation8], %s337
        %p339 = scmp.lt.s32.totalorder %s26, 1
        %s340 = scalar_select %p339, %s26, 1
        %s341 = scalar_lea.vmem %s0, %s340
        %v342 = vld [vmem:[%s341] sm:$0x1]
        %v343 = vld [vmem:[#allocation5] sm:$0xff]
        %v344 = vld [vmem:[#allocation5 + $0x8] sm:$0xff]
        %v345 = vld [vmem:[#allocation5 + $0x10] sm:$0xff]
        %v346 = vld [vmem:[#allocation5 + $0x18] sm:$0xff]
        %v347 = vld [vmem:[%s2] sm:$0x1]
        %vm348 = vcmask 261120
        %v350 = vsel %vm348, %v342, 0
        %352 = vmatprep.subr.mxu0 0.0
        %353 = vmatpush1.msra.mxu0 %v343
        %354 = vmatprep.subr.mxu0 0.0
        %355 = vmatpush1.msra.mxu0 %v344
        %356 = vmatprep.subr.mxu0 0.0
        %357 = vmatpush1.msra.mxu0 %v345
        %358 = vmatprep.subr.mxu0 0.0
        %359 = vmatpush1.msra.mxu0 %v346
        %360 = vmatprep.subr.mxu0 0.0
        %361 = vmatpush1.msra.mxu0 0.0
        %362 = vmatprep.subr.mxu0 0.0
        %363 = vmatpush1.msra.mxu0 0.0
        %364 = vmatprep.subr.mxu0 0.0
        %365 = vmatpush1.msra.mxu0 0.0
        %366 = vmatprep.subr.mxu0 0.0
        %367 = vmatpush1.msra.mxu0 0.0
        %368 = vmatprep.subr.mxu0 0.0
        %369 = vmatpush1.msra.mxu0 0.0
        %370 = vmatprep.subr.mxu0 0.0
        %371 = vmatpush1.msra.mxu0 0.0
        %372 = vmatprep.subr.mxu0 0.0
        %373 = vmatpush1.msra.mxu0 0.0
        %374 = vmatprep.subr.mxu0 0.0
        %375 = vmatpush1.msra.mxu0 0.0
        %376 = vmatprep.subr.mxu0 0.0
        %377 = vmatpush1.msra.mxu0 0.0
        %378 = vmatprep.subr.mxu0 0.0
        %379 = vmatpush1.msra.mxu0 0.0
        %380 = vmatprep.subr.mxu0 0.0
        %381 = vmatpush1.msra.mxu0 0.0
        %382 = vmatprep.subr.mxu0 0.0
        %383 = vmatpush1.msra.mxu0 0.0
        %384 = vmatprep.subr.mxu0 0.0
        %385 = vmatpush1.msra.mxu0 0.0
        %386 = vmatprep.subr.mxu0 0.0
        %387 = vmatpush1.msra.mxu0 0.0
        %388 = vmatprep.subr.mxu0 0.0
        %389 = vmatpush1.msra.mxu0 0.0
        %390 = vmatprep.subr.mxu0 0.0
        %391 = vmatpush1.msra.mxu0 0.0
        %392 = vmatprep.subr.mxu0 0.0
        %393 = vmatpush1.msra.mxu0 0.0
        %394 = vmatprep.subr.mxu0 0.0
        %395 = vmatpush1.msra.mxu0 0.0
        %396 = vmatprep.subr.mxu0 0.0
        %397 = vmatpush1.msra.mxu0 0.0
        %398 = vmatprep.subr.mxu0 0.0
        %399 = vmatpush1.msra.mxu0 0.0
        %400 = vmatprep.subr.mxu0 0.0
        %401 = vmatpush1.msra.mxu0 0.0
        %402 = vmatprep.subr.mxu0 0.0
        %403 = vmatpush1.msra.mxu0 0.0
        %404 = vmatprep.subr.mxu0 0.0
        %405 = vmatpush1.msra.mxu0 0.0
        %406 = vmatprep.subr.mxu0 0.0
        %407 = vmatpush1.msra.mxu0 0.0
        %408 = vmatprep.subr.mxu0 0.0
        %409 = vmatpush1.msra.mxu0 0.0
        %410 = vmatprep.subr.mxu0 0.0
        %411 = vmatpush1.msra.mxu0 0.0
        %412 = vmatprep.subr.mxu0 0.0
        %413 = vmatpush1.msra.mxu0 0.0
        %414 = vmatprep.subr.mxu0 0.0
        %415 = vmatpush1.msra.mxu0 0.0
        %416 = vmatprep.mubr.f32.mxu0 0.0
        %417 = vmatmul.mubr.f32.gmra.mrb[0].mxu0 %v350
        %v418 = vpop.f32.mrb[0].mxu0
        %v419 = vadd.f32 %v347, %v418
        %v420 = vpop.f32.mrb[0].mxu0
        %421 = vdwg.mxu0
        %v422 = vmax.f32 %v419, 0.0
        %423 = vst [vmem:[#allocation2] sm:$0xff] 0.0
        %424 = vst [vmem:[#allocation2 + $0x8] sm:$0xff] 0.0
        %425 = vst [vmem:[#allocation2 + $0x10] sm:$0xff] 0.0
        %vm426 = vcmask 130048
        %427 = vst.msk [vmem:[#allocation2 + $0x18] sm:$0xff] %vm426, 0.0
        %429 = vrot.lane.b32.xlu0 %v422, 52
        %v430 = vpop.permute.xlu0 %429
        %vm432 = vcmask 450976
        %433 = vst.msk [vmem:[#allocation2] sm:$0x1] %vm432, %v430
        %434 = vrot.lane.b32.xlu0 %v422, 36
        %v435 = vpop.permute.xlu0 %434
        %437 = vst.msk [vmem:[#allocation2 + $0x1] sm:$0x1] %vm432, %v435
        %438 = vrot.lane.b32.xlu0 %v422, 20
        %v439 = vpop.permute.xlu0 %438
        %441 = vst.msk [vmem:[#allocation2 + $0x2] sm:$0x1] %vm432, %v439
        %442 = vrot.lane.b32.xlu0 %v422, 4
        %v443 = vpop.permute.xlu0 %442
        %445 = vst.msk [vmem:[#allocation2 + $0x3] sm:$0x1] %vm432, %v443
        %446 = vrot.lane.b32.xlu0 %v422, 116
        %v447 = vpop.permute.xlu0 %446
        %449 = vst.msk [vmem:[#allocation2 + $0x4] sm:$0x1] %vm432, %v447
        %450 = vrot.lane.b32.xlu0 %v422, 100
        %v451 = vpop.permute.xlu0 %450
        %453 = vst.msk [vmem:[#allocation2 + $0x5] sm:$0x1] %vm432, %v451
        %454 = vrot.lane.b32.xlu0 %v422, 84
        %v455 = vpop.permute.xlu0 %454
        %457 = vst.msk [vmem:[#allocation2 + $0x6] sm:$0x1] %vm432, %v455
        %458 = vrot.lane.b32.xlu0 %v422, 68
        %v459 = vpop.permute.xlu0 %458
        %461 = vst.msk [vmem:[#allocation2 + $0x7] sm:$0x1] %vm432, %v459
        %462 = vrot.lane.b32.xlu0 %v422, 60
        %v463 = vpop.permute.xlu0 %462
        %vm465 = vcmask 549376
        %466 = vst.msk [vmem:[#allocation2] sm:$0x1] %vm465, %v463
        %467 = vrot.lane.b32.xlu0 %v422, 44
        %v468 = vpop.permute.xlu0 %467
        %470 = vst.msk [vmem:[#allocation2 + $0x1] sm:$0x1] %vm465, %v468
        %471 = vrot.lane.b32.xlu0 %v422, 28
        %v472 = vpop.permute.xlu0 %471
        %474 = vst.msk [vmem:[#allocation2 + $0x2] sm:$0x1] %vm465, %v472
        %475 = vrot.lane.b32.xlu0 %v422, 12
        %v476 = vpop.permute.xlu0 %475
        %478 = vst.msk [vmem:[#allocation2 + $0x3] sm:$0x1] %vm465, %v476
        %479 = vrot.lane.b32.xlu0 %v422, 124
        %v480 = vpop.permute.xlu0 %479
        %482 = vst.msk [vmem:[#allocation2 + $0x4] sm:$0x1] %vm465, %v480
        %483 = vrot.lane.b32.xlu0 %v422, 108
        %v484 = vpop.permute.xlu0 %483
        %486 = vst.msk [vmem:[#allocation2 + $0x5] sm:$0x1] %vm465, %v484
        %487 = vrot.lane.b32.xlu0 %v422, 92
        %v488 = vpop.permute.xlu0 %487
        %490 = vst.msk [vmem:[#allocation2 + $0x6] sm:$0x1] %vm465, %v488
        %491 = vrot.lane.b32.xlu0 %v422, 76
        %v492 = vpop.permute.xlu0 %491
        %494 = vst.msk [vmem:[#allocation2 + $0x7] sm:$0x1] %vm465, %v492
        %vm495 = vcmask 647776
        %496 = vst.msk [vmem:[#allocation2] sm:$0x1] %vm495, %v459
        %497 = vst.msk [vmem:[#allocation2 + $0x1] sm:$0x1] %vm495, %v430
        %498 = vst.msk [vmem:[#allocation2 + $0x2] sm:$0x1] %vm495, %v435
        %499 = vst.msk [vmem:[#allocation2 + $0x3] sm:$0x1] %vm495, %v439
        %500 = vst.msk [vmem:[#allocation2 + $0x4] sm:$0x1] %vm495, %v443
        %501 = vst.msk [vmem:[#allocation2 + $0x5] sm:$0x1] %vm495, %v447
        %502 = vst.msk [vmem:[#allocation2 + $0x6] sm:$0x1] %vm495, %v451
        %503 = vst.msk [vmem:[#allocation2 + $0x7] sm:$0x1] %vm495, %v455
        %vm504 = vcmask 746176
        %505 = vst.msk [vmem:[#allocation2] sm:$0x1] %vm504, %v492
        %506 = vst.msk [vmem:[#allocation2 + $0x1] sm:$0x1] %vm504, %v463
        %507 = vst.msk [vmem:[#allocation2 + $0x2] sm:$0x1] %vm504, %v468
        %508 = vst.msk [vmem:[#allocation2 + $0x3] sm:$0x1] %vm504, %v472
        %509 = vst.msk [vmem:[#allocation2 + $0x4] sm:$0x1] %vm504, %v476
        %510 = vst.msk [vmem:[#allocation2 + $0x5] sm:$0x1] %vm504, %v480
        %511 = vst.msk [vmem:[#allocation2 + $0x6] sm:$0x1] %vm504, %v484
        %512 = vst.msk [vmem:[#allocation2 + $0x7] sm:$0x1] %vm504, %v488
        %v513 = vld [vmem:[#allocation2] sm:$0xff]
        %vm514 = vcmask 752640
        %515 = vst.msk [vmem:[#allocation3] sm:$0xff] %vm514, %v513
        %v516 = vld [vmem:[#allocation2] sm:$0xff]
        %518 = vrot.lane.b32.xlu0 %v516, 127
        %v519 = vpop.permute.xlu0 %518
        %521 = vst.msk [vmem:[#allocation3 + $0x18] sm:$0xff] %vm514, %v519
        %v522 = vld [vmem:[#allocation2] sm:$0xff]
        %524 = vrot.lane.b32.xlu0 %v522, 126
        %v525 = vpop.permute.xlu0 %524
        %527 = vst.msk [vmem:[#allocation3 + $0x30] sm:$0xff] %vm514, %v525
        %v528 = vld [vmem:[#allocation2] sm:$0xff]
        %530 = vrot.lane.b32.xlu0 %v528, 125
        %v531 = vpop.permute.xlu0 %530
        %533 = vst.msk [vmem:[#allocation3 + $0x48] sm:$0xff] %vm514, %v531
        %v534 = vld [vmem:[#allocation2] sm:$0xff]
        %536 = vrot.lane.b32.xlu0 %v534, 124
        %v537 = vpop.permute.xlu0 %536
        %539 = vst.msk [vmem:[#allocation3 + $0x60] sm:$0xff] %vm514, %v537
        %v540 = vld [vmem:[#allocation2] sm:$0xff]
        %542 = vrot.lane.b32.xlu0 %v540, 116
        %v543 = vpop.permute.xlu0 %542
        %545 = vst.msk [vmem:[#allocation3 + $0x78] sm:$0xff] %vm514, %v543
        %v546 = vld [vmem:[#allocation2] sm:$0xff]
        %548 = vrot.lane.b32.xlu0 %v546, 115
        %v549 = vpop.permute.xlu0 %548
        %551 = vst.msk [vmem:[#allocation3 + $0x90] sm:$0xff] %vm514, %v549
        %v552 = vld [vmem:[#allocation2] sm:$0xff]
        %554 = vrot.lane.b32.xlu0 %v552, 114
        %v555 = vpop.permute.xlu0 %554
        %557 = vst.msk [vmem:[#allocation3 + $0xa8] sm:$0xff] %vm514, %v555
        %v558 = vld [vmem:[#allocation2] sm:$0xff]
        %560 = vrot.lane.b32.xlu0 %v558, 113
        %v561 = vpop.permute.xlu0 %560
        %563 = vst.msk [vmem:[#allocation3 + $0xc0] sm:$0xff] %vm514, %v561
        %v564 = vld [vmem:[#allocation2] sm:$0xff]
        %566 = vrot.lane.b32.xlu0 %v564, 112
        %v567 = vpop.permute.xlu0 %566
        %569 = vst.msk [vmem:[#allocation3 + $0xd8] sm:$0xff] %vm514, %v567
        %v570 = vld [vmem:[#allocation2] sm:$0xff]
        %572 = vrot.lane.b32.xlu0 %v570, 104
        %v573 = vpop.permute.xlu0 %572
        %575 = vst.msk [vmem:[#allocation3 + $0xf0] sm:$0xff] %vm514, %v573
        %v576 = vld [vmem:[#allocation2] sm:$0xff]
        %578 = vrot.lane.b32.xlu0 %v576, 103
        %v579 = vpop.permute.xlu0 %578
        %581 = vst.msk [vmem:[#allocation3 + $0x108] sm:$0xff] %vm514, %v579
        %v582 = vld [vmem:[#allocation2] sm:$0xff]
        %584 = vrot.lane.b32.xlu0 %v582, 102
        %v585 = vpop.permute.xlu0 %584
        %587 = vst.msk [vmem:[#allocation3 + $0x120] sm:$0xff] %vm514, %v585
        %v588 = vld [vmem:[#allocation2] sm:$0xff]
        %590 = vrot.lane.b32.xlu0 %v588, 101
        %v591 = vpop.permute.xlu0 %590
        %593 = vst.msk [vmem:[#allocation3 + $0x138] sm:$0xff] %vm514, %v591
        %v594 = vld [vmem:[#allocation2] sm:$0xff]
        %596 = vrot.lane.b32.xlu0 %v594, 100
        %v597 = vpop.permute.xlu0 %596
        %599 = vst.msk [vmem:[#allocation3 + $0x150] sm:$0xff] %vm514, %v597
        %v600 = vld [vmem:[#allocation2] sm:$0xff]
        %602 = vrot.lane.b32.xlu0 %v600, 92
        %v603 = vpop.permute.xlu0 %602
        %605 = vst.msk [vmem:[#allocation3 + $0x168] sm:$0xff] %vm514, %v603
        %v606 = vld [vmem:[#allocation2] sm:$0xff]
        %v607 = vld [vmem:[#allocation2 + $0x8] sm:$0xff]
        %610 = vrot.lane.b32.xlu0 %v606, 91
        %v611 = vpop.permute.xlu0 %610
        %612 = vrot.lane.b32.xlu0 %v607, 91
        %v613 = vpop.permute.xlu0 %612
        %vm614 = vcmask 744448
        %v615 = vsel %vm614, %v611, %v613
        %617 = vst.msk [vmem:[#allocation3 + $0x180] sm:$0xff] %vm514, %v615
        %v618 = vld [vmem:[#allocation2] sm:$0xff]
        %v619 = vld [vmem:[#allocation2 + $0x8] sm:$0xff]
        %622 = vrot.lane.b32.xlu0 %v618, 90
        %v623 = vpop.permute.xlu0 %622
        %624 = vrot.lane.b32.xlu0 %v619, 90
        %v625 = vpop.permute.xlu0 %624
        %vm626 = vcmask 736256
        %v627 = vsel %vm626, %v623, %v625
        %629 = vst.msk [vmem:[#allocation3 + $0x198] sm:$0xff] %vm514, %v627
        %v630 = vld [vmem:[#allocation2] sm:$0xff]
        %v631 = vld [vmem:[#allocation2 + $0x8] sm:$0xff]
        %634 = vrot.lane.b32.xlu0 %v630, 89
        %v635 = vpop.permute.xlu0 %634
        %636 = vrot.lane.b32.xlu0 %v631, 89
        %v637 = vpop.permute.xlu0 %636
        %vm638 = vcmask 728064
        %v639 = vsel %vm638, %v635, %v637
        %641 = vst.msk [vmem:[#allocation3 + $0x1b0] sm:$0xff] %vm514, %v639
        %v642 = vld [vmem:[#allocation2] sm:$0xff]
        %v643 = vld [vmem:[#allocation2 + $0x8] sm:$0xff]
        %646 = vrot.lane.b32.xlu0 %v642, 88
        %v647 = vpop.permute.xlu0 %646
        %648 = vrot.lane.b32.xlu0 %v643, 88
        %v649 = vpop.permute.xlu0 %648
        %vm650 = vcmask 719872
        %v651 = vsel %vm650, %v647, %v649
        %653 = vst.msk [vmem:[#allocation3 + $0x1c8] sm:$0xff] %vm514, %v651
        %v654 = vld [vmem:[#allocation2] sm:$0xff]
        %v655 = vld [vmem:[#allocation2 + $0x8] sm:$0xff]
        %658 = vrot.lane.b32.xlu0 %v654, 80
        %v659 = vpop.permute.xlu0 %658
        %660 = vrot.lane.b32.xlu0 %v655, 80
        %v661 = vpop.permute.xlu0 %660
        %vm662 = vcmask 654336
        %v663 = vsel %vm662, %v659, %v661
        %665 = vst.msk [vmem:[#allocation3 + $0x1e0] sm:$0xff] %vm514, %v663
        %v666 = vld [vmem:[#allocation2] sm:$0xff]
        %v667 = vld [vmem:[#allocation2 + $0x8] sm:$0xff]
        %670 = vrot.lane.b32.xlu0 %v666, 79
        %v671 = vpop.permute.xlu0 %670
        %672 = vrot.lane.b32.xlu0 %v667, 79
        %v673 = vpop.permute.xlu0 %672
        %vm674 = vcmask 646144
        %v675 = vsel %vm674, %v671, %v673
        %677 = vst.msk [vmem:[#allocation3 + $0x1f8] sm:$0xff] %vm514, %v675
        %v678 = vld [vmem:[#allocation2] sm:$0xff]
        %v679 = vld [vmem:[#allocation2 + $0x8] sm:$0xff]
        %682 = vrot.lane.b32.xlu0 %v678, 78
        %v683 = vpop.permute.xlu0 %682
        %684 = vrot.lane.b32.xlu0 %v679, 78
        %v685 = vpop.permute.xlu0 %684
        %vm686 = vcmask 637952
        %v687 = vsel %vm686, %v683, %v685
        %689 = vst.msk [vmem:[#allocation3 + $0x210] sm:$0xff] %vm514, %v687
        %v690 = vld [vmem:[#allocation2] sm:$0xff]
        %v691 = vld [vmem:[#allocation2 + $0x8] sm:$0xff]
        %694 = vrot.lane.b32.xlu0 %v690, 77
        %v695 = vpop.permute.xlu0 %694
        %696 = vrot.lane.b32.xlu0 %v691, 77
        %v697 = vpop.permute.xlu0 %696
        %vm698 = vcmask 629760
        %v699 = vsel %vm698, %v695, %v697
        %701 = vst.msk [vmem:[#allocation3 + $0x228] sm:$0xff] %vm514, %v699
        %v702 = vld [vmem:[#allocation2] sm:$0xff]
        %v703 = vld [vmem:[#allocation2 + $0x8] sm:$0xff]
        %706 = vrot.lane.b32.xlu0 %v702, 76
        %v707 = vpop.permute.xlu0 %706
        %708 = vrot.lane.b32.xlu0 %v703, 76
        %v709 = vpop.permute.xlu0 %708
        %vm710 = vcmask 621568
        %v711 = vsel %vm710, %v707, %v709
        %713 = vst.msk [vmem:[#allocation3 + $0x240] sm:$0xff] %vm514, %v711
        %v714 = vld [vmem:[%s3] sm:$0xff]
        %v715 = vld [vmem:[%s3 + $0x8] sm:$0xff]
        %v716 = vld [vmem:[#allocation3] sm:$0xff]
        %v717 = vld [vmem:[#allocation3 + $0x18] sm:$0xff]
        %v718 = vld [vmem:[#allocation3 + $0x30] sm:$0xff]
        %v719 = vld [vmem:[#allocation3 + $0x48] sm:$0xff]
        %v720 = vld [vmem:[#allocation3 + $0x60] sm:$0xff]
        %v721 = vld [vmem:[#allocation3 + $0x78] sm:$0xff]
        %v722 = vld [vmem:[#allocation3 + $0x90] sm:$0xff]
        %v723 = vld [vmem:[#allocation3 + $0xa8] sm:$0xff]
        %v724 = vld [vmem:[#allocation3 + $0xc0] sm:$0xff]
        %v725 = vld [vmem:[#allocation3 + $0xd8] sm:$0xff]
        %v726 = vld [vmem:[#allocation3 + $0xf0] sm:$0xff]
        %v727 = vld [vmem:[#allocation3 + $0x108] sm:$0xff]
        %v728 = vld [vmem:[#allocation3 + $0x120] sm:$0xff]
        %v729 = vld [vmem:[#allocation3 + $0x138] sm:$0xff]
        %v730 = vld [vmem:[#allocation3 + $0x150] sm:$0xff]
        %v731 = vld [vmem:[#allocation3 + $0x168] sm:$0xff]
        %v732 = vld [vmem:[#allocation3 + $0x180] sm:$0xff]
        %v733 = vld [vmem:[#allocation3 + $0x198] sm:$0xff]
        %v734 = vld [vmem:[#allocation3 + $0x1b0] sm:$0xff]
        %v735 = vld [vmem:[#allocation3 + $0x1c8] sm:$0xff]
        %v736 = vld [vmem:[#allocation3 + $0x1e0] sm:$0xff]
        %v737 = vld [vmem:[#allocation3 + $0x1f8] sm:$0xff]
        %v738 = vld [vmem:[#allocation3 + $0x210] sm:$0xff]
        %v739 = vld [vmem:[#allocation3 + $0x228] sm:$0xff]
        %v740 = vld [vmem:[#allocation3 + $0x240] sm:$0xff]
        %v741 = vld [vmem:[%s4] sm:$0xff]
        %743 = vset.pattern.permute.xlu0 0
        %744 = vperm.xlu0 %743, %v741
        %v745 = vpop.permute.xlu0 %744
        %vm747 = vcmask 588800
        %v749 = vsel %vm747, %v715, 0
        %751 = vmatprep.subr.mxu0 0.0
        %752 = vmatpush1.msra.mxu0 %v716
        %753 = vmatprep.subr.mxu0 0.0
        %754 = vmatpush1.msra.mxu0 %v717
        %755 = vmatprep.subr.mxu0 0.0
        %756 = vmatpush1.msra.mxu0 %v718
        %757 = vmatprep.subr.mxu0 0.0
        %758 = vmatpush1.msra.mxu0 %v719
        %759 = vmatprep.subr.mxu0 0.0
        %760 = vmatpush1.msra.mxu0 %v720
        %761 = vmatprep.subr.mxu0 0.0
        %762 = vmatpush1.msra.mxu0 %v721
        %763 = vmatprep.subr.mxu0 0.0
        %764 = vmatpush1.msra.mxu0 %v722
        %765 = vmatprep.subr.mxu0 0.0
        %766 = vmatpush1.msra.mxu0 %v723
        %767 = vmatprep.subr.mxu0 0.0
        %768 = vmatpush1.msra.mxu0 %v724
        %769 = vmatprep.subr.mxu0 0.0
        %770 = vmatpush1.msra.mxu0 %v725
        %771 = vmatprep.subr.mxu0 0.0
        %772 = vmatpush1.msra.mxu0 %v726
        %773 = vmatprep.subr.mxu0 0.0
        %774 = vmatpush1.msra.mxu0 %v727
        %775 = vmatprep.subr.mxu0 0.0
        %776 = vmatpush1.msra.mxu0 %v728
        %777 = vmatprep.subr.mxu0 0.0
        %778 = vmatpush1.msra.mxu0 %v729
        %779 = vmatprep.subr.mxu0 0.0
        %780 = vmatpush1.msra.mxu0 %v730
        %781 = vmatprep.subr.mxu0 0.0
        %782 = vmatpush1.msra.mxu0 %v731
        %783 = vmatprep.subr.mxu0 0.0
        %784 = vmatpush1.msra.mxu0 %v732
        %785 = vmatprep.subr.mxu0 0.0
        %786 = vmatpush1.msra.mxu0 %v733
        %787 = vmatprep.subr.mxu0 0.0
        %788 = vmatpush1.msra.mxu0 %v734
        %789 = vmatprep.subr.mxu0 0.0
        %790 = vmatpush1.msra.mxu0 %v735
        %791 = vmatprep.subr.mxu0 0.0
        %792 = vmatpush1.msra.mxu0 %v736
        %793 = vmatprep.subr.mxu0 0.0
        %794 = vmatpush1.msra.mxu0 %v737
        %795 = vmatprep.subr.mxu0 0.0
        %796 = vmatpush1.msra.mxu0 %v738
        %797 = vmatprep.subr.mxu0 0.0
        %798 = vmatpush1.msra.mxu0 %v739
        %799 = vmatprep.subr.mxu0 0.0
        %800 = vmatpush1.msra.mxu0 %v740
        %801 = vmatprep.subr.mxu0 0.0
        %802 = vmatpush1.msra.mxu0 0.0
        %803 = vmatprep.subr.mxu0 0.0
        %804 = vmatpush1.msra.mxu0 0.0
        %805 = vmatprep.subr.mxu0 0.0
        %806 = vmatpush1.msra.mxu0 0.0
        %807 = vmatprep.subr.mxu0 0.0
        %808 = vmatpush1.msra.mxu0 0.0
        %809 = vmatprep.subr.mxu0 0.0
        %810 = vmatpush1.msra.mxu0 0.0
        %811 = vmatprep.subr.mxu0 0.0
        %812 = vmatpush1.msra.mxu0 0.0
        %813 = vmatprep.subr.mxu0 0.0
        %814 = vmatpush1.msra.mxu0 0.0
        %815 = vmatprep.mubr.f32.mxu0 %v749
        %816 = vmatmul.mubr.f32.gmra.mrb[0].mxu0 %v714
        %v817 = vpop.f32.mrb[0].mxu0
        %v818 = vadd.f32 %v745, %v817
        %v819 = vpop.f32.mrb[0].mxu0
        %820 = vdwg.mxu0
        %v821 = vmax.f32 %v818, 0.0
        %822 = vst [vmem:[#allocation2] sm:$0xff] 0.0
        %823 = vst [vmem:[#allocation2 + $0x8] sm:$0xff] 0.0
        %824 = vst [vmem:[#allocation2 + $0x10] sm:$0xff] 0.0
        %825 = vst.msk [vmem:[#allocation2 + $0x18] sm:$0xff] %vm426, 0.0
        %827 = vrot.lane.b32.xlu0 %v821, 68
        %v828 = vpop.permute.xlu0 %827
        %vm830 = vcmask 622112
        %831 = vst.msk [vmem:[#allocation2] sm:$0xff] %vm830, %v828
        %832 = vrot.lane.b32.xlu0 %v821, 72
        %v833 = vpop.permute.xlu0 %832
        %vm835 = vcmask 753312
        %836 = vst.msk [vmem:[#allocation2] sm:$0xff] %vm835, %v833
        %837 = vrot.lane.b32.xlu0 %v821, 76
        %v838 = vpop.permute.xlu0 %837
        %vm840 = vcmask 884512
        %841 = vst.msk [vmem:[#allocation2] sm:$0xff] %vm840, %v838
        %842 = vrot.lane.b32.xlu0 %v821, 80
        %v843 = vpop.permute.xlu0 %842
        %vm845 = vcmask 1015712
        %846 = vst.msk [vmem:[#allocation2] sm:$0xff] %vm845, %v843
        %847 = vrot.lane.b32.xlu0 %v821, 84
        %v848 = vpop.permute.xlu0 %847
        %vm850 = vcmask 97312
        %851 = vst.msk [vmem:[#allocation2 + $0x8] sm:$0xff] %vm850, %v848
        %852 = vrot.lane.b32.xlu0 %v821, 88
        %v853 = vpop.permute.xlu0 %852
        %vm855 = vcmask 228512
        %856 = vst.msk [vmem:[#allocation2 + $0x8] sm:$0xff] %vm855, %v853
        %857 = vrot.lane.b32.xlu0 %v821, 92
        %v858 = vpop.permute.xlu0 %857
        %vm860 = vcmask 359712
        %861 = vst.msk [vmem:[#allocation2 + $0x8] sm:$0xff] %vm860, %v858
        %862 = vrot.lane.b32.xlu0 %v821, 96
        %v863 = vpop.permute.xlu0 %862
        %vm865 = vcmask 490912
        %866 = vst.msk [vmem:[#allocation2 + $0x8] sm:$0xff] %vm865, %v863
        %v867 = vld [vmem:[#allocation2] sm:$0xff]
        %v868 = vld [vmem:[#allocation2 + $0x8] sm:$0xff]
        %869 = vst [vmem:[#allocation3] sm:$0xff] %v867
        %vm870 = vcmask 490496
        %871 = vst.msk [vmem:[#allocation3 + $0x8] sm:$0xff] %vm870, %v868
        %v872 = vld [vmem:[#allocation2] sm:$0xff]
        %v873 = vld [vmem:[#allocation2 + $0x8] sm:$0xff]
        %876 = vrot.lane.b32.xlu0 %v872, 127
        %v877 = vpop.permute.xlu0 %876
        %878 = vrot.lane.b32.xlu0 %v873, 127
        %v879 = vpop.permute.xlu0 %878
        %vm880 = vcmask 1039360
        %v881 = vsel %vm880, %v877, %v879
        %884 = vst [vmem:[#allocation3 + $0x18] sm:$0xff] %v881
        %885 = vst.msk [vmem:[#allocation3 + $0x20] sm:$0xff] %vm870, %v879
        %v886 = vld [vmem:[#allocation2] sm:$0xff]
        %v887 = vld [vmem:[#allocation2 + $0x8] sm:$0xff]
        %890 = vrot.lane.b32.xlu0 %v886, 126
        %v891 = vpop.permute.xlu0 %890
        %892 = vrot.lane.b32.xlu0 %v887, 126
        %v893 = vpop.permute.xlu0 %892
        %vm894 = vcmask 1031168
        %v895 = vsel %vm894, %v891, %v893
        %898 = vst [vmem:[#allocation3 + $0x30] sm:$0xff] %v895
        %899 = vst.msk [vmem:[#allocation3 + $0x38] sm:$0xff] %vm870, %v893
        %v900 = vld [vmem:[#allocation2] sm:$0xff]
        %v901 = vld [vmem:[#allocation2 + $0x8] sm:$0xff]
        %904 = vrot.lane.b32.xlu0 %v900, 125
        %v905 = vpop.permute.xlu0 %904
        %906 = vrot.lane.b32.xlu0 %v901, 125
        %v907 = vpop.permute.xlu0 %906
        %vm908 = vcmask 1022976
        %v909 = vsel %vm908, %v905, %v907
        %912 = vst [vmem:[#allocation3 + $0x48] sm:$0xff] %v909
        %913 = vst.msk [vmem:[#allocation3 + $0x50] sm:$0xff] %vm870, %v907
        %v914 = vld [vmem:[#allocation2] sm:$0xff]
        %v915 = vld [vmem:[#allocation2 + $0x8] sm:$0xff]
        %918 = vrot.lane.b32.xlu0 %v914, 124
        %v919 = vpop.permute.xlu0 %918
        %920 = vrot.lane.b32.xlu0 %v915, 124
        %v921 = vpop.permute.xlu0 %920
        %vm922 = vcmask 1014784
        %v923 = vsel %vm922, %v919, %v921
        %926 = vst [vmem:[#allocation3 + $0x60] sm:$0xff] %v923
        %927 = vst.msk [vmem:[#allocation3 + $0x68] sm:$0xff] %vm870, %v921
        %v928 = vld [vmem:[#allocation2] sm:$0xff]
        %v929 = vld [vmem:[#allocation2 + $0x8] sm:$0xff]
        %932 = vrot.lane.b32.xlu0 %v928, 112
        %v933 = vpop.permute.xlu0 %932
        %934 = vrot.lane.b32.xlu0 %v929, 112
        %v935 = vpop.permute.xlu0 %934
        %vm936 = vcmask 916480
        %v937 = vsel %vm936, %v933, %v935
        %940 = vst [vmem:[#allocation3 + $0x78] sm:$0xff] %v937
        %941 = vst.msk [vmem:[#allocation3 + $0x80] sm:$0xff] %vm870, %v935
        %v942 = vld [vmem:[#allocation2] sm:$0xff]
        %v943 = vld [vmem:[#allocation2 + $0x8] sm:$0xff]
        %946 = vrot.lane.b32.xlu0 %v942, 111
        %v947 = vpop.permute.xlu0 %946
        %948 = vrot.lane.b32.xlu0 %v943, 111
        %v949 = vpop.permute.xlu0 %948
        %vm950 = vcmask 908288
        %v951 = vsel %vm950, %v947, %v949
        %954 = vst [vmem:[#allocation3 + $0x90] sm:$0xff] %v951
        %955 = vst.msk [vmem:[#allocation3 + $0x98] sm:$0xff] %vm870, %v949
        %v956 = vld [vmem:[#allocation2] sm:$0xff]
        %v957 = vld [vmem:[#allocation2 + $0x8] sm:$0xff]
        %960 = vrot.lane.b32.xlu0 %v956, 110
        %v961 = vpop.permute.xlu0 %960
        %962 = vrot.lane.b32.xlu0 %v957, 110
        %v963 = vpop.permute.xlu0 %962
        %vm964 = vcmask 900096
        %v965 = vsel %vm964, %v961, %v963
        %968 = vst [vmem:[#allocation3 + $0xa8] sm:$0xff] %v965
        %969 = vst.msk [vmem:[#allocation3 + $0xb0] sm:$0xff] %vm870, %v963
        %v970 = vld [vmem:[#allocation2] sm:$0xff]
        %v971 = vld [vmem:[#allocation2 + $0x8] sm:$0xff]
        %974 = vrot.lane.b32.xlu0 %v970, 109
        %v975 = vpop.permute.xlu0 %974
        %976 = vrot.lane.b32.xlu0 %v971, 109
        %v977 = vpop.permute.xlu0 %976
        %vm978 = vcmask 891904
        %v979 = vsel %vm978, %v975, %v977
        %982 = vst [vmem:[#allocation3 + $0xc0] sm:$0xff] %v979
        %983 = vst.msk [vmem:[#allocation3 + $0xc8] sm:$0xff] %vm870, %v977
        %v984 = vld [vmem:[#allocation2] sm:$0xff]
        %v985 = vld [vmem:[#allocation2 + $0x8] sm:$0xff]
        %988 = vrot.lane.b32.xlu0 %v984, 108
        %v989 = vpop.permute.xlu0 %988
        %990 = vrot.lane.b32.xlu0 %v985, 108
        %v991 = vpop.permute.xlu0 %990
        %vm992 = vcmask 883712
        %v993 = vsel %vm992, %v989, %v991
        %996 = vst [vmem:[#allocation3 + $0xd8] sm:$0xff] %v993
        %997 = vst.msk [vmem:[#allocation3 + $0xe0] sm:$0xff] %vm870, %v991
        %v998 = vld [vmem:[#allocation2] sm:$0xff]
        %v999 = vld [vmem:[#allocation2 + $0x8] sm:$0xff]
        %1002 = vrot.lane.b32.xlu0 %v998, 96
        %v1003 = vpop.permute.xlu0 %1002
        %1004 = vrot.lane.b32.xlu0 %v999, 96
        %v1005 = vpop.permute.xlu0 %1004
        %vm1006 = vcmask 785408
        %v1007 = vsel %vm1006, %v1003, %v1005
        %1010 = vst [vmem:[#allocation3 + $0xf0] sm:$0xff] %v1007
        %1011 = vst.msk [vmem:[#allocation3 + $0xf8] sm:$0xff] %vm870, %v1005
        %v1012 = vld [vmem:[#allocation2] sm:$0xff]
        %v1013 = vld [vmem:[#allocation2 + $0x8] sm:$0xff]
        %1016 = vrot.lane.b32.xlu0 %v1012, 95
        %v1017 = vpop.permute.xlu0 %1016
        %1018 = vrot.lane.b32.xlu0 %v1013, 95
        %v1019 = vpop.permute.xlu0 %1018
        %vm1020 = vcmask 777216
        %v1021 = vsel %vm1020, %v1017, %v1019
        %1024 = vst [vmem:[#allocation3 + $0x108] sm:$0xff] %v1021
        %1025 = vst.msk [vmem:[#allocation3 + $0x110] sm:$0xff] %vm870, %v1019
        %v1026 = vld [vmem:[#allocation2] sm:$0xff]
        %v1027 = vld [vmem:[#allocation2 + $0x8] sm:$0xff]
        %1030 = vrot.lane.b32.xlu0 %v1026, 94
        %v1031 = vpop.permute.xlu0 %1030
        %1032 = vrot.lane.b32.xlu0 %v1027, 94
        %v1033 = vpop.permute.xlu0 %1032
        %vm1034 = vcmask 769024
        %v1035 = vsel %vm1034, %v1031, %v1033
        %1038 = vst [vmem:[#allocation3 + $0x120] sm:$0xff] %v1035
        %1039 = vst.msk [vmem:[#allocation3 + $0x128] sm:$0xff] %vm870, %v1033
        %v1040 = vld [vmem:[#allocation2] sm:$0xff]
        %v1041 = vld [vmem:[#allocation2 + $0x8] sm:$0xff]
        %1044 = vrot.lane.b32.xlu0 %v1040, 93
        %v1045 = vpop.permute.xlu0 %1044
        %1046 = vrot.lane.b32.xlu0 %v1041, 93
        %v1047 = vpop.permute.xlu0 %1046
        %vm1048 = vcmask 760832
        %v1049 = vsel %vm1048, %v1045, %v1047
        %1052 = vst [vmem:[#allocation3 + $0x138] sm:$0xff] %v1049
        %1053 = vst.msk [vmem:[#allocation3 + $0x140] sm:$0xff] %vm870, %v1047
        %v1054 = vld [vmem:[#allocation2] sm:$0xff]
        %v1055 = vld [vmem:[#allocation2 + $0x8] sm:$0xff]
        %1058 = vrot.lane.b32.xlu0 %v1054, 92
        %v1059 = vpop.permute.xlu0 %1058
        %1060 = vrot.lane.b32.xlu0 %v1055, 92
        %v1061 = vpop.permute.xlu0 %1060
        %v1062 = vsel %vm514, %v1059, %v1061
        %1065 = vst [vmem:[#allocation3 + $0x150] sm:$0xff] %v1062
        %1066 = vst.msk [vmem:[#allocation3 + $0x158] sm:$0xff] %vm870, %v1061
        %v1067 = vld [vmem:[#allocation2] sm:$0xff]
        %v1068 = vld [vmem:[#allocation2 + $0x8] sm:$0xff]
        %1071 = vrot.lane.b32.xlu0 %v1067, 80
        %v1072 = vpop.permute.xlu0 %1071
        %1073 = vrot.lane.b32.xlu0 %v1068, 80
        %v1074 = vpop.permute.xlu0 %1073
        %v1075 = vsel %vm662, %v1072, %v1074
        %1078 = vst [vmem:[#allocation3 + $0x168] sm:$0xff] %v1075
        %1079 = vst.msk [vmem:[#allocation3 + $0x170] sm:$0xff] %vm870, %v1074
        %v1080 = vld [vmem:[#allocation2] sm:$0xff]
        %v1081 = vld [vmem:[#allocation2 + $0x8] sm:$0xff]
        %1084 = vrot.lane.b32.xlu0 %v1080, 79
        %v1085 = vpop.permute.xlu0 %1084
        %1086 = vrot.lane.b32.xlu0 %v1081, 79
        %v1087 = vpop.permute.xlu0 %1086
        %v1088 = vsel %vm674, %v1085, %v1087
        %1091 = vst [vmem:[#allocation3 + $0x180] sm:$0xff] %v1088
        %1092 = vst.msk [vmem:[#allocation3 + $0x188] sm:$0xff] %vm870, %v1087
        %v1093 = vld [vmem:[#allocation2] sm:$0xff]
        %v1094 = vld [vmem:[#allocation2 + $0x8] sm:$0xff]
        %1097 = vrot.lane.b32.xlu0 %v1093, 78
        %v1098 = vpop.permute.xlu0 %1097
        %1099 = vrot.lane.b32.xlu0 %v1094, 78
        %v1100 = vpop.permute.xlu0 %1099
        %v1101 = vsel %vm686, %v1098, %v1100
        %1104 = vst [vmem:[#allocation3 + $0x198] sm:$0xff] %v1101
        %1105 = vst.msk [vmem:[#allocation3 + $0x1a0] sm:$0xff] %vm870, %v1100
        %v1106 = vld [vmem:[#allocation2] sm:$0xff]
        %v1107 = vld [vmem:[#allocation2 + $0x8] sm:$0xff]
        %1110 = vrot.lane.b32.xlu0 %v1106, 77
        %v1111 = vpop.permute.xlu0 %1110
        %1112 = vrot.lane.b32.xlu0 %v1107, 77
        %v1113 = vpop.permute.xlu0 %1112
        %v1114 = vsel %vm698, %v1111, %v1113
        %1117 = vst [vmem:[#allocation3 + $0x1b0] sm:$0xff] %v1114
        %1118 = vst.msk [vmem:[#allocation3 + $0x1b8] sm:$0xff] %vm870, %v1113
        %v1119 = vld [vmem:[#allocation2] sm:$0xff]
        %v1120 = vld [vmem:[#allocation2 + $0x8] sm:$0xff]
        %1123 = vrot.lane.b32.xlu0 %v1119, 76
        %v1124 = vpop.permute.xlu0 %1123
        %1125 = vrot.lane.b32.xlu0 %v1120, 76
        %v1126 = vpop.permute.xlu0 %1125
        %v1127 = vsel %vm710, %v1124, %v1126
        %1130 = vst [vmem:[#allocation3 + $0x1c8] sm:$0xff] %v1127
        %1131 = vst.msk [vmem:[#allocation3 + $0x1d0] sm:$0xff] %vm870, %v1126
        %v1132 = vld [vmem:[#allocation2] sm:$0xff]
        %v1133 = vld [vmem:[#allocation2 + $0x8] sm:$0xff]
        %1136 = vrot.lane.b32.xlu0 %v1132, 64
        %v1137 = vpop.permute.xlu0 %1136
        %1138 = vrot.lane.b32.xlu0 %v1133, 64
        %v1139 = vpop.permute.xlu0 %1138
        %vm1140 = vcmask 523264
        %v1141 = vsel %vm1140, %v1137, %v1139
        %1144 = vst [vmem:[#allocation3 + $0x1e0] sm:$0xff] %v1141
        %1145 = vst.msk [vmem:[#allocation3 + $0x1e8] sm:$0xff] %vm870, %v1139
        %v1146 = vld [vmem:[#allocation2] sm:$0xff]
        %v1147 = vld [vmem:[#allocation2 + $0x8] sm:$0xff]
        %1150 = vrot.lane.b32.xlu0 %v1146, 63
        %v1151 = vpop.permute.xlu0 %1150
        %1152 = vrot.lane.b32.xlu0 %v1147, 63
        %v1153 = vpop.permute.xlu0 %1152
        %vm1154 = vcmask 515072
        %v1155 = vsel %vm1154, %v1151, %v1153
        %1158 = vst [vmem:[#allocation3 + $0x1f8] sm:$0xff] %v1155
        %1159 = vst.msk [vmem:[#allocation3 + $0x200] sm:$0xff] %vm870, %v1153
        %v1160 = vld [vmem:[#allocation2] sm:$0xff]
        %v1161 = vld [vmem:[#allocation2 + $0x8] sm:$0xff]
        %1164 = vrot.lane.b32.xlu0 %v1160, 62
        %v1165 = vpop.permute.xlu0 %1164
        %1166 = vrot.lane.b32.xlu0 %v1161, 62
        %v1167 = vpop.permute.xlu0 %1166
        %vm1168 = vcmask 506880
        %v1169 = vsel %vm1168, %v1165, %v1167
        %1172 = vst [vmem:[#allocation3 + $0x210] sm:$0xff] %v1169
        %1173 = vst.msk [vmem:[#allocation3 + $0x218] sm:$0xff] %vm870, %v1167
        %v1174 = vld [vmem:[#allocation2] sm:$0xff]
        %v1175 = vld [vmem:[#allocation2 + $0x8] sm:$0xff]
        %1178 = vrot.lane.b32.xlu0 %v1174, 61
        %v1179 = vpop.permute.xlu0 %1178
        %1180 = vrot.lane.b32.xlu0 %v1175, 61
        %v1181 = vpop.permute.xlu0 %1180
        %vm1182 = vcmask 498688
        %v1183 = vsel %vm1182, %v1179, %v1181
        %1186 = vst [vmem:[#allocation3 + $0x228] sm:$0xff] %v1183
        %1187 = vst.msk [vmem:[#allocation3 + $0x230] sm:$0xff] %vm870, %v1181
        %v1188 = vld [vmem:[#allocation2] sm:$0xff]
        %v1189 = vld [vmem:[#allocation2 + $0x8] sm:$0xff]
        %1192 = vrot.lane.b32.xlu0 %v1188, 60
        %v1193 = vpop.permute.xlu0 %1192
        %1194 = vrot.lane.b32.xlu0 %v1189, 60
        %v1195 = vpop.permute.xlu0 %1194
        %v1196 = vsel %vm870, %v1193, %v1195
        %1199 = vst [vmem:[#allocation3 + $0x240] sm:$0xff] %v1196
        %1200 = vst.msk [vmem:[#allocation3 + $0x248] sm:$0xff] %vm870, %v1195
        %v1201 = vld [vmem:[%s5] sm:$0xff]
        %v1202 = vld [vmem:[#allocation3] sm:$0xff]
        %v1203 = vld [vmem:[#allocation3 + $0x8] sm:$0xff]
        %v1204 = vld [vmem:[#allocation3 + $0x18] sm:$0xff]
        %v1205 = vld [vmem:[#allocation3 + $0x20] sm:$0xff]
        %v1206 = vld [vmem:[#allocation3 + $0x30] sm:$0xff]
        %v1207 = vld [vmem:[#allocation3 + $0x38] sm:$0xff]
        %v1208 = vld [vmem:[#allocation3 + $0x48] sm:$0xff]
        %v1209 = vld [vmem:[#allocation3 + $0x50] sm:$0xff]
        %v1210 = vld [vmem:[#allocation3 + $0x60] sm:$0xff]
        %v1211 = vld [vmem:[#allocation3 + $0x68] sm:$0xff]
        %v1212 = vld [vmem:[#allocation3 + $0x78] sm:$0xff]
        %v1213 = vld [vmem:[#allocation3 + $0x80] sm:$0xff]
        %v1214 = vld [vmem:[#allocation3 + $0x90] sm:$0xff]
        %v1215 = vld [vmem:[#allocation3 + $0x98] sm:$0xff]
        %v1216 = vld [vmem:[#allocation3 + $0xa8] sm:$0xff]
        %v1217 = vld [vmem:[#allocation3 + $0xb0] sm:$0xff]
        %v1218 = vld [vmem:[#allocation3 + $0xc0] sm:$0xff]
        %v1219 = vld [vmem:[#allocation3 + $0xc8] sm:$0xff]
        %v1220 = vld [vmem:[#allocation3 + $0xd8] sm:$0xff]
        %v1221 = vld [vmem:[#allocation3 + $0xe0] sm:$0xff]
        %v1222 = vld [vmem:[#allocation3 + $0xf0] sm:$0xff]
        %v1223 = vld [vmem:[#allocation3 + $0xf8] sm:$0xff]
        %v1224 = vld [vmem:[#allocation3 + $0x108] sm:$0xff]
        %v1225 = vld [vmem:[#allocation3 + $0x110] sm:$0xff]
        %v1226 = vld [vmem:[#allocation3 + $0x120] sm:$0xff]
        %v1227 = vld [vmem:[#allocation3 + $0x128] sm:$0xff]
        %v1228 = vld [vmem:[#allocation3 + $0x138] sm:$0xff]
        %v1229 = vld [vmem:[#allocation3 + $0x140] sm:$0xff]
        %v1230 = vld [vmem:[#allocation3 + $0x150] sm:$0xff]
        %v1231 = vld [vmem:[#allocation3 + $0x158] sm:$0xff]
        %v1232 = vld [vmem:[#allocation3 + $0x168] sm:$0xff]
        %v1233 = vld [vmem:[#allocation3 + $0x170] sm:$0xff]
        %v1234 = vld [vmem:[#allocation3 + $0x180] sm:$0xff]
        %v1235 = vld [vmem:[#allocation3 + $0x188] sm:$0xff]
        %v1236 = vld [vmem:[#allocation3 + $0x198] sm:$0xff]
        %v1237 = vld [vmem:[#allocation3 + $0x1a0] sm:$0xff]
        %v1238 = vld [vmem:[#allocation3 + $0x1b0] sm:$0xff]
        %v1239 = vld [vmem:[#allocation3 + $0x1b8] sm:$0xff]
        %v1240 = vld [vmem:[#allocation3 + $0x1c8] sm:$0xff]
        %v1241 = vld [vmem:[#allocation3 + $0x1d0] sm:$0xff]
        %v1242 = vld [vmem:[#allocation3 + $0x1e0] sm:$0xff]
        %v1243 = vld [vmem:[#allocation3 + $0x1e8] sm:$0xff]
        %v1244 = vld [vmem:[#allocation3 + $0x1f8] sm:$0xff]
        %v1245 = vld [vmem:[#allocation3 + $0x200] sm:$0xff]
        %v1246 = vld [vmem:[#allocation3 + $0x210] sm:$0xff]
        %v1247 = vld [vmem:[#allocation3 + $0x218] sm:$0xff]
        %v1248 = vld [vmem:[#allocation3 + $0x228] sm:$0xff]
        %v1249 = vld [vmem:[#allocation3 + $0x230] sm:$0xff]
        %v1250 = vld [vmem:[#allocation3 + $0x240] sm:$0xff]
        %v1251 = vld [vmem:[#allocation3 + $0x248] sm:$0xff]
        %v1252 = vld [vmem:[%s6] sm:$0xf]
        %1254 = vset.pattern.permute.xlu0 0
        %1255 = vperm.xlu0 %1254, %v1252
        %v1256 = vpop.permute.xlu0 %1255
        %v1259 = vcombine.high %v1201, %v1201
        %v1260 = vsel %vm747, %v1259, 0
        %1262 = vmatprep.subr.mxu0 %v1203
        %1263 = vmatpush1.msra.mxu0 %v1202
        %1264 = vmatprep.subr.mxu0 %v1205
        %1265 = vmatpush1.msra.mxu0 %v1204
        %1266 = vmatprep.subr.mxu0 %v1207
        %1267 = vmatpush1.msra.mxu0 %v1206
        %1268 = vmatprep.subr.mxu0 %v1209
        %1269 = vmatpush1.msra.mxu0 %v1208
        %1270 = vmatprep.subr.mxu0 %v1211
        %1271 = vmatpush1.msra.mxu0 %v1210
        %1272 = vmatprep.subr.mxu0 %v1213
        %1273 = vmatpush1.msra.mxu0 %v1212
        %1274 = vmatprep.subr.mxu0 %v1215
        %1275 = vmatpush1.msra.mxu0 %v1214
        %1276 = vmatprep.subr.mxu0 %v1217
        %1277 = vmatpush1.msra.mxu0 %v1216
        %1278 = vmatprep.subr.mxu0 %v1219
        %1279 = vmatpush1.msra.mxu0 %v1218
        %1280 = vmatprep.subr.mxu0 %v1221
        %1281 = vmatpush1.msra.mxu0 %v1220
        %1282 = vmatprep.subr.mxu0 %v1223
        %1283 = vmatpush1.msra.mxu0 %v1222
        %1284 = vmatprep.subr.mxu0 %v1225
        %1285 = vmatpush1.msra.mxu0 %v1224
        %1286 = vmatprep.subr.mxu0 %v1227
        %1287 = vmatpush1.msra.mxu0 %v1226
        %1288 = vmatprep.subr.mxu0 %v1229
        %1289 = vmatpush1.msra.mxu0 %v1228
        %1290 = vmatprep.subr.mxu0 %v1231
        %1291 = vmatpush1.msra.mxu0 %v1230
        %1292 = vmatprep.subr.mxu0 %v1233
        %1293 = vmatpush1.msra.mxu0 %v1232
        %1294 = vmatprep.subr.mxu0 %v1235
        %1295 = vmatpush1.msra.mxu0 %v1234
        %1296 = vmatprep.subr.mxu0 %v1237
        %1297 = vmatpush1.msra.mxu0 %v1236
        %1298 = vmatprep.subr.mxu0 %v1239
        %1299 = vmatpush1.msra.mxu0 %v1238
        %1300 = vmatprep.subr.mxu0 %v1241
        %1301 = vmatpush1.msra.mxu0 %v1240
        %1302 = vmatprep.subr.mxu0 %v1243
        %1303 = vmatpush1.msra.mxu0 %v1242
        %1304 = vmatprep.subr.mxu0 %v1245
        %1305 = vmatpush1.msra.mxu0 %v1244
        %1306 = vmatprep.subr.mxu0 %v1247
        %1307 = vmatpush1.msra.mxu0 %v1246
        %1308 = vmatprep.subr.mxu0 %v1249
        %1309 = vmatpush1.msra.mxu0 %v1248
        %1310 = vmatprep.subr.mxu0 %v1251
        %1311 = vmatpush1.msra.mxu0 %v1250
        %1312 = vmatprep.subr.mxu0 0.0
        %1313 = vmatpush1.msra.mxu0 0.0
        %1314 = vmatprep.subr.mxu0 0.0
        %1315 = vmatpush1.msra.mxu0 0.0
        %1316 = vmatprep.subr.mxu0 0.0
        %1317 = vmatpush1.msra.mxu0 0.0
        %1318 = vmatprep.subr.mxu0 0.0
        %1319 = vmatpush1.msra.mxu0 0.0
        %1320 = vmatprep.subr.mxu0 0.0
        %1321 = vmatpush1.msra.mxu0 0.0
        %1322 = vmatprep.subr.mxu0 0.0
        %1323 = vmatpush1.msra.mxu0 0.0
        %1324 = vmatprep.subr.mxu0 0.0
        %1325 = vmatpush1.msra.mxu0 0.0
        %1326 = vmatprep.mubr.f32.mxu0 %v1260
        %1327 = vmatmul.mubr.f32.gmra.mrb[0].mxu0 %v1201
        %v1328 = vpop.f32.mrb[0].mxu0
        %v1329 = vadd.f32 %v1256, %v1328
        %v1330 = vpop.f32.mrb[0].mxu0
        %v1331 = vadd.f32 %v1256, %v1330
        %1332 = vdwg.mxu0
        %v1333 = vmax.f32 %v1329, 0.0
        %v1334 = vmax.f32 %v1331, 0.0
        %1335 = vst [vmem:[#allocation2] sm:$0xff] 0.0
        %1336 = vst [vmem:[#allocation2 + $0x8] sm:$0xff] 0.0
        %1337 = vst [vmem:[#allocation2 + $0x10] sm:$0xff] 0.0
        %1338 = vst.msk [vmem:[#allocation2 + $0x18] sm:$0xff] %vm426, 0.0
        %1340 = vrot.lane.b32.xlu0 %v1333, 84
        %v1341 = vpop.permute.xlu0 %1340
        %vm1343 = vcmask 781984
        %1344 = vst.msk [vmem:[#allocation2] sm:$0xf] %vm1343, %v1341
        %1345 = vrot.lane.b32.xlu0 %v1333, 88
        %v1346 = vpop.permute.xlu0 %1345
        %vm1348 = vcmask 945984
        %1349 = vst.msk [vmem:[#allocation2] sm:$0xf] %vm1348, %v1346
        %1350 = vrot.lane.b32.xlu0 %v1333, 92
        %v1351 = vpop.permute.xlu0 %1350
        %vm1353 = vcmask 1044448
        %1354 = vst.msk [vmem:[#allocation2] sm:$0xf] %vm1353, %v1351
        %vm1355 = vcmask 60416
        %1356 = vst.msk [vmem:[#allocation2 + $0x8] sm:$0xf] %vm1355, %v1351
        %1357 = vrot.lane.b32.xlu0 %v1333, 96
        %v1358 = vpop.permute.xlu0 %1357
        %vm1360 = vcmask 224384
        %1361 = vst.msk [vmem:[#allocation2 + $0x8] sm:$0xf] %vm1360, %v1358
        %1362 = vrot.lane.b32.xlu0 %v1333, 100
        %v1363 = vpop.permute.xlu0 %1362
        %vm1365 = vcmask 388384
        %1366 = vst.msk [vmem:[#allocation2 + $0x8] sm:$0xf] %vm1365, %v1363
        %1367 = vrot.lane.b32.xlu0 %v1333, 104
        %v1368 = vpop.permute.xlu0 %1367
        %vm1370 = vcmask 552384
        %1371 = vst.msk [vmem:[#allocation2 + $0x8] sm:$0xf] %vm1370, %v1368
        %1372 = vrot.lane.b32.xlu0 %v1333, 108
        %v1373 = vpop.permute.xlu0 %1372
        %vm1375 = vcmask 716384
        %1376 = vst.msk [vmem:[#allocation2 + $0x8] sm:$0xf] %vm1375, %v1373
        %1377 = vrot.lane.b32.xlu0 %v1333, 112
        %v1378 = vpop.permute.xlu0 %1377
        %vm1380 = vcmask 880384
        %1381 = vst.msk [vmem:[#allocation2 + $0x8] sm:$0xf] %vm1380, %v1378
        %1383 = vrot.lane.b32.xlu0 %v1334, 116
        %v1384 = vpop.permute.xlu0 %1383
        %vm1386 = vcmask 1044384
        %1387 = vst.msk [vmem:[#allocation2 + $0x8] sm:$0xf] %vm1386, %v1384
        %1388 = vrot.lane.b32.xlu0 %v1334, 120
        %v1389 = vpop.permute.xlu0 %1388
        %vm1391 = vcmask 158784
        %1392 = vst.msk [vmem:[#allocation2 + $0x10] sm:$0xf] %vm1391, %v1389
        %1393 = vrot.lane.b32.xlu0 %v1334, 124
        %v1394 = vpop.permute.xlu0 %1393
        %vm1396 = vcmask 322784
        %1397 = vst.msk [vmem:[#allocation2 + $0x10] sm:$0xf] %vm1396, %v1394
        %vm1398 = vcmask 486784
        %1399 = vst.msk [vmem:[#allocation2 + $0x10] sm:$0xf] %vm1398, %v1334
        %v1400 = vld [vmem:[#allocation2] sm:$0xf]
        %v1401 = vld [vmem:[#allocation2 + $0x8] sm:$0xf]
        %v1402 = vld [vmem:[#allocation2 + $0x10] sm:$0xf]
        %1403 = vst [vmem:[#allocation3] sm:$0xf] %v1400
        %1404 = vst [vmem:[#allocation3 + $0x8] sm:$0xf] %v1401
        %vm1405 = vcmask 486400
        %1406 = vst.msk [vmem:[#allocation3 + $0x10] sm:$0xf] %vm1405, %v1402
        %v1407 = vld [vmem:[#allocation2] sm:$0xf]
        %v1408 = vld [vmem:[#allocation2 + $0x8] sm:$0xf]
        %v1409 = vld [vmem:[#allocation2 + $0x10] sm:$0xf]
        %v1413 = vrot.slane %v1407, 4
        %v1414 = vrot.slane %v1408, 4
        %v1415 = vrot.slane %v1409, 4
        %1416 = vrot.lane.b32.xlu0 %v1413, 127
        %v1417 = vpop.permute.xlu0 %1416
        %1418 = vrot.lane.b32.xlu0 %v1414, 127
        %v1419 = vpop.permute.xlu0 %1418
        %1420 = vrot.lane.b32.xlu0 %v1415, 127
        %v1421 = vpop.permute.xlu0 %1420
        %v1422 = vsel %vm880, %v1417, %v1419
        %v1423 = vsel %vm880, %v1419, %v1421
        %1427 = vst [vmem:[#allocation3] sm:$0xf0] %v1422
        %1428 = vst [vmem:[#allocation3 + $0x8] sm:$0xf0] %v1423
        %vm1429 = vcmask 490500
        %1430 = vst.msk [vmem:[#allocation3 + $0x10] sm:$0xf0] %vm1429, %v1421
        %v1431 = vld [vmem:[#allocation2] sm:$0xf]
        %v1432 = vld [vmem:[#allocation2 + $0x8] sm:$0xf]
        %v1433 = vld [vmem:[#allocation2 + $0x10] sm:$0xf]
        %1437 = vrot.lane.b32.xlu0 %v1431, 126
        %v1438 = vpop.permute.xlu0 %1437
        %1439 = vrot.lane.b32.xlu0 %v1432, 126
        %v1440 = vpop.permute.xlu0 %1439
        %1441 = vrot.lane.b32.xlu0 %v1433, 126
        %v1442 = vpop.permute.xlu0 %1441
        %v1443 = vsel %vm894, %v1438, %v1440
        %v1444 = vsel %vm894, %v1440, %v1442
        %1448 = vst [vmem:[#allocation3 + $0x18] sm:$0xf] %v1443
        %1449 = vst [vmem:[#allocation3 + $0x20] sm:$0xf] %v1444
        %1450 = vst.msk [vmem:[#allocation3 + $0x28] sm:$0xf] %vm1405, %v1442
        %v1451 = vld [vmem:[#allocation2] sm:$0xf]
        %v1452 = vld [vmem:[#allocation2 + $0x8] sm:$0xf]
        %v1453 = vld [vmem:[#allocation2 + $0x10] sm:$0xf]
        %v1457 = vrot.slane %v1451, 4
        %v1458 = vrot.slane %v1452, 4
        %v1459 = vrot.slane %v1453, 4
        %1460 = vrot.lane.b32.xlu0 %v1457, 125
        %v1461 = vpop.permute.xlu0 %1460
        %1462 = vrot.lane.b32.xlu0 %v1458, 125
        %v1463 = vpop.permute.xlu0 %1462
        %1464 = vrot.lane.b32.xlu0 %v1459, 125
        %v1465 = vpop.permute.xlu0 %1464
        %v1466 = vsel %vm908, %v1461, %v1463
        %v1467 = vsel %vm908, %v1463, %v1465
        %1471 = vst [vmem:[#allocation3 + $0x18] sm:$0xf0] %v1466
        %1472 = vst [vmem:[#allocation3 + $0x20] sm:$0xf0] %v1467
        %1473 = vst.msk [vmem:[#allocation3 + $0x28] sm:$0xf0] %vm1429, %v1465
        %v1474 = vld [vmem:[#allocation2] sm:$0xf]
        %v1475 = vld [vmem:[#allocation2 + $0x8] sm:$0xf]
        %v1476 = vld [vmem:[#allocation2 + $0x10] sm:$0xf]
        %1480 = vrot.lane.b32.xlu0 %v1474, 124
        %v1481 = vpop.permute.xlu0 %1480
        %1482 = vrot.lane.b32.xlu0 %v1475, 124
        %v1483 = vpop.permute.xlu0 %1482
        %1484 = vrot.lane.b32.xlu0 %v1476, 124
        %v1485 = vpop.permute.xlu0 %1484
        %v1486 = vsel %vm922, %v1481, %v1483
        %v1487 = vsel %vm922, %v1483, %v1485
        %1491 = vst [vmem:[#allocation3 + $0x30] sm:$0xf] %v1486
        %1492 = vst [vmem:[#allocation3 + $0x38] sm:$0xf] %v1487
        %1493 = vst.msk [vmem:[#allocation3 + $0x40] sm:$0xf] %vm1405, %v1485
        %v1494 = vld [vmem:[#allocation2] sm:$0xf]
        %v1495 = vld [vmem:[#allocation2 + $0x8] sm:$0xf]
        %v1496 = vld [vmem:[#allocation2 + $0x10] sm:$0xf]
        %v1500 = vrot.slane %v1494, 4
        %v1501 = vrot.slane %v1495, 4
        %v1502 = vrot.slane %v1496, 4
        %1503 = vrot.lane.b32.xlu0 %v1500, 108
        %v1504 = vpop.permute.xlu0 %1503
        %1505 = vrot.lane.b32.xlu0 %v1501, 108
        %v1506 = vpop.permute.xlu0 %1505
        %1507 = vrot.lane.b32.xlu0 %v1502, 108
        %v1508 = vpop.permute.xlu0 %1507
        %v1509 = vsel %vm992, %v1504, %v1506
        %v1510 = vsel %vm992, %v1506, %v1508
        %1514 = vst [vmem:[#allocation3 + $0x30] sm:$0xf0] %v1509
        %1515 = vst [vmem:[#allocation3 + $0x38] sm:$0xf0] %v1510
        %1516 = vst.msk [vmem:[#allocation3 + $0x40] sm:$0xf0] %vm1429, %v1508
        %v1517 = vld [vmem:[#allocation2] sm:$0xf]
        %v1518 = vld [vmem:[#allocation2 + $0x8] sm:$0xf]
        %v1519 = vld [vmem:[#allocation2 + $0x10] sm:$0xf]
        %1523 = vrot.lane.b32.xlu0 %v1517, 107
        %v1524 = vpop.permute.xlu0 %1523
        %1525 = vrot.lane.b32.xlu0 %v1518, 107
        %v1526 = vpop.permute.xlu0 %1525
        %1527 = vrot.lane.b32.xlu0 %v1519, 107
        %v1528 = vpop.permute.xlu0 %1527
        %vm1529 = vcmask 875520
        %v1530 = vsel %vm1529, %v1524, %v1526
        %v1531 = vsel %vm1529, %v1526, %v1528
        %1535 = vst [vmem:[#allocation3 + $0x48] sm:$0xf] %v1530
        %1536 = vst [vmem:[#allocation3 + $0x50] sm:$0xf] %v1531
        %1537 = vst.msk [vmem:[#allocation3 + $0x58] sm:$0xf] %vm1405, %v1528
        %v1538 = vld [vmem:[#allocation2] sm:$0xf]
        %v1539 = vld [vmem:[#allocation2 + $0x8] sm:$0xf]
        %v1540 = vld [vmem:[#allocation2 + $0x10] sm:$0xf]
        %v1544 = vrot.slane %v1538, 4
        %v1545 = vrot.slane %v1539, 4
        %v1546 = vrot.slane %v1540, 4
        %1547 = vrot.lane.b32.xlu0 %v1544, 106
        %v1548 = vpop.permute.xlu0 %1547
        %1549 = vrot.lane.b32.xlu0 %v1545, 106
        %v1550 = vpop.permute.xlu0 %1549
        %1551 = vrot.lane.b32.xlu0 %v1546, 106
        %v1552 = vpop.permute.xlu0 %1551
        %vm1553 = vcmask 867328
        %v1554 = vsel %vm1553, %v1548, %v1550
        %v1555 = vsel %vm1553, %v1550, %v1552
        %1559 = vst [vmem:[#allocation3 + $0x48] sm:$0xf0] %v1554
        %1560 = vst [vmem:[#allocation3 + $0x50] sm:$0xf0] %v1555
        %1561 = vst.msk [vmem:[#allocation3 + $0x58] sm:$0xf0] %vm1429, %v1552
        %v1562 = vld [vmem:[#allocation2] sm:$0xf]
        %v1563 = vld [vmem:[#allocation2 + $0x8] sm:$0xf]
        %v1564 = vld [vmem:[#allocation2 + $0x10] sm:$0xf]
        %1568 = vrot.lane.b32.xlu0 %v1562, 105
        %v1569 = vpop.permute.xlu0 %1568
        %1570 = vrot.lane.b32.xlu0 %v1563, 105
        %v1571 = vpop.permute.xlu0 %1570
        %1572 = vrot.lane.b32.xlu0 %v1564, 105
        %v1573 = vpop.permute.xlu0 %1572
        %vm1574 = vcmask 859136
        %v1575 = vsel %vm1574, %v1569, %v1571
        %v1576 = vsel %vm1574, %v1571, %v1573
        %1580 = vst [vmem:[#allocation3 + $0x60] sm:$0xf] %v1575
        %1581 = vst [vmem:[#allocation3 + $0x68] sm:$0xf] %v1576
        %1582 = vst.msk [vmem:[#allocation3 + $0x70] sm:$0xf] %vm1405, %v1573
        %v1583 = vld [vmem:[#allocation2] sm:$0xf]
        %v1584 = vld [vmem:[#allocation2 + $0x8] sm:$0xf]
        %v1585 = vld [vmem:[#allocation2 + $0x10] sm:$0xf]
        %v1589 = vrot.slane %v1583, 4
        %v1590 = vrot.slane %v1584, 4
        %v1591 = vrot.slane %v1585, 4
        %1592 = vrot.lane.b32.xlu0 %v1589, 104
        %v1593 = vpop.permute.xlu0 %1592
        %1594 = vrot.lane.b32.xlu0 %v1590, 104
        %v1595 = vpop.permute.xlu0 %1594
        %1596 = vrot.lane.b32.xlu0 %v1591, 104
        %v1597 = vpop.permute.xlu0 %1596
        %vm1598 = vcmask 850944
        %v1599 = vsel %vm1598, %v1593, %v1595
        %v1600 = vsel %vm1598, %v1595, %v1597
        %1604 = vst [vmem:[#allocation3 + $0x60] sm:$0xf0] %v1599
        %1605 = vst [vmem:[#allocation3 + $0x68] sm:$0xf0] %v1600
        %1606 = vst.msk [vmem:[#allocation3 + $0x70] sm:$0xf0] %vm1429, %v1597
        %v1607 = vld [vmem:[#allocation2] sm:$0xf]
        %v1608 = vld [vmem:[#allocation2 + $0x8] sm:$0xf]
        %v1609 = vld [vmem:[#allocation2 + $0x10] sm:$0xf]
        %1613 = vrot.lane.b32.xlu0 %v1607, 88
        %v1614 = vpop.permute.xlu0 %1613
        %1615 = vrot.lane.b32.xlu0 %v1608, 88
        %v1616 = vpop.permute.xlu0 %1615
        %1617 = vrot.lane.b32.xlu0 %v1609, 88
        %v1618 = vpop.permute.xlu0 %1617
        %v1619 = vsel %vm650, %v1614, %v1616
        %v1620 = vsel %vm650, %v1616, %v1618
        %1624 = vst [vmem:[#allocation3 + $0x78] sm:$0xf] %v1619
        %1625 = vst [vmem:[#allocation3 + $0x80] sm:$0xf] %v1620
        %1626 = vst.msk [vmem:[#allocation3 + $0x88] sm:$0xf] %vm1405, %v1618
        %v1627 = vld [vmem:[#allocation2] sm:$0xf]
        %v1628 = vld [vmem:[#allocation2 + $0x8] sm:$0xf]
        %v1629 = vld [vmem:[#allocation2 + $0x10] sm:$0xf]
        %v1633 = vrot.slane %v1627, 4
        %v1634 = vrot.slane %v1628, 4
        %v1635 = vrot.slane %v1629, 4
        %1636 = vrot.lane.b32.xlu0 %v1633, 87
        %v1637 = vpop.permute.xlu0 %1636
        %1638 = vrot.lane.b32.xlu0 %v1634, 87
        %v1639 = vpop.permute.xlu0 %1638
        %1640 = vrot.lane.b32.xlu0 %v1635, 87
        %v1641 = vpop.permute.xlu0 %1640
        %vm1642 = vcmask 711680
        %v1643 = vsel %vm1642, %v1637, %v1639
        %v1644 = vsel %vm1642, %v1639, %v1641
        %1648 = vst [vmem:[#allocation3 + $0x78] sm:$0xf0] %v1643
        %1649 = vst [vmem:[#allocation3 + $0x80] sm:$0xf0] %v1644
        %1650 = vst.msk [vmem:[#allocation3 + $0x88] sm:$0xf0] %vm1429, %v1641
        %v1651 = vld [vmem:[#allocation2] sm:$0xf]
        %v1652 = vld [vmem:[#allocation2 + $0x8] sm:$0xf]
        %v1653 = vld [vmem:[#allocation2 + $0x10] sm:$0xf]
        %1657 = vrot.lane.b32.xlu0 %v1651, 86
        %v1658 = vpop.permute.xlu0 %1657
        %1659 = vrot.lane.b32.xlu0 %v1652, 86
        %v1660 = vpop.permute.xlu0 %1659
        %1661 = vrot.lane.b32.xlu0 %v1653, 86
        %v1662 = vpop.permute.xlu0 %1661
        %vm1663 = vcmask 703488
        %v1664 = vsel %vm1663, %v1658, %v1660
        %v1665 = vsel %vm1663, %v1660, %v1662
        %1669 = vst [vmem:[#allocation3 + $0x90] sm:$0xf] %v1664
        %1670 = vst [vmem:[#allocation3 + $0x98] sm:$0xf] %v1665
        %1671 = vst.msk [vmem:[#allocation3 + $0xa0] sm:$0xf] %vm1405, %v1662
        %v1672 = vld [vmem:[#allocation2] sm:$0xf]
        %v1673 = vld [vmem:[#allocation2 + $0x8] sm:$0xf]
        %v1674 = vld [vmem:[#allocation2 + $0x10] sm:$0xf]
        %v1678 = vrot.slane %v1672, 4
        %v1679 = vrot.slane %v1673, 4
        %v1680 = vrot.slane %v1674, 4
        %1681 = vrot.lane.b32.xlu0 %v1678, 85
        %v1682 = vpop.permute.xlu0 %1681
        %1683 = vrot.lane.b32.xlu0 %v1679, 85
        %v1684 = vpop.permute.xlu0 %1683
        %1685 = vrot.lane.b32.xlu0 %v1680, 85
        %v1686 = vpop.permute.xlu0 %1685
        %vm1687 = vcmask 695296
        %v1688 = vsel %vm1687, %v1682, %v1684
        %v1689 = vsel %vm1687, %v1684, %v1686
        %1693 = vst [vmem:[#allocation3 + $0x90] sm:$0xf0] %v1688
        %1694 = vst [vmem:[#allocation3 + $0x98] sm:$0xf0] %v1689
        %1695 = vst.msk [vmem:[#allocation3 + $0xa0] sm:$0xf0] %vm1429, %v1686
        %v1696 = vld [vmem:[#allocation2] sm:$0xf]
        %v1697 = vld [vmem:[#allocation2 + $0x8] sm:$0xf]
        %v1698 = vld [vmem:[#allocation2 + $0x10] sm:$0xf]
        %1702 = vrot.lane.b32.xlu0 %v1696, 84
        %v1703 = vpop.permute.xlu0 %1702
        %1704 = vrot.lane.b32.xlu0 %v1697, 84
        %v1705 = vpop.permute.xlu0 %1704
        %1706 = vrot.lane.b32.xlu0 %v1698, 84
        %v1707 = vpop.permute.xlu0 %1706
        %vm1708 = vcmask 687104
        %v1709 = vsel %vm1708, %v1703, %v1705
        %v1710 = vsel %vm1708, %v1705, %v1707
        %1714 = vst [vmem:[#allocation3 + $0xa8] sm:$0xf] %v1709
        %1715 = vst [vmem:[#allocation3 + $0xb0] sm:$0xf] %v1710
        %1716 = vst.msk [vmem:[#allocation3 + $0xb8] sm:$0xf] %vm1405, %v1707
        %v1717 = vld [vmem:[#allocation2] sm:$0xf]
        %v1718 = vld [vmem:[#allocation2 + $0x8] sm:$0xf]
        %v1719 = vld [vmem:[#allocation2 + $0x10] sm:$0xf]
        %v1723 = vrot.slane %v1717, 4
        %v1724 = vrot.slane %v1718, 4
        %v1725 = vrot.slane %v1719, 4
        %1726 = vrot.lane.b32.xlu0 %v1723, 68
        %v1727 = vpop.permute.xlu0 %1726
        %1728 = vrot.lane.b32.xlu0 %v1724, 68
        %v1729 = vpop.permute.xlu0 %1728
        %1730 = vrot.lane.b32.xlu0 %v1725, 68
        %v1731 = vpop.permute.xlu0 %1730
        %vm1732 = vcmask 556032
        %v1733 = vsel %vm1732, %v1727, %v1729
        %v1734 = vsel %vm1732, %v1729, %v1731
        %1738 = vst [vmem:[#allocation3 + $0xa8] sm:$0xf0] %v1733
        %1739 = vst [vmem:[#allocation3 + $0xb0] sm:$0xf0] %v1734
        %1740 = vst.msk [vmem:[#allocation3 + $0xb8] sm:$0xf0] %vm1429, %v1731
        %v1741 = vld [vmem:[#allocation2] sm:$0xf]
        %v1742 = vld [vmem:[#allocation2 + $0x8] sm:$0xf]
        %v1743 = vld [vmem:[#allocation2 + $0x10] sm:$0xf]
        %1747 = vrot.lane.b32.xlu0 %v1741, 67
        %v1748 = vpop.permute.xlu0 %1747
        %1749 = vrot.lane.b32.xlu0 %v1742, 67
        %v1750 = vpop.permute.xlu0 %1749
        %1751 = vrot.lane.b32.xlu0 %v1743, 67
        %v1752 = vpop.permute.xlu0 %1751
        %vm1753 = vcmask 547840
        %v1754 = vsel %vm1753, %v1748, %v1750
        %v1755 = vsel %vm1753, %v1750, %v1752
        %1759 = vst [vmem:[#allocation3 + $0xc0] sm:$0xf] %v1754
        %1760 = vst [vmem:[#allocation3 + $0xc8] sm:$0xf] %v1755
        %1761 = vst.msk [vmem:[#allocation3 + $0xd0] sm:$0xf] %vm1405, %v1752
        %v1762 = vld [vmem:[#allocation2] sm:$0xf]
        %v1763 = vld [vmem:[#allocation2 + $0x8] sm:$0xf]
        %v1764 = vld [vmem:[#allocation2 + $0x10] sm:$0xf]
        %v1768 = vrot.slane %v1762, 4
        %v1769 = vrot.slane %v1763, 4
        %v1770 = vrot.slane %v1764, 4
        %1771 = vrot.lane.b32.xlu0 %v1768, 66
        %v1772 = vpop.permute.xlu0 %1771
        %1773 = vrot.lane.b32.xlu0 %v1769, 66
        %v1774 = vpop.permute.xlu0 %1773
        %1775 = vrot.lane.b32.xlu0 %v1770, 66
        %v1776 = vpop.permute.xlu0 %1775
        %vm1777 = vcmask 539648
        %v1778 = vsel %vm1777, %v1772, %v1774
        %v1779 = vsel %vm1777, %v1774, %v1776
        %1783 = vst [vmem:[#allocation3 + $0xc0] sm:$0xf0] %v1778
        %1784 = vst [vmem:[#allocation3 + $0xc8] sm:$0xf0] %v1779
        %1785 = vst.msk [vmem:[#allocation3 + $0xd0] sm:$0xf0] %vm1429, %v1776
        %v1786 = vld [vmem:[#allocation2] sm:$0xf]
        %v1787 = vld [vmem:[#allocation2 + $0x8] sm:$0xf]
        %v1788 = vld [vmem:[#allocation2 + $0x10] sm:$0xf]
        %1792 = vrot.lane.b32.xlu0 %v1786, 65
        %v1793 = vpop.permute.xlu0 %1792
        %1794 = vrot.lane.b32.xlu0 %v1787, 65
        %v1795 = vpop.permute.xlu0 %1794
        %1796 = vrot.lane.b32.xlu0 %v1788, 65
        %v1797 = vpop.permute.xlu0 %1796
        %vm1798 = vcmask 531456
        %v1799 = vsel %vm1798, %v1793, %v1795
        %v1800 = vsel %vm1798, %v1795, %v1797
        %1804 = vst [vmem:[#allocation3 + $0xd8] sm:$0xf] %v1799
        %1805 = vst [vmem:[#allocation3 + $0xe0] sm:$0xf] %v1800
        %1806 = vst.msk [vmem:[#allocation3 + $0xe8] sm:$0xf] %vm1405, %v1797
        %v1807 = vld [vmem:[#allocation2] sm:$0xf]
        %v1808 = vld [vmem:[#allocation2 + $0x8] sm:$0xf]
        %v1809 = vld [vmem:[#allocation2 + $0x10] sm:$0xf]
        %v1813 = vrot.slane %v1807, 4
        %v1814 = vrot.slane %v1808, 4
        %v1815 = vrot.slane %v1809, 4
        %1816 = vrot.lane.b32.xlu0 %v1813, 64
        %v1817 = vpop.permute.xlu0 %1816
        %1818 = vrot.lane.b32.xlu0 %v1814, 64
        %v1819 = vpop.permute.xlu0 %1818
        %1820 = vrot.lane.b32.xlu0 %v1815, 64
        %v1821 = vpop.permute.xlu0 %1820
        %v1822 = vsel %vm1140, %v1817, %v1819
        %v1823 = vsel %vm1140, %v1819, %v1821
        %1827 = vst [vmem:[#allocation3 + $0xd8] sm:$0xf0] %v1822
        %1828 = vst [vmem:[#allocation3 + $0xe0] sm:$0xf0] %v1823
        %1829 = vst.msk [vmem:[#allocation3 + $0xe8] sm:$0xf0] %vm1429, %v1821
        %v1830 = vld [vmem:[#allocation2] sm:$0xf]
        %v1831 = vld [vmem:[#allocation2 + $0x8] sm:$0xf]
        %v1832 = vld [vmem:[#allocation2 + $0x10] sm:$0xf]
        %v1833 = vld [vmem:[#allocation2 + $0x18] sm:$0xf]
        %1838 = vrot.lane.b32.xlu0 %v1830, 48
        %v1839 = vpop.permute.xlu0 %1838
        %1840 = vrot.lane.b32.xlu0 %v1831, 48
        %v1841 = vpop.permute.xlu0 %1840
        %1842 = vrot.lane.b32.xlu0 %v1832, 48
        %v1843 = vpop.permute.xlu0 %1842
        %1844 = vrot.lane.b32.xlu0 %v1833, 48
        %v1845 = vpop.permute.xlu0 %1844
        %vm1846 = vcmask 392192
        %v1847 = vsel %vm1846, %v1839, %v1841
        %v1848 = vsel %vm1846, %v1841, %v1843
        %v1849 = vsel %vm1846, %v1843, %v1845
        %1853 = vst [vmem:[#allocation3 + $0xf0] sm:$0xf] %v1847
        %1854 = vst [vmem:[#allocation3 + $0xf8] sm:$0xf] %v1848
        %1855 = vst.msk [vmem:[#allocation3 + $0x100] sm:$0xf] %vm1405, %v1849
        %v1856 = vld [vmem:[#allocation2] sm:$0xf]
        %v1857 = vld [vmem:[#allocation2 + $0x8] sm:$0xf]
        %v1858 = vld [vmem:[#allocation2 + $0x10] sm:$0xf]
        %v1859 = vld [vmem:[#allocation2 + $0x18] sm:$0xf]
        %v1864 = vrot.slane %v1856, 4
        %v1865 = vrot.slane %v1857, 4
        %v1866 = vrot.slane %v1858, 4
        %v1867 = vrot.slane %v1859, 4
        %1868 = vrot.lane.b32.xlu0 %v1864, 47
        %v1869 = vpop.permute.xlu0 %1868
        %1870 = vrot.lane.b32.xlu0 %v1865, 47
        %v1871 = vpop.permute.xlu0 %1870
        %1872 = vrot.lane.b32.xlu0 %v1866, 47
        %v1873 = vpop.permute.xlu0 %1872
        %1874 = vrot.lane.b32.xlu0 %v1867, 47
        %v1875 = vpop.permute.xlu0 %1874
        %vm1876 = vcmask 384000
        %v1877 = vsel %vm1876, %v1869, %v1871
        %v1878 = vsel %vm1876, %v1871, %v1873
        %v1879 = vsel %vm1876, %v1873, %v1875
        %1883 = vst [vmem:[#allocation3 + $0xf0] sm:$0xf0] %v1877
        %1884 = vst [vmem:[#allocation3 + $0xf8] sm:$0xf0] %v1878
        %1885 = vst.msk [vmem:[#allocation3 + $0x100] sm:$0xf0] %vm1429, %v1879
        %v1886 = vld [vmem:[#allocation2] sm:$0xf]
        %v1887 = vld [vmem:[#allocation2 + $0x8] sm:$0xf]
        %v1888 = vld [vmem:[#allocation2 + $0x10] sm:$0xf]
        %v1889 = vld [vmem:[#allocation2 + $0x18] sm:$0xf]
        %1894 = vrot.lane.b32.xlu0 %v1886, 46
        %v1895 = vpop.permute.xlu0 %1894
        %1896 = vrot.lane.b32.xlu0 %v1887, 46
        %v1897 = vpop.permute.xlu0 %1896
        %1898 = vrot.lane.b32.xlu0 %v1888, 46
        %v1899 = vpop.permute.xlu0 %1898
        %1900 = vrot.lane.b32.xlu0 %v1889, 46
        %v1901 = vpop.permute.xlu0 %1900
        %vm1902 = vcmask 375808
        %v1903 = vsel %vm1902, %v1895, %v1897
        %v1904 = vsel %vm1902, %v1897, %v1899
        %v1905 = vsel %vm1902, %v1899, %v1901
        %1909 = vst [vmem:[#allocation3 + $0x108] sm:$0xf] %v1903
        %1910 = vst [vmem:[#allocation3 + $0x110] sm:$0xf] %v1904
        %1911 = vst.msk [vmem:[#allocation3 + $0x118] sm:$0xf] %vm1405, %v1905
        %v1912 = vld [vmem:[#allocation2] sm:$0xf]
        %v1913 = vld [vmem:[#allocation2 + $0x8] sm:$0xf]
        %v1914 = vld [vmem:[#allocation2 + $0x10] sm:$0xf]
        %v1915 = vld [vmem:[#allocation2 + $0x18] sm:$0xf]
        %v1920 = vrot.slane %v1912, 4
        %v1921 = vrot.slane %v1913, 4
        %v1922 = vrot.slane %v1914, 4
        %v1923 = vrot.slane %v1915, 4
        %1924 = vrot.lane.b32.xlu0 %v1920, 45
        %v1925 = vpop.permute.xlu0 %1924
        %1926 = vrot.lane.b32.xlu0 %v1921, 45
        %v1927 = vpop.permute.xlu0 %1926
        %1928 = vrot.lane.b32.xlu0 %v1922, 45
        %v1929 = vpop.permute.xlu0 %1928
        %1930 = vrot.lane.b32.xlu0 %v1923, 45
        %v1931 = vpop.permute.xlu0 %1930
        %vm1932 = vcmask 367616
        %v1933 = vsel %vm1932, %v1925, %v1927
        %v1934 = vsel %vm1932, %v1927, %v1929
        %v1935 = vsel %vm1932, %v1929, %v1931
        %1939 = vst [vmem:[#allocation3 + $0x108] sm:$0xf0] %v1933
        %1940 = vst [vmem:[#allocation3 + $0x110] sm:$0xf0] %v1934
        %1941 = vst.msk [vmem:[#allocation3 + $0x118] sm:$0xf0] %vm1429, %v1935
        %v1942 = vld [vmem:[#allocation2] sm:$0xf]
        %v1943 = vld [vmem:[#allocation2 + $0x8] sm:$0xf]
        %v1944 = vld [vmem:[#allocation2 + $0x10] sm:$0xf]
        %v1945 = vld [vmem:[#allocation2 + $0x18] sm:$0xf]
        %1950 = vrot.lane.b32.xlu0 %v1942, 44
        %v1951 = vpop.permute.xlu0 %1950
        %1952 = vrot.lane.b32.xlu0 %v1943, 44
        %v1953 = vpop.permute.xlu0 %1952
        %1954 = vrot.lane.b32.xlu0 %v1944, 44
        %v1955 = vpop.permute.xlu0 %1954
        %1956 = vrot.lane.b32.xlu0 %v1945, 44
        %v1957 = vpop.permute.xlu0 %1956
        %vm1958 = vcmask 359424
        %v1959 = vsel %vm1958, %v1951, %v1953
        %v1960 = vsel %vm1958, %v1953, %v1955
        %v1961 = vsel %vm1958, %v1955, %v1957
        %1965 = vst [vmem:[#allocation3 + $0x120] sm:$0xf] %v1959
        %1966 = vst [vmem:[#allocation3 + $0x128] sm:$0xf] %v1960
        %1967 = vst.msk [vmem:[#allocation3 + $0x130] sm:$0xf] %vm1405, %v1961
        %v1968 = vld [vmem:[%s7] sm:$0x1]
        %v1969 = vld [vmem:[#allocation3] sm:$0xff]
        %v1970 = vld [vmem:[#allocation3 + $0x8] sm:$0xff]
        %v1971 = vld [vmem:[#allocation3 + $0x10] sm:$0xff]
        %v1972 = vld [vmem:[#allocation3 + $0x18] sm:$0xff]
        %v1973 = vld [vmem:[#allocation3 + $0x20] sm:$0xff]
        %v1974 = vld [vmem:[#allocation3 + $0x28] sm:$0xff]
        %v1975 = vld [vmem:[#allocation3 + $0x30] sm:$0xff]
        %v1976 = vld [vmem:[#allocation3 + $0x38] sm:$0xff]
        %v1977 = vld [vmem:[#allocation3 + $0x40] sm:$0xff]
        %v1978 = vld [vmem:[#allocation3 + $0x48] sm:$0xff]
        %v1979 = vld [vmem:[#allocation3 + $0x50] sm:$0xff]
        %v1980 = vld [vmem:[#allocation3 + $0x58] sm:$0xff]
        %v1981 = vld [vmem:[#allocation3 + $0x60] sm:$0xff]
        %v1982 = vld [vmem:[#allocation3 + $0x68] sm:$0xff]
        %v1983 = vld [vmem:[#allocation3 + $0x70] sm:$0xff]
        %v1984 = vld [vmem:[#allocation3 + $0x78] sm:$0xff]
        %v1985 = vld [vmem:[#allocation3 + $0x80] sm:$0xff]
        %v1986 = vld [vmem:[#allocation3 + $0x88] sm:$0xff]
        %v1987 = vld [vmem:[#allocation3 + $0x90] sm:$0xff]
        %v1988 = vld [vmem:[#allocation3 + $0x98] sm:$0xff]
        %v1989 = vld [vmem:[#allocation3 + $0xa0] sm:$0xff]
        %v1990 = vld [vmem:[#allocation3 + $0xa8] sm:$0xff]
        %v1991 = vld [vmem:[#allocation3 + $0xb0] sm:$0xff]
        %v1992 = vld [vmem:[#allocation3 + $0xb8] sm:$0xff]
        %v1993 = vld [vmem:[#allocation3 + $0xc0] sm:$0xff]
        %v1994 = vld [vmem:[#allocation3 + $0xc8] sm:$0xff]
        %v1995 = vld [vmem:[#allocation3 + $0xd0] sm:$0xff]
        %v1996 = vld [vmem:[#allocation3 + $0xd8] sm:$0xff]
        %v1997 = vld [vmem:[#allocation3 + $0xe0] sm:$0xff]
        %v1998 = vld [vmem:[#allocation3 + $0xe8] sm:$0xff]
        %v1999 = vld [vmem:[#allocation3 + $0xf0] sm:$0xff]
        %v2000 = vld [vmem:[#allocation3 + $0xf8] sm:$0xff]
        %v2001 = vld [vmem:[#allocation3 + $0x100] sm:$0xff]
        %v2002 = vld [vmem:[#allocation3 + $0x108] sm:$0xff]
        %v2003 = vld [vmem:[#allocation3 + $0x110] sm:$0xff]
        %v2004 = vld [vmem:[#allocation3 + $0x118] sm:$0xff]
        %v2005 = vld [vmem:[#allocation3 + $0x120] sm:$0xf]
        %v2006 = vld [vmem:[#allocation3 + $0x128] sm:$0xf]
        %v2007 = vld [vmem:[#allocation3 + $0x130] sm:$0xf]
        %v2008 = vld [vmem:[#allocation4] sm:$0x1]
        %2010 = vset.pattern.permute.xlu0 0
        %2011 = vperm.xlu0 %2010, %v2008
        %v2012 = vpop.permute.xlu0 %2011
        %v2014 = vlaneseq
        %v2015 = vshrl.u32 %v2014, 7
        %v2016 = vsub.s32 0, %v2015
        %v2017 = vrot.slane %v2012, %v2016
        %vm2018 = vcmask 818176
        %v2020 = vsel %vm2018, %v1968, 0
        %vm2022 = vcmask 1043456
        %v2024 = vsel %vm2022, %v2005, 0
        %v2027 = vsel %vm2022, %v2006, 0
        %v2030 = vsel %vm2022, %v2007, 0
        %2032 = vmatprep.subr.mxu0 %v1970
        %2033 = vmatpush1.msra.mxu0 %v1969
        %2034 = vmatprep.subr.mxu0 %v1973
        %2035 = vmatpush1.msra.mxu0 %v1972
        %2036 = vmatprep.subr.mxu0 %v1976
        %2037 = vmatpush1.msra.mxu0 %v1975
        %2038 = vmatprep.subr.mxu0 %v1979
        %2039 = vmatpush1.msra.mxu0 %v1978
        %2040 = vmatprep.subr.mxu0 %v1982
        %2041 = vmatpush1.msra.mxu0 %v1981
        %2042 = vmatprep.subr.mxu0 %v1985
        %2043 = vmatpush1.msra.mxu0 %v1984
        %2044 = vmatprep.subr.mxu0 %v1988
        %2045 = vmatpush1.msra.mxu0 %v1987
        %2046 = vmatprep.subr.mxu0 %v1991
        %2047 = vmatpush1.msra.mxu0 %v1990
        %2048 = vmatprep.subr.mxu0 %v1994
        %2049 = vmatpush1.msra.mxu0 %v1993
        %2050 = vmatprep.subr.mxu0 %v1997
        %2051 = vmatpush1.msra.mxu0 %v1996
        %2052 = vmatprep.subr.mxu0 %v2000
        %2053 = vmatpush1.msra.mxu0 %v1999
        %2054 = vmatprep.subr.mxu0 %v2003
        %2055 = vmatpush1.msra.mxu0 %v2002
        %2056 = vmatprep.subr.mxu0 %v2027
        %2057 = vmatpush1.msra.mxu0 %v2024
        %2058 = vmatprep.subr.mxu0 0.0
        %2059 = vmatpush1.msra.mxu0 0.0
        %2060 = vmatprep.subr.mxu0 0.0
        %2061 = vmatpush1.msra.mxu0 0.0
        %2062 = vmatprep.subr.mxu0 0.0
        %2063 = vmatpush1.msra.mxu0 0.0
        %2064 = vmatprep.subr.mxu0 0.0
        %2065 = vmatpush1.msra.mxu0 0.0
        %2066 = vmatprep.subr.mxu0 0.0
        %2067 = vmatpush1.msra.mxu0 0.0
        %2068 = vmatprep.subr.mxu0 0.0
        %2069 = vmatpush1.msra.mxu0 0.0
        %2070 = vmatprep.subr.mxu0 0.0
        %2071 = vmatpush1.msra.mxu0 0.0
        %2072 = vmatprep.subr.mxu0 0.0
        %2073 = vmatpush1.msra.mxu0 0.0
        %2074 = vmatprep.subr.mxu0 0.0
        %2075 = vmatpush1.msra.mxu0 0.0
        %2076 = vmatprep.subr.mxu0 0.0
        %2077 = vmatpush1.msra.mxu0 0.0
        %2078 = vmatprep.subr.mxu0 0.0
        %2079 = vmatpush1.msra.mxu0 0.0
        %2080 = vmatprep.subr.mxu0 0.0
        %2081 = vmatpush1.msra.mxu0 0.0
        %2082 = vmatprep.subr.mxu0 0.0
        %2083 = vmatpush1.msra.mxu0 0.0
        %2084 = vmatprep.subr.mxu0 0.0
        %2085 = vmatpush1.msra.mxu0 0.0
        %2086 = vmatprep.subr.mxu0 0.0
        %2087 = vmatpush1.msra.mxu0 0.0
        %2088 = vmatprep.subr.mxu0 0.0
        %2089 = vmatpush1.msra.mxu0 0.0
        %2090 = vmatprep.subr.mxu0 0.0
        %2091 = vmatpush1.msra.mxu0 0.0
        %2092 = vmatprep.subr.mxu0 0.0
        %2093 = vmatpush1.msra.mxu0 0.0
        %2094 = vmatprep.subr.mxu0 0.0
        %2095 = vmatpush1.msra.mxu0 0.0
        %2096 = vmatprep.mubr.f32.mxu0 0.0
        %2097 = vmatmul.mubr.f32.gmra.mrb[0].mxu0 %v2020
        %v2098 = vpop.f32.mrb[0].mxu0
        %v2099 = vadd.f32 %v2017, %v2098
        %v2100 = vpop.f32.mrb[0].mxu0
        %v2101 = vadd.f32 %v2017, %v2100
        %2102 = vdwg.mxu0
        %2103 = vmatprep.subr.mxu0 0.0
        %2104 = vmatpush1.msra.mxu0 %v1971
        %2105 = vmatprep.subr.mxu0 0.0
        %2106 = vmatpush1.msra.mxu0 %v1974
        %2107 = vmatprep.subr.mxu0 0.0
        %2108 = vmatpush1.msra.mxu0 %v1977
        %2109 = vmatprep.subr.mxu0 0.0
        %2110 = vmatpush1.msra.mxu0 %v1980
        %2111 = vmatprep.subr.mxu0 0.0
        %2112 = vmatpush1.msra.mxu0 %v1983
        %2113 = vmatprep.subr.mxu0 0.0
        %2114 = vmatpush1.msra.mxu0 %v1986
        %2115 = vmatprep.subr.mxu0 0.0
        %2116 = vmatpush1.msra.mxu0 %v1989
        %2117 = vmatprep.subr.mxu0 0.0
        %2118 = vmatpush1.msra.mxu0 %v1992
        %2119 = vmatprep.subr.mxu0 0.0
        %2120 = vmatpush1.msra.mxu0 %v1995
        %2121 = vmatprep.subr.mxu0 0.0
        %2122 = vmatpush1.msra.mxu0 %v1998
        %2123 = vmatprep.subr.mxu0 0.0
        %2124 = vmatpush1.msra.mxu0 %v2001
        %2125 = vmatprep.subr.mxu0 0.0
        %2126 = vmatpush1.msra.mxu0 %v2004
        %2127 = vmatprep.subr.mxu0 0.0
        %2128 = vmatpush1.msra.mxu0 %v2030
        %2129 = vmatprep.subr.mxu0 0.0
        %2130 = vmatpush1.msra.mxu0 0.0
        %2131 = vmatprep.subr.mxu0 0.0
        %2132 = vmatpush1.msra.mxu0 0.0
        %2133 = vmatprep.subr.mxu0 0.0
        %2134 = vmatpush1.msra.mxu0 0.0
        %2135 = vmatprep.subr.mxu0 0.0
        %2136 = vmatpush1.msra.mxu0 0.0
        %2137 = vmatprep.subr.mxu0 0.0
        %2138 = vmatpush1.msra.mxu0 0.0
        %2139 = vmatprep.subr.mxu0 0.0
        %2140 = vmatpush1.msra.mxu0 0.0
        %2141 = vmatprep.subr.mxu0 0.0
        %2142 = vmatpush1.msra.mxu0 0.0
        %2143 = vmatprep.subr.mxu0 0.0
        %2144 = vmatpush1.msra.mxu0 0.0
        %2145 = vmatprep.subr.mxu0 0.0
        %2146 = vmatpush1.msra.mxu0 0.0
        %2147 = vmatprep.subr.mxu0 0.0
        %2148 = vmatpush1.msra.mxu0 0.0
        %2149 = vmatprep.subr.mxu0 0.0
        %2150 = vmatpush1.msra.mxu0 0.0
        %2151 = vmatprep.subr.mxu0 0.0
        %2152 = vmatpush1.msra.mxu0 0.0
        %2153 = vmatprep.subr.mxu0 0.0
        %2154 = vmatpush1.msra.mxu0 0.0
        %2155 = vmatprep.subr.mxu0 0.0
        %2156 = vmatpush1.msra.mxu0 0.0
        %2157 = vmatprep.subr.mxu0 0.0
        %2158 = vmatpush1.msra.mxu0 0.0
        %2159 = vmatprep.subr.mxu0 0.0
        %2160 = vmatpush1.msra.mxu0 0.0
        %2161 = vmatprep.subr.mxu0 0.0
        %2162 = vmatpush1.msra.mxu0 0.0
        %2163 = vmatprep.subr.mxu0 0.0
        %2164 = vmatpush1.msra.mxu0 0.0
        %2165 = vmatprep.subr.mxu0 0.0
        %2166 = vmatpush1.msra.mxu0 0.0
        %2167 = vmatprep.mubr.f32.mxu0 0.0
        %2168 = vmatmul.mubr.f32.gmra.mrb[0].mxu0 %v2020
        %v2169 = vpop.f32.mrb[0].mxu0
        %v2170 = vadd.f32 %v2017, %v2169
        %v2171 = vpop.f32.mrb[0].mxu0
        %2172 = vdwg.mxu0
        %v2173 = vlaneseq
        %vm2174 = vcmp.ge.s32.totalorder %v2173, 0
        %vm2175 = vcmp.lt.s32.totalorder %v2173, 16
        %vm2176 = vmand %vm2174, %vm2175
        %2177 = vst.msk [vmem:[%s338] sm:$0x1] %vm2176, %v2099
        %v2180 = vunpack.c.l.s4 1966171168
        %v2181 = vunpack.c.0.s8 %v2180
        %v2182 = vlaneseq
        %v2183 = vshrl.u32 %v2182, 7
        %v2184 = vsub.s32 %v2181, %v2183
        %v2185 = vrot.slane %v2099, %v2184
        %v2187 = vunpack.c.l.s4 1966171168
        %v2188 = vunpack.c.0.s8 %v2187
        %v2189 = vlaneseq
        %v2190 = vshrl.u32 %v2189, 7
        %v2191 = vsub.s32 %v2188, %v2190
        %v2192 = vrot.slane %v2185, %v2191
        %2193 = vrot.lane.b32.xlu0 %v2192, 124
        %v2194 = vpop.permute.xlu0 %2193
        %vm2196 = vcmp.ge.s32.totalorder %v2173, 16
        %vm2197 = vcmp.lt.s32.totalorder %v2173, 32
        %vm2198 = vmand %vm2196, %vm2197
        %2199 = vst.msk [vmem:[%s338] sm:$0x1] %vm2198, %v2194
        %2200 = vrot.lane.b32.xlu0 %v2192, 120
        %v2201 = vpop.permute.xlu0 %2200
        %vm2203 = vcmp.ge.s32.totalorder %v2173, 32
        %vm2204 = vcmp.lt.s32.totalorder %v2173, 48
        %vm2205 = vmand %vm2203, %vm2204
        %2206 = vst.msk [vmem:[%s338] sm:$0x1] %vm2205, %v2201
        %2207 = vrot.lane.b32.xlu0 %v2192, 116
        %v2208 = vpop.permute.xlu0 %2207
        %vm2210 = vcmp.ge.s32.totalorder %v2173, 48
        %vm2211 = vcmp.lt.s32.totalorder %v2173, 64
        %vm2212 = vmand %vm2210, %vm2211
        %2213 = vst.msk [vmem:[%s338] sm:$0x1] %vm2212, %v2208
        %2214 = vrot.lane.b32.xlu0 %v2192, 112
        %v2215 = vpop.permute.xlu0 %2214
        %vm2217 = vcmp.ge.s32.totalorder %v2173, 64
        %vm2218 = vcmp.lt.s32.totalorder %v2173, 80
        %vm2219 = vmand %vm2217, %vm2218
        %2220 = vst.msk [vmem:[%s338] sm:$0x1] %vm2219, %v2215
        %2221 = vrot.lane.b32.xlu0 %v2192, 108
        %v2222 = vpop.permute.xlu0 %2221
        %vm2224 = vcmp.ge.s32.totalorder %v2173, 80
        %vm2225 = vcmp.lt.s32.totalorder %v2173, 96
        %vm2226 = vmand %vm2224, %vm2225
        %2227 = vst.msk [vmem:[%s338] sm:$0x1] %vm2226, %v2222
        %v2229 = vcombine.low %v2099, %v2101
        %v2231 = vunpack.c.l.s4 1966171168
        %v2232 = vunpack.c.0.s8 %v2231
        %v2233 = vlaneseq
        %v2234 = vshrl.u32 %v2233, 7
        %v2235 = vsub.s32 %v2232, %v2234
        %v2236 = vrot.slane %v2229, %v2235
        %v2238 = vunpack.c.l.s4 1966171168
        %v2239 = vunpack.c.0.s8 %v2238
        %v2240 = vlaneseq
        %v2241 = vshrl.u32 %v2240, 7
        %v2242 = vsub.s32 %v2239, %v2241
        %v2243 = vrot.slane %v2236, %v2242
        %2244 = vrot.lane.b32.xlu0 %v2243, 104
        %v2245 = vpop.permute.xlu0 %2244
        %v2246 = vrot.slane %v2245, 1
        %v2247 = vsel %vm1598, %v2245, %v2246
        %vm2249 = vcmp.ge.s32.totalorder %v2173, 96
        %vm2250 = vcmp.lt.s32.totalorder %v2173, 112
        %vm2251 = vmand %vm2249, %vm2250
        %2252 = vst.msk [vmem:[%s338] sm:$0x1] %vm2251, %v2247
        %v2254 = vunpack.c.l.s4 1966171168
        %v2255 = vunpack.c.0.s8 %v2254
        %v2256 = vlaneseq
        %v2257 = vshrl.u32 %v2256, 7
        %v2258 = vsub.s32 %v2255, %v2257
        %v2259 = vrot.slane %v2101, %v2258
        %v2261 = vunpack.c.l.s4 1966171168
        %v2262 = vunpack.c.0.s8 %v2261
        %v2263 = vlaneseq
        %v2264 = vshrl.u32 %v2263, 7
        %v2265 = vsub.s32 %v2262, %v2264
        %v2266 = vrot.slane %v2259, %v2265
        %2267 = vrot.lane.b32.xlu0 %v2266, 100
        %v2268 = vpop.permute.xlu0 %2267
        %vm2270 = vcmp.ge.s32.totalorder %v2173, 112
        %vm2271 = vcmp.lt.s32.totalorder %v2173, 128
        %vm2272 = vmand %vm2270, %vm2271
        %2273 = vst.msk [vmem:[%s338] sm:$0x1] %vm2272, %v2268
        %2274 = vrot.lane.b32.xlu0 %v2266, 96
        %v2275 = vpop.permute.xlu0 %2274
        %2277 = vst.msk [vmem:[%s338 + $0x1] sm:$0x1] %vm2176, %v2275
        %2278 = vrot.lane.b32.xlu0 %v2266, 92
        %v2279 = vpop.permute.xlu0 %2278
        %2281 = vst.msk [vmem:[%s338 + $0x1] sm:$0x1] %vm2198, %v2279
        %2282 = vrot.lane.b32.xlu0 %v2266, 88
        %v2283 = vpop.permute.xlu0 %2282
        %2285 = vst.msk [vmem:[%s338 + $0x1] sm:$0x1] %vm2205, %v2283
        %2286 = vrot.lane.b32.xlu0 %v2266, 84
        %v2287 = vpop.permute.xlu0 %2286
        %2289 = vst.msk [vmem:[%s338 + $0x1] sm:$0x1] %vm2212, %v2287
        %2290 = vrot.lane.b32.xlu0 %v2266, 80
        %v2291 = vpop.permute.xlu0 %2290
        %2293 = vst.msk [vmem:[%s338 + $0x1] sm:$0x1] %vm2219, %v2291
        %v2296 = vunpack.c.l.s4 1966171168
        %v2297 = vunpack.c.0.s8 %v2296
        %v2298 = vlaneseq
        %v2299 = vshrl.u32 %v2298, 7
        %v2300 = vsub.s32 %v2297, %v2299
        %v2301 = vrot.slane %v2170, %v2300
        %v2303 = vunpack.c.l.s4 1966171168
        %v2304 = vunpack.c.0.s8 %v2303
        %v2305 = vlaneseq
        %v2306 = vshrl.u32 %v2305, 7
        %v2307 = vsub.s32 %v2304, %v2306
        %v2308 = vrot.slane %v2301, %v2307
        %2309 = vrot.lane.b32.xlu0 %v2308, 76
        %v2310 = vpop.permute.xlu0 %2309
        %2312 = vst.msk [vmem:[%s338 + $0x1] sm:$0x1] %vm2226, %v2310
        %2313 = vrot.lane.b32.xlu0 %v2308, 72
        %v2314 = vpop.permute.xlu0 %2313
        %2316 = vst.msk [vmem:[%s338 + $0x1] sm:$0x1] %vm2251, %v2314
        %2317 = vrot.lane.b32.xlu0 %v2308, 68
        %v2318 = vpop.permute.xlu0 %2317
        %2320 = vst.msk [vmem:[%s338 + $0x1] sm:$0x1] %vm2272, %v2318
        %s2321 = sand.u32 %s228, 1
        %s2322 = scalar_lea.sflag [#allocation7], %s2321
        %s2323 = sand.u32 %s228, 1
        %s2324 = smul.addr %s2323, 2
        %s2325 = scalar_lea.vmem [#allocation8], %s2324
        // Predicated region
        $region61: #{tpu_custom_call.1} parent=55 // pred_check
          %p2326 = pneg %p238
        $region62: #{tpu_custom_call.1} parent=55 // pred_check_branch
          %2328 = sbr.rel (%p2326) target = $region64
        $region63: #{tpu_custom_call.1} parent=55 // pred_region
          %s2330 = ssub.s32 32, 32
          %2331 = vsyncadd %s2322, %s2330
          %s2332 = smul.addr %s26, 2
          %s2333 = smul.addr %s2332, 16
          %s2334 = scalar_lea.hbm %s9, %s2333
          %s2336 = sshll.u32 %s2325, 4
          %s2337 = int_to_ptr.vmem [resolvable:$true] %s2336
          %2339 = dma.vmem_to_hbm [thread:$0]  %s2337, 32, %s2334, %s2322
        $region64: #{tpu_custom_call.1} parent=55 // pred_fallthru
          _
      $region56: #{tpu_custom_call.1} parent=5 // pred_fallthru
        _
      %p2340 = scmp.le.s32.totalorder 2, %s21
      // Predicated region
      $region65: #{tpu_custom_call.1} parent=5 // pred_check
        %p2341 = pneg %p2340
      $region66: #{tpu_custom_call.1} parent=5 // pred_check_branch
        %2343 = sbr.rel (%p2341) target = $region68
      $region67: #{tpu_custom_call.1} parent=5 // pred_region
        %s2344 = ssub.s32 %s21, 2
        // Predicated region
        $region69: #{tpu_custom_call.1} parent=67 // pred_check
          %p2345 = pneg %p244
        $region70: #{tpu_custom_call.1} parent=67 // pred_check_branch
          %2347 = sbr.rel (%p2345) target = $region72
        $region71: #{tpu_custom_call.1} parent=67 // pred_region
          %s2348 = sand.u32 %s229, 1
          %s2349 = scalar_lea.sflag [#allocation7], %s2348
          %s2350 = sand.u32 %s229, 1
          %s2351 = smul.addr %s2350, 2
          %s2352 = scalar_lea.vmem [#allocation8], %s2351
          %2353 = dma.done %s2349, 32
        $region72: #{tpu_custom_call.1} parent=67 // pred_fallthru
          _
      $region68: #{tpu_custom_call.1} parent=5 // pred_fallthru
        _
    $region6: #{tpu_custom_call.1} parent=1 // loop_footer
      %s25 = sadd.s32 1, %s21
    $region7: #{tpu_custom_call.1} parent=1 // loop_footer_branch
      %20 = sbr.rel target = $region3
    $region8: #{tpu_custom_call.1} parent=1 // loop_exit
      _
    %2354 = vsyncpa [#allocation6], 1
    %s2355 = scalar_lea.sflag [#allocation6], 1
    %2356 = vsyncpa %s2355, 1
    %2357 = vsyncpa [#allocation7], 1
    %s2358 = scalar_lea.sflag [#allocation7], 1
    %2359 = vsyncpa %s2358, 1

</llo_original>
